<compile_context>
chip_gen: v7x
topology: tpu7x:2x2x1
jax: 0.10.0
libtpu: 0.0.40
codegen_flags: <defaults>
</compile_context>

<pallas_src>
import jax
import jax.numpy as jnp
from jax.experimental import pallas as pl
from jax.experimental.pallas import tpu as pltpu


# ---------------------------------------------------------------------------
# Fused Pallas kernel: maxpool(2) -> conv3x3+ReLU -> conv3x3+ReLU
# ---------------------------------------------------------------------------
def _down_kernel(x_ref, w1_ref, b1_ref, w2_ref, b2_ref, o_ref):
    # x_ref : (1, Hp, 2, Wp, 2, Cin) f32   2x2 pool window on the two size-2 dims
    # w1_ref: (9, Cin,  Cmid) bf16         conv1 taps, tap k = ky*3 + kx (HWIO)
    # b1_ref: (1, Cmid) f32
    # w2_ref: (9, Cmid, Cout) bf16
    # b2_ref: (1, Cout) f32
    # o_ref : (1, Hp*Wp, Cout) f32
    Hp = x_ref.shape[1]
    Wp = x_ref.shape[3]
    Cin = x_ref.shape[5]
    n = Hp * Wp

    # ---- MaxPool2d(2): each half of the 2x2 window is a static slice of its
    # own size-2 dim -> plain VPU maxima, no strided or mid-lane access.
    blk = x_ref[0]                                        # (Hp, 2, Wp, 2, Cin)
    m = jnp.maximum(blk[:, 0], blk[:, 1])                 # (Hp, Wp, 2, Cin)
    pooled = jnp.maximum(m[:, :, 0, :], m[:, :, 1, :])    # (Hp, Wp, Cin)
    # Flatten (free relayout when Wp % 8 == 0, true for the shapes used here).
    act = pooled.reshape(n, Cin)                          # (Hp*Wp, Cin) f32

    # Column index of every flattened row, for the pad=1 W boundary masks.
    w_iota = jax.lax.broadcasted_iota(jnp.int32, (Hp, Wp, 1), 1)
    w_idx = w_iota.reshape(n, 1)
    not_last = w_idx < (Wp - 1)    # zero input col Wp-1 (feeds the dx=-1 taps)
    not_first = w_idx > 0          # zero input col 0    (feeds the dx=+1 taps)

    def shift_rows(src, off):
        # tap[r] = src[r + off] if 0 <= r + off < n else 0   (off is static).
        # The zero fill implements the pad=1 H boundary for free.
        if off == 0:
            return src
        if abs(off) >= n:
            return jnp.zeros_like(src)
        z = jnp.zeros((abs(off), src.shape[1]), src.dtype)
        if off > 0:
            return jnp.concatenate([src[off:, :], z], axis=0)
        return jnp.concatenate([z, src[:n + off, :]], axis=0)

    def conv3x3_relu(a, w_ref_k, b_ref_k):
        # 3x3 conv (pad=1) as 9 accumulating bf16 MXU dots over row-shifted
        # taps of the flattened activation; f32 accumulation, bias+ReLU in f32.
        a_l = jnp.where(not_last, a, 0.0)     # source for dx = -1 taps
        a_r = jnp.where(not_first, a, 0.0)    # source for dx = +1 taps
        acc = None
        for dy in (-1, 0, 1):
            for dx, src in ((-1, a_l), (0, a), (1, a_r)):
                tap = shift_rows(src, dy * Wp + dx).astype(jnp.bfloat16)
                part = jnp.dot(tap, w_ref_k[(dy + 1) * 3 + (dx + 1)],
                               preferred_element_type=jnp.float32)
                acc = part if acc is None else acc + part
        return jnp.maximum(acc + b_ref_k[...], 0.0)

    h = conv3x3_relu(act, w1_ref, b1_ref)                 # (Hp*Wp, Cmid) f32
    y = conv3x3_relu(h, w2_ref, b2_ref)                   # (Hp*Wp, Cout) f32
    o_ref[0] = y.astype(o_ref.dtype)


def down_pallas(x_nhwc, w1_r, b1, w2_r, b2):
    """x_nhwc (N,H,W,Cin) f32; w1_r (9,Cin,Cmid) bf16; w2_r (9,Cmid,Cout) bf16."""
    N, H, W, Cin = x_nhwc.shape
    assert H % 2 == 0 and W % 2 == 0, "MaxPool2d(2) needs even H, W"
    Hp, Wp = H // 2, W // 2
    Cmid = w1_r.shape[2]
    Cout = w2_r.shape[2]

    # Free contiguous reshape: the 2x2 pool window lands on two size-2 dims.
    x_r = x_nhwc.reshape(N, Hp, 2, Wp, 2, Cin)
    b1_2 = b1.reshape(1, Cmid).astype(jnp.float32)
    b2_2 = b2.reshape(1, Cout).astype(jnp.float32)

    # Weights/biases are grid-invariant -> single-buffer them.
    w_spec1 = pl.BlockSpec((9, Cin, Cmid), lambda n: (0, 0, 0),
                           pipeline_mode=pl.Buffered(1))
    b_spec1 = pl.BlockSpec((1, Cmid), lambda n: (0, 0),
                           pipeline_mode=pl.Buffered(1))
    w_spec2 = pl.BlockSpec((9, Cmid, Cout), lambda n: (0, 0, 0),
                           pipeline_mode=pl.Buffered(1))
    b_spec2 = pl.BlockSpec((1, Cout), lambda n: (0, 0),
                           pipeline_mode=pl.Buffered(1))

    out_flat = pl.pallas_call(
        _down_kernel,
        out_shape=jax.ShapeDtypeStruct((N, Hp * Wp, Cout), jnp.float32),
        grid_spec=pltpu.PrefetchScalarGridSpec(
            num_scalar_prefetch=0,
            grid=(N,),
            in_specs=[
                pl.BlockSpec((1, Hp, 2, Wp, 2, Cin),
                             lambda n: (n, 0, 0, 0, 0, 0)),
                w_spec1, b_spec1, w_spec2, b_spec2,
            ],
            out_specs=pl.BlockSpec((1, Hp * Wp, Cout), lambda n: (n, 0, 0))),
        compiler_params=pltpu.CompilerParams(
            dimension_semantics=("parallel",),
            # 64 MiB fits every generation (= v7x physical VMEM); v5e/v6e can
            # go higher for larger tiles once H-tiling is added.
            vmem_limit_bytes=64 * 1024 * 1024),
    )(x_r, w1_r, b1_2, w2_r, b2_2)

    # Free contiguous reshape back to NHWC at pooled resolution.
    return out_flat.reshape(N, Hp, Wp, Cout)


# ---------------------------------------------------------------------------
# Spectral normalization glue (torch.nn.utils.spectral_norm semantics:
# weight viewed as (Cout, Cin*k*k), 1 power iteration, eps=1e-12)
# ---------------------------------------------------------------------------
def _l2_normalize(v, eps=1e-12):
    return v / (jnp.linalg.norm(v) + eps)


def spectral_normalize(w_oihw, u):
    cout = w_oihw.shape[0]
    w_mat = w_oihw.reshape(cout, -1)                # (Cout, Cin*9)
    v = _l2_normalize(w_mat.T @ u)                  # one power iteration
    u_new = _l2_normalize(w_mat @ v)
    sigma = jnp.dot(u_new, w_mat @ v)
    return w_oihw / sigma, u_new


# ---------------------------------------------------------------------------
# Down module (forward only): MaxPool2d(2) -> DoubleConv
# ---------------------------------------------------------------------------
def init_down_params(key, in_channels, out_channels, mid_channels=None):
    if not mid_channels:
        mid_channels = out_channels
    k1, k2, k3, k4, k5, k6 = jax.random.split(key, 6)
    fan1 = in_channels * 9
    fan2 = mid_channels * 9
    return {
        "w1": jax.random.normal(k1, (mid_channels, in_channels, 3, 3),
                                jnp.float32) / jnp.sqrt(fan1),
        "b1": jax.random.normal(k2, (mid_channels,), jnp.float32) * 0.01,
        "u1": _l2_normalize(jax.random.normal(k3, (mid_channels,), jnp.float32)),
        "w2": jax.random.normal(k4, (out_channels, mid_channels, 3, 3),
                                jnp.float32) / jnp.sqrt(fan2),
        "b2": jax.random.normal(k5, (out_channels,), jnp.float32) * 0.01,
        "u2": _l2_normalize(jax.random.normal(k6, (out_channels,), jnp.float32)),
    }


@jax.jit
def down_forward(params, x_nchw):
    # Spectral norm + weight layout plumbing (tiny, done once per call).
    w1_sn, _ = spectral_normalize(params["w1"], params["u1"])
    w2_sn, _ = spectral_normalize(params["w2"], params["u2"])
    cin = params["w1"].shape[1]
    cmid = params["w2"].shape[1]
    # OIHW -> HWIO -> (9, Cin, Cout), tap k = ky*3 + kx; bf16 for the MXU.
    w1_r = jnp.transpose(w1_sn, (2, 3, 1, 0)).reshape(9, cin, -1).astype(jnp.bfloat16)
    w2_r = jnp.transpose(w2_sn, (2, 3, 1, 0)).reshape(9, cmid, -1).astype(jnp.bfloat16)

    x_nhwc = jnp.transpose(x_nchw, (0, 2, 3, 1))   # NCHW -> NHWC
    y = down_pallas(x_nhwc, w1_r, params["b1"], w2_r, params["b2"])
    return jnp.transpose(y, (0, 3, 1, 2))          # NHWC -> NCHW


# ---------------------------------------------------------------------------
# Reference (pure JAX, f32) for validation
# ---------------------------------------------------------------------------
def _conv_ref(x_nchw, w_oihw, b):
    y = jax.lax.conv_general_dilated(
        x_nchw, w_oihw, window_strides=(1, 1), padding=((1, 1), (1, 1)),
        dimension_numbers=("NCHW", "OIHW", "NCHW"))
    return jax.nn.relu(y + b[None, :, None, None])


def down_ref(params, x_nchw):
    xp = jax.lax.reduce_window(x_nchw, -jnp.inf, jax.lax.max,
                               (1, 1, 2, 2), (1, 1, 2, 2), "VALID")
    w1_sn, _ = spectral_normalize(params["w1"], params["u1"])
    w2_sn, _ = spectral_normalize(params["w2"], params["u2"])
    h = _conv_ref(xp, w1_sn, params["b1"])
    return _conv_ref(h, w2_sn, params["b2"])


if __name__ == "__main__":
    key = jax.random.PRNGKey(0)
    kx, kp = jax.random.split(key)

    N, Cin, H, W = 2, 4, 16, 16
    Cout = 8
    x = jax.random.normal(kx, (N, Cin, H, W), jnp.float32)

    params = init_down_params(kp, Cin, Cout)

    out = down_forward(params, x)
    out = jax.block_until_ready(out)

    ref = down_ref(params, x)
    assert out.shape == (N, Cout, H // 2, W // 2), out.shape
    # Tolerance loosened because the kernel uses bf16 MXU operands
    # (f32 accumulation); the reference is pure f32.
    assert jnp.allclose(out, ref, atol=5e-2, rtol=5e-2), \
        float(jnp.max(jnp.abs(out - ref)))

    print("KERNEL_OK")
</pallas_src>

<mosaic_0001>
module attributes {stable_mosaic.version = 11 : i64} {
  func.func @_down_kernel(%arg0: i32, %arg1: memref<1x8x2x8x2x4xf32, #tpu.memory_space<vmem>>, %arg2: memref<9x4x8xbf16, #tpu.memory_space<vmem>>, %arg3: memref<1x8xf32, #tpu.memory_space<vmem>>, %arg4: memref<9x8x8xbf16, #tpu.memory_space<vmem>>, %arg5: memref<1x8xf32, #tpu.memory_space<vmem>>, %arg6: memref<1x64x8xf32, #tpu.memory_space<vmem>>) attributes {dimension_semantics = [#tpu.dimension_semantics<parallel>], iteration_bounds = array<i64: 2>, scalar_prefetch = 0 : i64, scratch_operands = 0 : i64, tpu.core_type = #tpu.core_type<tc>, window_params = [{transform_indices = @transform_0, window_bounds = array<i64: 1, 8, 2, 8, 2, 4>}, {pipeline_mode = #tpu.pipeline_mode<synchronous>, transform_indices = @transform_1, window_bounds = array<i64: 9, 4, 8>}, {pipeline_mode = #tpu.pipeline_mode<synchronous>, transform_indices = @transform_2, window_bounds = array<i64: 1, 8>}, {pipeline_mode = #tpu.pipeline_mode<synchronous>, transform_indices = @transform_3, window_bounds = array<i64: 9, 8, 8>}, {pipeline_mode = #tpu.pipeline_mode<synchronous>, transform_indices = @transform_4, window_bounds = array<i64: 1, 8>}, {transform_indices = @transform_5, window_bounds = array<i64: 1, 64, 8>}]} {
    %c0 = arith.constant 0 : index
    %c0_0 = arith.constant 0 : index
    %c0_1 = arith.constant 0 : index
    %c0_2 = arith.constant 0 : index
    %c0_3 = arith.constant 0 : index
    %c0_4 = arith.constant 0 : index
    %0 = vector.load %arg1[%c0, %c0_0, %c0_1, %c0_2, %c0_3, %c0_4] : memref<1x8x2x8x2x4xf32, #tpu.memory_space<vmem>>, vector<1x8x2x8x2x4xf32>
    %1 = vector.shape_cast %0 : vector<1x8x2x8x2x4xf32> to vector<8x2x8x2x4xf32>
    %2 = vector.extract_strided_slice %1 {offsets = [0, 0, 0, 0, 0], sizes = [8, 1, 8, 2, 4], strides = [1, 1, 1, 1, 1]} : vector<8x2x8x2x4xf32> to vector<8x1x8x2x4xf32>
    %3 = vector.shape_cast %2 : vector<8x1x8x2x4xf32> to vector<8x8x2x4xf32>
    %4 = vector.extract_strided_slice %1 {offsets = [0, 1, 0, 0, 0], sizes = [8, 1, 8, 2, 4], strides = [1, 1, 1, 1, 1]} : vector<8x2x8x2x4xf32> to vector<8x1x8x2x4xf32>
    %5 = vector.shape_cast %4 : vector<8x1x8x2x4xf32> to vector<8x8x2x4xf32>
    %6 = arith.maximumf %3, %5 : vector<8x8x2x4xf32>
    %7 = vector.extract_strided_slice %6 {offsets = [0, 0, 0, 0], sizes = [8, 8, 1, 4], strides = [1, 1, 1, 1]} : vector<8x8x2x4xf32> to vector<8x8x1x4xf32>
    %8 = vector.shape_cast %7 : vector<8x8x1x4xf32> to vector<8x8x4xf32>
    %9 = vector.extract_strided_slice %6 {offsets = [0, 0, 1, 0], sizes = [8, 8, 1, 4], strides = [1, 1, 1, 1]} : vector<8x8x2x4xf32> to vector<8x8x1x4xf32>
    %10 = vector.shape_cast %9 : vector<8x8x1x4xf32> to vector<8x8x4xf32>
    %11 = arith.maximumf %8, %10 : vector<8x8x4xf32>
    %12 = vector.shape_cast %11 : vector<8x8x4xf32> to vector<64x4xf32>
    %13 = tpu.iota {dimensions = array<i32: 1>} : vector<8x8x1xi32>
    %14 = vector.shape_cast %13 : vector<8x8x1xi32> to vector<64x1xi32>
    %c7_i32 = arith.constant 7 : i32
    %15 = vector.broadcast %c7_i32 : i32 to vector<64x1xi32>
    %16 = arith.cmpi slt, %14, %15 : vector<64x1xi32>
    %c0_i32 = arith.constant 0 : i32
    %17 = vector.broadcast %c0_i32 : i32 to vector<64x1xi32>
    %18 = arith.cmpi sgt, %14, %17 : vector<64x1xi32>
    %cst = arith.constant 0.000000e+00 : f32
    %19 = vector.shape_cast %16 : vector<64x1xi1> to vector<64x1xi1>
    %20 = vector.broadcast %19 : vector<64x1xi1> to vector<64x4xi1>
    %21 = vector.broadcast %cst : f32 to vector<64x4xf32>
    %22 = arith.select %20, %12, %21 : vector<64x4xi1>, vector<64x4xf32>
    %cst_5 = arith.constant 0.000000e+00 : f32
    %23 = vector.shape_cast %18 : vector<64x1xi1> to vector<64x1xi1>
    %24 = vector.broadcast %23 : vector<64x1xi1> to vector<64x4xi1>
    %25 = vector.broadcast %cst_5 : f32 to vector<64x4xf32>
    %26 = arith.select %24, %12, %25 : vector<64x4xi1>, vector<64x4xf32>
    %cst_6 = arith.constant 0.000000e+00 : f32
    %27 = vector.broadcast %cst_6 : f32 to vector<9x4xf32>
    %28 = vector.extract_strided_slice %22 {offsets = [0, 0], sizes = [55, 4], strides = [1, 1]} : vector<64x4xf32> to vector<55x4xf32>
    %29 = tpu.concatenate %27, %28 in 0 : vector<9x4xf32>, vector<55x4xf32> -> vector<64x4xf32>
    %30 = arith.truncf %29 : vector<64x4xf32> to vector<64x4xbf16>
    %c0_7 = arith.constant 0 : index
    %c0_8 = arith.constant 0 : index
    %c0_9 = arith.constant 0 : index
    %31 = vector.load %arg2[%c0_7, %c0_8, %c0_9] : memref<9x4x8xbf16, #tpu.memory_space<vmem>>, vector<1x4x8xbf16>
    %32 = vector.shape_cast %31 : vector<1x4x8xbf16> to vector<4x8xbf16>
    %cst_10 = arith.constant dense<0.000000e+00> : vector<64x8xf32>
    %33 = tpu.matmul %30, %32, %cst_10 {dimension_numbers = #tpu.dot_dimension_numbers<[1], [0], [0], [1], [0, 0, 1, 1], [], []>} : vector<64x4xbf16>, vector<4x8xbf16>, vector<64x8xf32> -> vector<64x8xf32>
    %cst_11 = arith.constant 0.000000e+00 : f32
    %34 = vector.broadcast %cst_11 : f32 to vector<8x4xf32>
    %35 = vector.extract_strided_slice %12 {offsets = [0, 0], sizes = [56, 4], strides = [1, 1]} : vector<64x4xf32> to vector<56x4xf32>
    %36 = tpu.concatenate %34, %35 in 0 : vector<8x4xf32>, vector<56x4xf32> -> vector<64x4xf32>
    %37 = arith.truncf %36 : vector<64x4xf32> to vector<64x4xbf16>
    %c1 = arith.constant 1 : index
    %c0_12 = arith.constant 0 : index
    %c0_13 = arith.constant 0 : index
    %38 = vector.load %arg2[%c1, %c0_12, %c0_13] : memref<9x4x8xbf16, #tpu.memory_space<vmem>>, vector<1x4x8xbf16>
    %39 = vector.shape_cast %38 : vector<1x4x8xbf16> to vector<4x8xbf16>
    %cst_14 = arith.constant dense<0.000000e+00> : vector<64x8xf32>
    %40 = tpu.matmul %37, %39, %cst_14 {dimension_numbers = #tpu.dot_dimension_numbers<[1], [0], [0], [1], [0, 0, 1, 1], [], []>} : vector<64x4xbf16>, vector<4x8xbf16>, vector<64x8xf32> -> vector<64x8xf32>
    %41 = arith.addf %33, %40 : vector<64x8xf32>
    %cst_15 = arith.constant 0.000000e+00 : f32
    %42 = vector.broadcast %cst_15 : f32 to vector<7x4xf32>
    %43 = vector.extract_strided_slice %26 {offsets = [0, 0], sizes = [57, 4], strides = [1, 1]} : vector<64x4xf32> to vector<57x4xf32>
    %44 = tpu.concatenate %42, %43 in 0 : vector<7x4xf32>, vector<57x4xf32> -> vector<64x4xf32>
    %45 = arith.truncf %44 : vector<64x4xf32> to vector<64x4xbf16>
    %c2 = arith.constant 2 : index
    %c0_16 = arith.constant 0 : index
    %c0_17 = arith.constant 0 : index
    %46 = vector.load %arg2[%c2, %c0_16, %c0_17] : memref<9x4x8xbf16, #tpu.memory_space<vmem>>, vector<1x4x8xbf16>
    %47 = vector.shape_cast %46 : vector<1x4x8xbf16> to vector<4x8xbf16>
    %cst_18 = arith.constant dense<0.000000e+00> : vector<64x8xf32>
    %48 = tpu.matmul %45, %47, %cst_18 {dimension_numbers = #tpu.dot_dimension_numbers<[1], [0], [0], [1], [0, 0, 1, 1], [], []>} : vector<64x4xbf16>, vector<4x8xbf16>, vector<64x8xf32> -> vector<64x8xf32>
    %49 = arith.addf %41, %48 : vector<64x8xf32>
    %cst_19 = arith.constant 0.000000e+00 : f32
    %50 = vector.broadcast %cst_19 : f32 to vector<1x4xf32>
    %51 = vector.extract_strided_slice %22 {offsets = [0, 0], sizes = [63, 4], strides = [1, 1]} : vector<64x4xf32> to vector<63x4xf32>
    %52 = tpu.concatenate %50, %51 in 0 : vector<1x4xf32>, vector<63x4xf32> -> vector<64x4xf32>
    %53 = arith.truncf %52 : vector<64x4xf32> to vector<64x4xbf16>
    %c3 = arith.constant 3 : index
    %c0_20 = arith.constant 0 : index
    %c0_21 = arith.constant 0 : index
    %54 = vector.load %arg2[%c3, %c0_20, %c0_21] : memref<9x4x8xbf16, #tpu.memory_space<vmem>>, vector<1x4x8xbf16>
    %55 = vector.shape_cast %54 : vector<1x4x8xbf16> to vector<4x8xbf16>
    %cst_22 = arith.constant dense<0.000000e+00> : vector<64x8xf32>
    %56 = tpu.matmul %53, %55, %cst_22 {dimension_numbers = #tpu.dot_dimension_numbers<[1], [0], [0], [1], [0, 0, 1, 1], [], []>} : vector<64x4xbf16>, vector<4x8xbf16>, vector<64x8xf32> -> vector<64x8xf32>
    %57 = arith.addf %49, %56 : vector<64x8xf32>
    %58 = arith.truncf %12 : vector<64x4xf32> to vector<64x4xbf16>
    %c4 = arith.constant 4 : index
    %c0_23 = arith.constant 0 : index
    %c0_24 = arith.constant 0 : index
    %59 = vector.load %arg2[%c4, %c0_23, %c0_24] : memref<9x4x8xbf16, #tpu.memory_space<vmem>>, vector<1x4x8xbf16>
    %60 = vector.shape_cast %59 : vector<1x4x8xbf16> to vector<4x8xbf16>
    %cst_25 = arith.constant dense<0.000000e+00> : vector<64x8xf32>
    %61 = tpu.matmul %58, %60, %cst_25 {dimension_numbers = #tpu.dot_dimension_numbers<[1], [0], [0], [1], [0, 0, 1, 1], [], []>} : vector<64x4xbf16>, vector<4x8xbf16>, vector<64x8xf32> -> vector<64x8xf32>
    %62 = arith.addf %57, %61 : vector<64x8xf32>
    %cst_26 = arith.constant 0.000000e+00 : f32
    %63 = vector.broadcast %cst_26 : f32 to vector<1x4xf32>
    %64 = vector.extract_strided_slice %26 {offsets = [1, 0], sizes = [63, 4], strides = [1, 1]} : vector<64x4xf32> to vector<63x4xf32>
    %65 = tpu.concatenate %64, %63 in 0 : vector<63x4xf32>, vector<1x4xf32> -> vector<64x4xf32>
    %66 = arith.truncf %65 : vector<64x4xf32> to vector<64x4xbf16>
    %c5 = arith.constant 5 : index
    %c0_27 = arith.constant 0 : index
    %c0_28 = arith.constant 0 : index
    %67 = vector.load %arg2[%c5, %c0_27, %c0_28] : memref<9x4x8xbf16, #tpu.memory_space<vmem>>, vector<1x4x8xbf16>
    %68 = vector.shape_cast %67 : vector<1x4x8xbf16> to vector<4x8xbf16>
    %cst_29 = arith.constant dense<0.000000e+00> : vector<64x8xf32>
    %69 = tpu.matmul %66, %68, %cst_29 {dimension_numbers = #tpu.dot_dimension_numbers<[1], [0], [0], [1], [0, 0, 1, 1], [], []>} : vector<64x4xbf16>, vector<4x8xbf16>, vector<64x8xf32> -> vector<64x8xf32>
    %70 = arith.addf %62, %69 : vector<64x8xf32>
    %cst_30 = arith.constant 0.000000e+00 : f32
    %71 = vector.broadcast %cst_30 : f32 to vector<7x4xf32>
    %72 = vector.extract_strided_slice %22 {offsets = [7, 0], sizes = [57, 4], strides = [1, 1]} : vector<64x4xf32> to vector<57x4xf32>
    %73 = tpu.concatenate %72, %71 in 0 : vector<57x4xf32>, vector<7x4xf32> -> vector<64x4xf32>
    %74 = arith.truncf %73 : vector<64x4xf32> to vector<64x4xbf16>
    %c6 = arith.constant 6 : index
    %c0_31 = arith.constant 0 : index
    %c0_32 = arith.constant 0 : index
    %75 = vector.load %arg2[%c6, %c0_31, %c0_32] : memref<9x4x8xbf16, #tpu.memory_space<vmem>>, vector<1x4x8xbf16>
    %76 = vector.shape_cast %75 : vector<1x4x8xbf16> to vector<4x8xbf16>
    %cst_33 = arith.constant dense<0.000000e+00> : vector<64x8xf32>
    %77 = tpu.matmul %74, %76, %cst_33 {dimension_numbers = #tpu.dot_dimension_numbers<[1], [0], [0], [1], [0, 0, 1, 1], [], []>} : vector<64x4xbf16>, vector<4x8xbf16>, vector<64x8xf32> -> vector<64x8xf32>
    %78 = arith.addf %70, %77 : vector<64x8xf32>
    %cst_34 = arith.constant 0.000000e+00 : f32
    %79 = vector.broadcast %cst_34 : f32 to vector<8x4xf32>
    %80 = vector.extract_strided_slice %12 {offsets = [8, 0], sizes = [56, 4], strides = [1, 1]} : vector<64x4xf32> to vector<56x4xf32>
    %81 = tpu.concatenate %80, %79 in 0 : vector<56x4xf32>, vector<8x4xf32> -> vector<64x4xf32>
    %82 = arith.truncf %81 : vector<64x4xf32> to vector<64x4xbf16>
    %c7 = arith.constant 7 : index
    %c0_35 = arith.constant 0 : index
    %c0_36 = arith.constant 0 : index
    %83 = vector.load %arg2[%c7, %c0_35, %c0_36] : memref<9x4x8xbf16, #tpu.memory_space<vmem>>, vector<1x4x8xbf16>
    %84 = vector.shape_cast %83 : vector<1x4x8xbf16> to vector<4x8xbf16>
    %cst_37 = arith.constant dense<0.000000e+00> : vector<64x8xf32>
    %85 = tpu.matmul %82, %84, %cst_37 {dimension_numbers = #tpu.dot_dimension_numbers<[1], [0], [0], [1], [0, 0, 1, 1], [], []>} : vector<64x4xbf16>, vector<4x8xbf16>, vector<64x8xf32> -> vector<64x8xf32>
    %86 = arith.addf %78, %85 : vector<64x8xf32>
    %cst_38 = arith.constant 0.000000e+00 : f32
    %87 = vector.broadcast %cst_38 : f32 to vector<9x4xf32>
    %88 = vector.extract_strided_slice %26 {offsets = [9, 0], sizes = [55, 4], strides = [1, 1]} : vector<64x4xf32> to vector<55x4xf32>
    %89 = tpu.concatenate %88, %87 in 0 : vector<55x4xf32>, vector<9x4xf32> -> vector<64x4xf32>
    %90 = arith.truncf %89 : vector<64x4xf32> to vector<64x4xbf16>
    %c8 = arith.constant 8 : index
    %c0_39 = arith.constant 0 : index
    %c0_40 = arith.constant 0 : index
    %91 = vector.load %arg2[%c8, %c0_39, %c0_40] : memref<9x4x8xbf16, #tpu.memory_space<vmem>>, vector<1x4x8xbf16>
    %92 = vector.shape_cast %91 : vector<1x4x8xbf16> to vector<4x8xbf16>
    %cst_41 = arith.constant dense<0.000000e+00> : vector<64x8xf32>
    %93 = tpu.matmul %90, %92, %cst_41 {dimension_numbers = #tpu.dot_dimension_numbers<[1], [0], [0], [1], [0, 0, 1, 1], [], []>} : vector<64x4xbf16>, vector<4x8xbf16>, vector<64x8xf32> -> vector<64x8xf32>
    %94 = arith.addf %86, %93 : vector<64x8xf32>
    %c0_42 = arith.constant 0 : index
    %c0_43 = arith.constant 0 : index
    %95 = vector.load %arg3[%c0_42, %c0_43] : memref<1x8xf32, #tpu.memory_space<vmem>>, vector<1x8xf32>
    %96 = vector.broadcast %95 : vector<1x8xf32> to vector<64x8xf32>
    %97 = arith.addf %94, %96 : vector<64x8xf32>
    %cst_44 = arith.constant 0.000000e+00 : f32
    %98 = vector.broadcast %cst_44 : f32 to vector<64x8xf32>
    %99 = arith.maximumf %97, %98 : vector<64x8xf32>
    %cst_45 = arith.constant 0.000000e+00 : f32
    %100 = vector.shape_cast %16 : vector<64x1xi1> to vector<64x1xi1>
    %101 = vector.broadcast %100 : vector<64x1xi1> to vector<64x8xi1>
    %102 = vector.broadcast %cst_45 : f32 to vector<64x8xf32>
    %103 = arith.select %101, %99, %102 : vector<64x8xi1>, vector<64x8xf32>
    %cst_46 = arith.constant 0.000000e+00 : f32
    %104 = vector.shape_cast %18 : vector<64x1xi1> to vector<64x1xi1>
    %105 = vector.broadcast %104 : vector<64x1xi1> to vector<64x8xi1>
    %106 = vector.broadcast %cst_46 : f32 to vector<64x8xf32>
    %107 = arith.select %105, %99, %106 : vector<64x8xi1>, vector<64x8xf32>
    %cst_47 = arith.constant 0.000000e+00 : f32
    %108 = vector.broadcast %cst_47 : f32 to vector<9x8xf32>
    %109 = vector.extract_strided_slice %103 {offsets = [0, 0], sizes = [55, 8], strides = [1, 1]} : vector<64x8xf32> to vector<55x8xf32>
    %110 = tpu.concatenate %108, %109 in 0 : vector<9x8xf32>, vector<55x8xf32> -> vector<64x8xf32>
    %111 = arith.truncf %110 : vector<64x8xf32> to vector<64x8xbf16>
    %c0_48 = arith.constant 0 : index
    %c0_49 = arith.constant 0 : index
    %c0_50 = arith.constant 0 : index
    %112 = vector.load %arg4[%c0_48, %c0_49, %c0_50] : memref<9x8x8xbf16, #tpu.memory_space<vmem>>, vector<1x8x8xbf16>
    %113 = vector.shape_cast %112 : vector<1x8x8xbf16> to vector<8x8xbf16>
    %cst_51 = arith.constant dense<0.000000e+00> : vector<64x8xf32>
    %114 = tpu.matmul %111, %113, %cst_51 {dimension_numbers = #tpu.dot_dimension_numbers<[1], [0], [0], [1], [0, 0, 1, 1], [], []>} : vector<64x8xbf16>, vector<8x8xbf16>, vector<64x8xf32> -> vector<64x8xf32>
    %cst_52 = arith.constant 0.000000e+00 : f32
    %115 = vector.broadcast %cst_52 : f32 to vector<8x8xf32>
    %116 = vector.extract_strided_slice %99 {offsets = [0, 0], sizes = [56, 8], strides = [1, 1]} : vector<64x8xf32> to vector<56x8xf32>
    %117 = tpu.concatenate %115, %116 in 0 : vector<8x8xf32>, vector<56x8xf32> -> vector<64x8xf32>
    %118 = arith.truncf %117 : vector<64x8xf32> to vector<64x8xbf16>
    %c1_53 = arith.constant 1 : index
    %c0_54 = arith.constant 0 : index
    %c0_55 = arith.constant 0 : index
    %119 = vector.load %arg4[%c1_53, %c0_54, %c0_55] : memref<9x8x8xbf16, #tpu.memory_space<vmem>>, vector<1x8x8xbf16>
    %120 = vector.shape_cast %119 : vector<1x8x8xbf16> to vector<8x8xbf16>
    %cst_56 = arith.constant dense<0.000000e+00> : vector<64x8xf32>
    %121 = tpu.matmul %118, %120, %cst_56 {dimension_numbers = #tpu.dot_dimension_numbers<[1], [0], [0], [1], [0, 0, 1, 1], [], []>} : vector<64x8xbf16>, vector<8x8xbf16>, vector<64x8xf32> -> vector<64x8xf32>
    %122 = arith.addf %114, %121 : vector<64x8xf32>
    %cst_57 = arith.constant 0.000000e+00 : f32
    %123 = vector.broadcast %cst_57 : f32 to vector<7x8xf32>
    %124 = vector.extract_strided_slice %107 {offsets = [0, 0], sizes = [57, 8], strides = [1, 1]} : vector<64x8xf32> to vector<57x8xf32>
    %125 = tpu.concatenate %123, %124 in 0 : vector<7x8xf32>, vector<57x8xf32> -> vector<64x8xf32>
    %126 = arith.truncf %125 : vector<64x8xf32> to vector<64x8xbf16>
    %c2_58 = arith.constant 2 : index
    %c0_59 = arith.constant 0 : index
    %c0_60 = arith.constant 0 : index
    %127 = vector.load %arg4[%c2_58, %c0_59, %c0_60] : memref<9x8x8xbf16, #tpu.memory_space<vmem>>, vector<1x8x8xbf16>
    %128 = vector.shape_cast %127 : vector<1x8x8xbf16> to vector<8x8xbf16>
    %cst_61 = arith.constant dense<0.000000e+00> : vector<64x8xf32>
    %129 = tpu.matmul %126, %128, %cst_61 {dimension_numbers = #tpu.dot_dimension_numbers<[1], [0], [0], [1], [0, 0, 1, 1], [], []>} : vector<64x8xbf16>, vector<8x8xbf16>, vector<64x8xf32> -> vector<64x8xf32>
    %130 = arith.addf %122, %129 : vector<64x8xf32>
    %cst_62 = arith.constant 0.000000e+00 : f32
    %131 = vector.broadcast %cst_62 : f32 to vector<1x8xf32>
    %132 = vector.extract_strided_slice %103 {offsets = [0, 0], sizes = [63, 8], strides = [1, 1]} : vector<64x8xf32> to vector<63x8xf32>
    %133 = tpu.concatenate %131, %132 in 0 : vector<1x8xf32>, vector<63x8xf32> -> vector<64x8xf32>
    %134 = arith.truncf %133 : vector<64x8xf32> to vector<64x8xbf16>
    %c3_63 = arith.constant 3 : index
    %c0_64 = arith.constant 0 : index
    %c0_65 = arith.constant 0 : index
    %135 = vector.load %arg4[%c3_63, %c0_64, %c0_65] : memref<9x8x8xbf16, #tpu.memory_space<vmem>>, vector<1x8x8xbf16>
    %136 = vector.shape_cast %135 : vector<1x8x8xbf16> to vector<8x8xbf16>
    %cst_66 = arith.constant dense<0.000000e+00> : vector<64x8xf32>
    %137 = tpu.matmul %134, %136, %cst_66 {dimension_numbers = #tpu.dot_dimension_numbers<[1], [0], [0], [1], [0, 0, 1, 1], [], []>} : vector<64x8xbf16>, vector<8x8xbf16>, vector<64x8xf32> -> vector<64x8xf32>
    %138 = arith.addf %130, %137 : vector<64x8xf32>
    %139 = arith.truncf %99 : vector<64x8xf32> to vector<64x8xbf16>
    %c4_67 = arith.constant 4 : index
    %c0_68 = arith.constant 0 : index
    %c0_69 = arith.constant 0 : index
    %140 = vector.load %arg4[%c4_67, %c0_68, %c0_69] : memref<9x8x8xbf16, #tpu.memory_space<vmem>>, vector<1x8x8xbf16>
    %141 = vector.shape_cast %140 : vector<1x8x8xbf16> to vector<8x8xbf16>
    %cst_70 = arith.constant dense<0.000000e+00> : vector<64x8xf32>
    %142 = tpu.matmul %139, %141, %cst_70 {dimension_numbers = #tpu.dot_dimension_numbers<[1], [0], [0], [1], [0, 0, 1, 1], [], []>} : vector<64x8xbf16>, vector<8x8xbf16>, vector<64x8xf32> -> vector<64x8xf32>
    %143 = arith.addf %138, %142 : vector<64x8xf32>
    %cst_71 = arith.constant 0.000000e+00 : f32
    %144 = vector.broadcast %cst_71 : f32 to vector<1x8xf32>
    %145 = vector.extract_strided_slice %107 {offsets = [1, 0], sizes = [63, 8], strides = [1, 1]} : vector<64x8xf32> to vector<63x8xf32>
    %146 = tpu.concatenate %145, %144 in 0 : vector<63x8xf32>, vector<1x8xf32> -> vector<64x8xf32>
    %147 = arith.truncf %146 : vector<64x8xf32> to vector<64x8xbf16>
    %c5_72 = arith.constant 5 : index
    %c0_73 = arith.constant 0 : index
    %c0_74 = arith.constant 0 : index
    %148 = vector.load %arg4[%c5_72, %c0_73, %c0_74] : memref<9x8x8xbf16, #tpu.memory_space<vmem>>, vector<1x8x8xbf16>
    %149 = vector.shape_cast %148 : vector<1x8x8xbf16> to vector<8x8xbf16>
    %cst_75 = arith.constant dense<0.000000e+00> : vector<64x8xf32>
    %150 = tpu.matmul %147, %149, %cst_75 {dimension_numbers = #tpu.dot_dimension_numbers<[1], [0], [0], [1], [0, 0, 1, 1], [], []>} : vector<64x8xbf16>, vector<8x8xbf16>, vector<64x8xf32> -> vector<64x8xf32>
    %151 = arith.addf %143, %150 : vector<64x8xf32>
    %cst_76 = arith.constant 0.000000e+00 : f32
    %152 = vector.broadcast %cst_76 : f32 to vector<7x8xf32>
    %153 = vector.extract_strided_slice %103 {offsets = [7, 0], sizes = [57, 8], strides = [1, 1]} : vector<64x8xf32> to vector<57x8xf32>
    %154 = tpu.concatenate %153, %152 in 0 : vector<57x8xf32>, vector<7x8xf32> -> vector<64x8xf32>
    %155 = arith.truncf %154 : vector<64x8xf32> to vector<64x8xbf16>
    %c6_77 = arith.constant 6 : index
    %c0_78 = arith.constant 0 : index
    %c0_79 = arith.constant 0 : index
    %156 = vector.load %arg4[%c6_77, %c0_78, %c0_79] : memref<9x8x8xbf16, #tpu.memory_space<vmem>>, vector<1x8x8xbf16>
    %157 = vector.shape_cast %156 : vector<1x8x8xbf16> to vector<8x8xbf16>
    %cst_80 = arith.constant dense<0.000000e+00> : vector<64x8xf32>
    %158 = tpu.matmul %155, %157, %cst_80 {dimension_numbers = #tpu.dot_dimension_numbers<[1], [0], [0], [1], [0, 0, 1, 1], [], []>} : vector<64x8xbf16>, vector<8x8xbf16>, vector<64x8xf32> -> vector<64x8xf32>
    %159 = arith.addf %151, %158 : vector<64x8xf32>
    %cst_81 = arith.constant 0.000000e+00 : f32
    %160 = vector.broadcast %cst_81 : f32 to vector<8x8xf32>
    %161 = vector.extract_strided_slice %99 {offsets = [8, 0], sizes = [56, 8], strides = [1, 1]} : vector<64x8xf32> to vector<56x8xf32>
    %162 = tpu.concatenate %161, %160 in 0 : vector<56x8xf32>, vector<8x8xf32> -> vector<64x8xf32>
    %163 = arith.truncf %162 : vector<64x8xf32> to vector<64x8xbf16>
    %c7_82 = arith.constant 7 : index
    %c0_83 = arith.constant 0 : index
    %c0_84 = arith.constant 0 : index
    %164 = vector.load %arg4[%c7_82, %c0_83, %c0_84] : memref<9x8x8xbf16, #tpu.memory_space<vmem>>, vector<1x8x8xbf16>
    %165 = vector.shape_cast %164 : vector<1x8x8xbf16> to vector<8x8xbf16>
    %cst_85 = arith.constant dense<0.000000e+00> : vector<64x8xf32>
    %166 = tpu.matmul %163, %165, %cst_85 {dimension_numbers = #tpu.dot_dimension_numbers<[1], [0], [0], [1], [0, 0, 1, 1], [], []>} : vector<64x8xbf16>, vector<8x8xbf16>, vector<64x8xf32> -> vector<64x8xf32>
    %167 = arith.addf %159, %166 : vector<64x8xf32>
    %cst_86 = arith.constant 0.000000e+00 : f32
    %168 = vector.broadcast %cst_86 : f32 to vector<9x8xf32>
    %169 = vector.extract_strided_slice %107 {offsets = [9, 0], sizes = [55, 8], strides = [1, 1]} : vector<64x8xf32> to vector<55x8xf32>
    %170 = tpu.concatenate %169, %168 in 0 : vector<55x8xf32>, vector<9x8xf32> -> vector<64x8xf32>
    %171 = arith.truncf %170 : vector<64x8xf32> to vector<64x8xbf16>
    %c8_87 = arith.constant 8 : index
    %c0_88 = arith.constant 0 : index
    %c0_89 = arith.constant 0 : index
    %172 = vector.load %arg4[%c8_87, %c0_88, %c0_89] : memref<9x8x8xbf16, #tpu.memory_space<vmem>>, vector<1x8x8xbf16>
    %173 = vector.shape_cast %172 : vector<1x8x8xbf16> to vector<8x8xbf16>
    %cst_90 = arith.constant dense<0.000000e+00> : vector<64x8xf32>
    %174 = tpu.matmul %171, %173, %cst_90 {dimension_numbers = #tpu.dot_dimension_numbers<[1], [0], [0], [1], [0, 0, 1, 1], [], []>} : vector<64x8xbf16>, vector<8x8xbf16>, vector<64x8xf32> -> vector<64x8xf32>
    %175 = arith.addf %167, %174 : vector<64x8xf32>
    %c0_91 = arith.constant 0 : index
    %c0_92 = arith.constant 0 : index
    %176 = vector.load %arg5[%c0_91, %c0_92] : memref<1x8xf32, #tpu.memory_space<vmem>>, vector<1x8xf32>
    %177 = vector.broadcast %176 : vector<1x8xf32> to vector<64x8xf32>
    %178 = arith.addf %175, %177 : vector<64x8xf32>
    %cst_93 = arith.constant 0.000000e+00 : f32
    %179 = vector.broadcast %cst_93 : f32 to vector<64x8xf32>
    %180 = arith.maximumf %178, %179 : vector<64x8xf32>
    %c0_94 = arith.constant 0 : index
    %c0_95 = arith.constant 0 : index
    %c0_96 = arith.constant 0 : index
    %181 = vector.load %arg6[%c0_94, %c0_95, %c0_96] : memref<1x64x8xf32, #tpu.memory_space<vmem>>, vector<1x64x8xf32>
    %182 = vector.shape_cast %181 : vector<1x64x8xf32> to vector<64x8xf32>
    %183 = vector.shape_cast %180 : vector<64x8xf32> to vector<1x64x8xf32>
    tpu.vector_store %arg6[%c0_94, %c0_95, %c0_96], %183 {strides = array<i32>} : memref<1x64x8xf32, #tpu.memory_space<vmem>>, vector<1x64x8xf32>,
    return
  }
  func.func @transform_0(%arg0: i32) -> (i32, i32, i32, i32, i32, i32) {
    %c0_i32 = arith.constant 0 : i32
    %c0_i32_0 = arith.constant 0 : i32
    %c0_i32_1 = arith.constant 0 : i32
    %c0_i32_2 = arith.constant 0 : i32
    %c0_i32_3 = arith.constant 0 : i32
    %c0_i32_4 = arith.constant 0 : i32
    return %arg0, %c0_i32, %c0_i32_0, %c0_i32_1, %c0_i32_2, %c0_i32_3 : i32, i32, i32, i32, i32, i32
  }
  func.func @transform_1(%arg0: i32) -> (i32, i32, i32) {
    %c0_i32 = arith.constant 0 : i32
    %c0_i32_0 = arith.constant 0 : i32
    %c0_i32_1 = arith.constant 0 : i32
    %c0_i32_2 = arith.constant 0 : i32
    return %c0_i32, %c0_i32_0, %c0_i32_1 : i32, i32, i32
  }
  func.func @transform_2(%arg0: i32) -> (i32, i32) {
    %c0_i32 = arith.constant 0 : i32
    %c0_i32_0 = arith.constant 0 : i32
    %c0_i32_1 = arith.constant 0 : i32
    return %c0_i32, %c0_i32_0 : i32, i32
  }
  func.func @transform_3(%arg0: i32) -> (i32, i32, i32) {
    %c0_i32 = arith.constant 0 : i32
    %c0_i32_0 = arith.constant 0 : i32
    %c0_i32_1 = arith.constant 0 : i32
    %c0_i32_2 = arith.constant 0 : i32
    return %c0_i32, %c0_i32_0, %c0_i32_1 : i32, i32, i32
  }
  func.func @transform_4(%arg0: i32) -> (i32, i32) {
    %c0_i32 = arith.constant 0 : i32
    %c0_i32_0 = arith.constant 0 : i32
    %c0_i32_1 = arith.constant 0 : i32
    return %c0_i32, %c0_i32_0 : i32, i32
  }
  func.func @transform_5(%arg0: i32) -> (i32, i32, i32) {
    %c0_i32 = arith.constant 0 : i32
    %c0_i32_0 = arith.constant 0 : i32
    %c0_i32_1 = arith.constant 0 : i32
    return %arg0, %c0_i32, %c0_i32_0 : i32, i32, i32
  }
}

</mosaic_0001>

<llo_original>
// kernel: down_forward.1
$region0: #{down_forward.1}
  #allocation0 [shape = 'u32[]', space=smem, size = 0x4, offset = 0x4, fixed_abs, tag = 'smem constant byte address 0x4 - core index']
  #allocation1 [shape = 'u32[144,128]{1,0:T(1,128)}', space=vmem, size = 0x12000, scoped, tag = 'internal scratch']
  %s0 = inlined_call_operand.hbm [shape: f32[2,8,2,8,2,4], index: 0, kind: input, shape index: {}]
  %s1 = inlined_call_operand.hbm [shape: bf16[9,4,8], index: 1, kind: input, shape index: {}]
  %s2 = inlined_call_operand.hbm [shape: f32[1,8], index: 2, kind: input, shape index: {}]
  %s3 = inlined_call_operand.hbm [shape: bf16[9,8,8], index: 3, kind: input, shape index: {}]
  %s4 = inlined_call_operand.hbm [shape: f32[1,8], index: 4, kind: input, shape index: {}]
  %s5 = inlined_call_operand.hbm [shape: f32[2,64,8], index: 5, kind: output, shape index: {}]
  %s6 = sld [smem:[#allocation0]]
  $region73: #{down_forward.1} parent=0
    _
  %s8 = ssub.s32 1, %s6
  %s9 = scalar_select 0, %s8, %s6
  $region1: #{down_forward.1} parent=0
    #allocation2 [shape = 'u8[262144]{0}', space=vmem, size = 0x40000, scoped, tag = 'input window, operand 0']
    #allocation3 [shape = 's32[2]{0}', space=sflag, size = 0x8, scoped, tag = 'scoped memory for down_forward.1']
    #allocation4 [shape = 's32[2]{0}', space=sflag, size = 0x8, scoped, tag = 'scoped memory for down_forward.1']
    #allocation5 [shape = 'u8[9216]{0}', space=vmem, size = 0x2400, scoped, tag = 'input window, operand 1, single buffered']
    #allocation6 [shape = 's32[1]{0}', space=sflag, size = 0x4, scoped, tag = 'scoped memory for down_forward.1']
    #allocation7 [shape = 'u8[512]{0}', space=vmem, size = 0x400, scoped, tag = 'input window, operand 2, single buffered']
    #allocation8 [shape = 'u8[18432]{0}', space=vmem, size = 0x4800, scoped, tag = 'input window, operand 3, single buffered']
    #allocation9 [shape = 's32[1]{0}', space=sflag, size = 0x4, scoped, tag = 'scoped memory for down_forward.1']
    #allocation10 [shape = 'u8[512]{0}', space=vmem, size = 0x400, scoped, tag = 'input window, operand 4, single buffered']
    #allocation11 [shape = 'u8[65536]{0}', space=vmem, size = 0x10000, scoped, tag = 'output window, operand 0']
    %10 = vsyncpa [#allocation3], 0
    %s11 = scalar_lea.sflag [#allocation3], 1
    %12 = vsyncpa %s11, 0
    %13 = vsyncpa [#allocation6], 0
    %14 = vsyncpa [#allocation9], 0
    %15 = vsyncpa [#allocation4], 0
    %s16 = scalar_lea.sflag [#allocation4], 1
    %17 = vsyncpa %s16, 0
    loop: start=0, step=1, limit=4
    $region2: #{down_forward.1} parent=1 // loop_pre_header
      _
    $region3: #{down_forward.1} parent=1 // loop_header
      %s19 = sphi 0, %s23
      %p20 = scmp.ge.s32.totalorder %s19, 4
      %s29 = sphi 0, %s31
      %s32 = sphi 0, %s29
      %s33 = sphi 0, %s32
      %s49 = sphi 0, %s33
      %s53 = sphi 0, %s53
      %s55 = sphi 0, %s53
      %s56 = sphi 0, %s55
      %s70 = sphi 0, %s56
      %s74 = sphi 0, %s74
      %s76 = sphi 0, %s74
      %s77 = sphi 0, %s76
      %s91 = sphi 0, %s77
      %s95 = sphi 0, %s95
      %s97 = sphi 0, %s95
      %s98 = sphi 0, %s97
      %s112 = sphi 0, %s98
      %s116 = sphi 0, %s116
      %s118 = sphi 0, %s116
      %s119 = sphi 0, %s118
      %s133 = sphi 0, %s119
      %s139 = sphi 0, %s141
      %s142 = sphi 0, %s139
      %s143 = sphi 0, %s142
      %s159 = sphi 0, %s143
    $region4: #{down_forward.1} parent=1 // loop_header_branch
      %22 = sbr.rel (%p20) target = $region8
    $region5: #{down_forward.1} parent=1 // loop_body
      %s24 = ssub.s32 %s19, 1
      %s25 = ssub.s32 %s19, 2
      %s26 = sadd.s32 %s19, 1
      %s27 = ssub.s32 %s19, %s26
      %p28 = scmp.eq.s32.totalorder %s27, 0
      %s30 = sadd.s32 %s29, 1
      %s31 = scalar_select %p28, %s29, %s30
      %p34 = pneg %p28
      %p35 = scmp.eq.s32.totalorder %s19, 1
      %p36 = por %p34, %p35
      %p37 = scmp.ne.s32.totalorder %s29, %s32
      %p38 = scmp.eq.s32.totalorder %s19, 0
      %p39 = por %p37, %p38
      %p40 = scmp.ne.s32.totalorder %s29, %s32
      %p41 = scmp.eq.s32.totalorder %s24, 1
      %p42 = por %p40, %p41
      %p43 = scmp.ne.s32.totalorder %s32, %s33
      %p44 = scmp.eq.s32.totalorder %s24, 0
      %p45 = por %p43, %p44
      %p46 = scmp.ne.s32.totalorder %s32, %s33
      %p47 = scmp.eq.s32.totalorder %s25, 1
      %p48 = por %p46, %p47
      %p50 = scmp.ne.s32.totalorder %s33, %s49
      %p51 = scmp.eq.s32.totalorder %s25, 0
      %p52 = por %p50, %p51
      %s54 = sadd.s32 %s53, 1
      %p57 = scmp.eq.s32.totalorder %s19, 1
      %p58 = scmp.ne.s32.totalorder %s53, %s55
      %p59 = scmp.eq.s32.totalorder %s19, 0
      %p60 = por %p58, %p59
      %p61 = scmp.ne.s32.totalorder %s53, %s55
      %p62 = scmp.eq.s32.totalorder %s24, 1
      %p63 = por %p61, %p62
      %p64 = scmp.ne.s32.totalorder %s55, %s56
      %p65 = scmp.eq.s32.totalorder %s24, 0
      %p66 = por %p64, %p65
      %p67 = scmp.ne.s32.totalorder %s55, %s56
      %p68 = scmp.eq.s32.totalorder %s25, 1
      %p69 = por %p67, %p68
      %p71 = scmp.ne.s32.totalorder %s56, %s70
      %p72 = scmp.eq.s32.totalorder %s25, 0
      %p73 = por %p71, %p72
      %s75 = sadd.s32 %s74, 1
      %p78 = scmp.eq.s32.totalorder %s19, 1
      %p79 = scmp.ne.s32.totalorder %s74, %s76
      %p80 = scmp.eq.s32.totalorder %s19, 0
      %p81 = por %p79, %p80
      %p82 = scmp.ne.s32.totalorder %s74, %s76
      %p83 = scmp.eq.s32.totalorder %s24, 1
      %p84 = por %p82, %p83
      %p85 = scmp.ne.s32.totalorder %s76, %s77
      %p86 = scmp.eq.s32.totalorder %s24, 0
      %p87 = por %p85, %p86
      %p88 = scmp.ne.s32.totalorder %s76, %s77
      %p89 = scmp.eq.s32.totalorder %s25, 1
      %p90 = por %p88, %p89
      %p92 = scmp.ne.s32.totalorder %s77, %s91
      %p93 = scmp.eq.s32.totalorder %s25, 0
      %p94 = por %p92, %p93
      %s96 = sadd.s32 %s95, 1
      %p99 = scmp.eq.s32.totalorder %s19, 1
      %p100 = scmp.ne.s32.totalorder %s95, %s97
      %p101 = scmp.eq.s32.totalorder %s19, 0
      %p102 = por %p100, %p101
      %p103 = scmp.ne.s32.totalorder %s95, %s97
      %p104 = scmp.eq.s32.totalorder %s24, 1
      %p105 = por %p103, %p104
      %p106 = scmp.ne.s32.totalorder %s97, %s98
      %p107 = scmp.eq.s32.totalorder %s24, 0
      %p108 = por %p106, %p107
      %p109 = scmp.ne.s32.totalorder %s97, %s98
      %p110 = scmp.eq.s32.totalorder %s25, 1
      %p111 = por %p109, %p110
      %p113 = scmp.ne.s32.totalorder %s98, %s112
      %p114 = scmp.eq.s32.totalorder %s25, 0
      %p115 = por %p113, %p114
      %s117 = sadd.s32 %s116, 1
      %p120 = scmp.eq.s32.totalorder %s19, 1
      %p121 = scmp.ne.s32.totalorder %s116, %s118
      %p122 = scmp.eq.s32.totalorder %s19, 0
      %p123 = por %p121, %p122
      %p124 = scmp.ne.s32.totalorder %s116, %s118
      %p125 = scmp.eq.s32.totalorder %s24, 1
      %p126 = por %p124, %p125
      %p127 = scmp.ne.s32.totalorder %s118, %s119
      %p128 = scmp.eq.s32.totalorder %s24, 0
      %p129 = por %p127, %p128
      %p130 = scmp.ne.s32.totalorder %s118, %s119
      %p131 = scmp.eq.s32.totalorder %s25, 1
      %p132 = por %p130, %p131
      %p134 = scmp.ne.s32.totalorder %s119, %s133
      %p135 = scmp.eq.s32.totalorder %s25, 0
      %p136 = por %p134, %p135
      %s137 = ssub.s32 %s19, %s26
      %p138 = scmp.eq.s32.totalorder %s137, 0
      %s140 = sadd.s32 %s139, 1
      %s141 = scalar_select %p138, %s139, %s140
      %p144 = pneg %p138
      %p145 = scmp.eq.s32.totalorder %s19, 1
      %p146 = por %p144, %p145
      %p147 = scmp.ne.s32.totalorder %s139, %s142
      %p148 = scmp.eq.s32.totalorder %s19, 0
      %p149 = por %p147, %p148
      %p150 = scmp.ne.s32.totalorder %s139, %s142
      %p151 = scmp.eq.s32.totalorder %s24, 1
      %p152 = por %p150, %p151
      %p153 = scmp.ne.s32.totalorder %s142, %s143
      %p154 = scmp.eq.s32.totalorder %s24, 0
      %p155 = por %p153, %p154
      %p156 = scmp.ne.s32.totalorder %s142, %s143
      %p157 = scmp.eq.s32.totalorder %s25, 1
      %p158 = por %p156, %p157
      %p160 = scmp.ne.s32.totalorder %s143, %s159
      %p161 = scmp.eq.s32.totalorder %s25, 0
      %p162 = por %p160, %p161
      %p163 = scmp.le.s32.totalorder 1, %s19
      %p164 = scmp.lt.s32.totalorder %s19, 3
      %p165 = pnand %p163, %p164
      %p166 = pneg %p165
      // Predicated region
      $region9: #{down_forward.1} parent=5 // pred_check
        _
      $region10: #{down_forward.1} parent=5 // pred_check_branch
        %168 = sbr.rel (%p165) target = $region12
      $region11: #{down_forward.1} parent=5 // pred_region
        %s169 = ssub.s32 %s19, 1
        // Predicated region
        $region13: #{down_forward.1} parent=11 // pred_check
          %p170 = pneg %p66
        $region14: #{down_forward.1} parent=11 // pred_check_branch
          %172 = sbr.rel (%p170) target = $region16
        $region15: #{down_forward.1} parent=11 // pred_region
          %s174 = ssub.s32 288, 288
          %175 = vsyncadd [#allocation6], %s174
          %s176 = sshll.u32 [#allocation5], 4
          %s177 = int_to_ptr.vmem [resolvable:$true] %s176
          %182 = dma.hbm_to_vmem [thread:$0]  %s1, 288, %s177, [#allocation6], 32, 32, 2
        $region16: #{down_forward.1} parent=11 // pred_fallthru
          _
        // Predicated region
        $region17: #{down_forward.1} parent=11 // pred_check
          %p183 = pneg %p87
        $region18: #{down_forward.1} parent=11 // pred_check_branch
          %185 = sbr.rel (%p183) target = $region20
        $region19: #{down_forward.1} parent=11 // pred_region
          %s187 = ssub.s32 16, 16
          %188 = vsyncadd [#allocation6], %s187
          %s190 = sshll.u32 [#allocation7], 4
          %s191 = int_to_ptr.vmem [resolvable:$true] %s190
          %193 = dma.hbm_to_vmem [thread:$0]  %s2, 16, %s191, [#allocation6]
        $region20: #{down_forward.1} parent=11 // pred_fallthru
          _
        // Predicated region
        $region21: #{down_forward.1} parent=11 // pred_check
          %p194 = pneg %p108
        $region22: #{down_forward.1} parent=11 // pred_check_branch
          %196 = sbr.rel (%p194) target = $region24
        $region23: #{down_forward.1} parent=11 // pred_region
          %s198 = ssub.s32 576, 576
          %199 = vsyncadd [#allocation9], %s198
          %s200 = sshll.u32 [#allocation8], 4
          %s201 = int_to_ptr.vmem [resolvable:$true] %s200
          %206 = dma.hbm_to_vmem [thread:$0]  %s3, 576, %s201, [#allocation9], 64, 64, 4
        $region24: #{down_forward.1} parent=11 // pred_fallthru
          _
        // Predicated region
        $region25: #{down_forward.1} parent=11 // pred_check
          %p207 = pneg %p129
        $region26: #{down_forward.1} parent=11 // pred_check_branch
          %209 = sbr.rel (%p207) target = $region28
        $region27: #{down_forward.1} parent=11 // pred_region
          %s211 = ssub.s32 16, 16
          %212 = vsyncadd [#allocation9], %s211
          %s214 = sshll.u32 [#allocation10], 4
          %s215 = int_to_ptr.vmem [resolvable:$true] %s214
          %217 = dma.hbm_to_vmem [thread:$0]  %s4, 16, %s215, [#allocation9]
        $region28: #{down_forward.1} parent=11 // pred_fallthru
          _
      $region12: #{down_forward.1} parent=5 // pred_fallthru
        _
      %p218 = scmp.lt.s32.totalorder %s19, 2
      // Predicated region
      $region29: #{down_forward.1} parent=5 // pred_check
        %p219 = pneg %p218
      $region30: #{down_forward.1} parent=5 // pred_check_branch
        %221 = sbr.rel (%p219) target = $region32
      $region31: #{down_forward.1} parent=5 // pred_region
        // Predicated region
        $region33: #{down_forward.1} parent=31 // pred_check
          %p222 = pneg %p39
        $region34: #{down_forward.1} parent=31 // pred_check_branch
          %224 = sbr.rel (%p222) target = $region36
        $region35: #{down_forward.1} parent=31 // pred_region
          %s225 = sand.u32 %s29, 1
          %s226 = scalar_lea.sflag [#allocation3], %s225
          %s227 = sand.u32 %s29, 1
          %s228 = smul.addr %s227, 256
          %s229 = scalar_lea.vmem [#allocation2], %s228
          %s231 = ssub.s32 4096, 4096
          %232 = vsyncadd %s226, %s231
          %s233 = smul.addr %s19, 128
          %s234 = smul.addr %s233, 32
          %s235 = scalar_lea.hbm %s0, %s234
          %s236 = sshll.u32 %s229, 4
          %s237 = int_to_ptr.vmem [resolvable:$true] %s236
          %242 = dma.hbm_to_vmem [thread:$0]  %s235, 4096, %s237, %s226, 32, 32, 2
        $region36: #{down_forward.1} parent=31 // pred_fallthru
          _
      $region32: #{down_forward.1} parent=5 // pred_fallthru
        _
      %p243 = scmp.le.s32.totalorder 1, %s19
      %p244 = scmp.lt.s32.totalorder %s19, 3
      %p245 = pnand %p243, %p244
      %p246 = pneg %p245
      // Predicated region
      $region37: #{down_forward.1} parent=5 // pred_check
        _
      $region38: #{down_forward.1} parent=5 // pred_check_branch
        %248 = sbr.rel (%p245) target = $region40
      $region39: #{down_forward.1} parent=5 // pred_region
        %s249 = ssub.s32 %s19, 1
        %s250 = sand.u32 %s32, 1
        %s251 = scalar_lea.sflag [#allocation3], %s250
        %s252 = sand.u32 %s32, 1
        %s253 = smul.addr %s252, 256
        %s254 = scalar_lea.vmem [#allocation2], %s253
        // Predicated region
        $region41: #{down_forward.1} parent=39 // pred_check
          %p255 = pneg %p45
        $region42: #{down_forward.1} parent=39 // pred_check_branch
          %257 = sbr.rel (%p255) target = $region44
        $region43: #{down_forward.1} parent=39 // pred_region
          %258 = dma.done %s251, 4096
        $region44: #{down_forward.1} parent=39 // pred_fallthru
          _
        // Predicated region
        $region45: #{down_forward.1} parent=39 // pred_check
          %p259 = pneg %p66
        $region46: #{down_forward.1} parent=39 // pred_check_branch
          %261 = sbr.rel (%p259) target = $region48
        $region47: #{down_forward.1} parent=39 // pred_region
          %262 = dma.done [#allocation6], 288
        $region48: #{down_forward.1} parent=39 // pred_fallthru
          _
        // Predicated region
        $region49: #{down_forward.1} parent=39 // pred_check
          %p263 = pneg %p87
        $region50: #{down_forward.1} parent=39 // pred_check_branch
          %265 = sbr.rel (%p263) target = $region52
        $region51: #{down_forward.1} parent=39 // pred_region
          %266 = dma.done [#allocation6], 16
        $region52: #{down_forward.1} parent=39 // pred_fallthru
          _
        // Predicated region
        $region53: #{down_forward.1} parent=39 // pred_check
          %p267 = pneg %p108
        $region54: #{down_forward.1} parent=39 // pred_check_branch
          %269 = sbr.rel (%p267) target = $region56
        $region55: #{down_forward.1} parent=39 // pred_region
          %270 = dma.done [#allocation9], 576
        $region56: #{down_forward.1} parent=39 // pred_fallthru
          _
        // Predicated region
        $region57: #{down_forward.1} parent=39 // pred_check
          %p271 = pneg %p129
        $region58: #{down_forward.1} parent=39 // pred_check_branch
          %273 = sbr.rel (%p271) target = $region60
        $region59: #{down_forward.1} parent=39 // pred_region
          %274 = dma.done [#allocation9], 16
        $region60: #{down_forward.1} parent=39 // pred_fallthru
          _
        %s275 = sand.u32 %s32, 1
        %s276 = scalar_lea.sflag [#allocation3], %s275
        %s277 = sand.u32 %s32, 1
        %s278 = smul.addr %s277, 256
        %s279 = scalar_lea.vmem [#allocation2], %s278
        %p280 = pneg %p45
        %p281 = pneg %p42
        %p282 = pneg %p66
        %p283 = pneg %p63
        %p284 = pneg %p87
        %p285 = pneg %p84
        %p286 = pneg %p108
        %p287 = pneg %p105
        %p288 = pneg %p129
        %p289 = pneg %p126
        %p290 = pneg %p155
        %p291 = pneg %p152
        %s292 = sand.u32 %s142, 1
        %s293 = scalar_lea.sflag [#allocation4], %s292
        %s294 = sand.u32 %s142, 1
        %s295 = smul.addr %s294, 64
        %s296 = scalar_lea.vmem [#allocation11], %s295
        %v298 = vld [vmem:[%s254] sm:$0x3]
        %v299 = vld [vmem:[%s254 + $0x2] sm:$0x3]
        %v300 = vld [vmem:[%s254 + $0x4] sm:$0x3]
        %v301 = vld [vmem:[%s254 + $0x6] sm:$0x3]
        %v302 = vld [vmem:[%s254 + $0x8] sm:$0x3]
        %v303 = vld [vmem:[%s254 + $0xa] sm:$0x3]
        %v304 = vld [vmem:[%s254 + $0xc] sm:$0x3]
        %v305 = vld [vmem:[%s254 + $0xe] sm:$0x3]
        %v306 = vld [vmem:[%s254 + $0x10] sm:$0x3]
        %v307 = vld [vmem:[%s254 + $0x12] sm:$0x3]
        %v308 = vld [vmem:[%s254 + $0x14] sm:$0x3]
        %v309 = vld [vmem:[%s254 + $0x16] sm:$0x3]
        %v310 = vld [vmem:[%s254 + $0x18] sm:$0x3]
        %v311 = vld [vmem:[%s254 + $0x1a] sm:$0x3]
        %v312 = vld [vmem:[%s254 + $0x1c] sm:$0x3]
        %v313 = vld [vmem:[%s254 + $0x1e] sm:$0x3]
        %v314 = vld [vmem:[%s254 + $0x20] sm:$0x3]
        %v315 = vld [vmem:[%s254 + $0x22] sm:$0x3]
        %v316 = vld [vmem:[%s254 + $0x24] sm:$0x3]
        %v317 = vld [vmem:[%s254 + $0x26] sm:$0x3]
        %v318 = vld [vmem:[%s254 + $0x28] sm:$0x3]
        %v319 = vld [vmem:[%s254 + $0x2a] sm:$0x3]
        %v320 = vld [vmem:[%s254 + $0x2c] sm:$0x3]
        %v321 = vld [vmem:[%s254 + $0x2e] sm:$0x3]
        %v322 = vld [vmem:[%s254 + $0x30] sm:$0x3]
        %v323 = vld [vmem:[%s254 + $0x32] sm:$0x3]
        %v324 = vld [vmem:[%s254 + $0x34] sm:$0x3]
        %v325 = vld [vmem:[%s254 + $0x36] sm:$0x3]
        %v326 = vld [vmem:[%s254 + $0x38] sm:$0x3]
        %v327 = vld [vmem:[%s254 + $0x3a] sm:$0x3]
        %v328 = vld [vmem:[%s254 + $0x3c] sm:$0x3]
        %v329 = vld [vmem:[%s254 + $0x3e] sm:$0x3]
        %v330 = vld [vmem:[%s254 + $0x40] sm:$0x3]
        %v331 = vld [vmem:[%s254 + $0x42] sm:$0x3]
        %v332 = vld [vmem:[%s254 + $0x44] sm:$0x3]
        %v333 = vld [vmem:[%s254 + $0x46] sm:$0x3]
        %v334 = vld [vmem:[%s254 + $0x48] sm:$0x3]
        %v335 = vld [vmem:[%s254 + $0x4a] sm:$0x3]
        %v336 = vld [vmem:[%s254 + $0x4c] sm:$0x3]
        %v337 = vld [vmem:[%s254 + $0x4e] sm:$0x3]
        %v338 = vld [vmem:[%s254 + $0x50] sm:$0x3]
        %v339 = vld [vmem:[%s254 + $0x52] sm:$0x3]
        %v340 = vld [vmem:[%s254 + $0x54] sm:$0x3]
        %v341 = vld [vmem:[%s254 + $0x56] sm:$0x3]
        %v342 = vld [vmem:[%s254 + $0x58] sm:$0x3]
        %v343 = vld [vmem:[%s254 + $0x5a] sm:$0x3]
        %v344 = vld [vmem:[%s254 + $0x5c] sm:$0x3]
        %v345 = vld [vmem:[%s254 + $0x5e] sm:$0x3]
        %v346 = vld [vmem:[%s254 + $0x60] sm:$0x3]
        %v347 = vld [vmem:[%s254 + $0x62] sm:$0x3]
        %v348 = vld [vmem:[%s254 + $0x64] sm:$0x3]
        %v349 = vld [vmem:[%s254 + $0x66] sm:$0x3]
        %v350 = vld [vmem:[%s254 + $0x68] sm:$0x3]
        %v351 = vld [vmem:[%s254 + $0x6a] sm:$0x3]
        %v352 = vld [vmem:[%s254 + $0x6c] sm:$0x3]
        %v353 = vld [vmem:[%s254 + $0x6e] sm:$0x3]
        %v354 = vld [vmem:[%s254 + $0x70] sm:$0x3]
        %v355 = vld [vmem:[%s254 + $0x72] sm:$0x3]
        %v356 = vld [vmem:[%s254 + $0x74] sm:$0x3]
        %v357 = vld [vmem:[%s254 + $0x76] sm:$0x3]
        %v358 = vld [vmem:[%s254 + $0x78] sm:$0x3]
        %v359 = vld [vmem:[%s254 + $0x7a] sm:$0x3]
        %v360 = vld [vmem:[%s254 + $0x7c] sm:$0x3]
        %v361 = vld [vmem:[%s254 + $0x7e] sm:$0x3]
        %v362 = vld [vmem:[%s254 + $0x80] sm:$0x3]
        %v363 = vld [vmem:[%s254 + $0x82] sm:$0x3]
        %v364 = vld [vmem:[%s254 + $0x84] sm:$0x3]
        %v365 = vld [vmem:[%s254 + $0x86] sm:$0x3]
        %v366 = vld [vmem:[%s254 + $0x88] sm:$0x3]
        %v367 = vld [vmem:[%s254 + $0x8a] sm:$0x3]
        %v368 = vld [vmem:[%s254 + $0x8c] sm:$0x3]
        %v369 = vld [vmem:[%s254 + $0x8e] sm:$0x3]
        %v370 = vld [vmem:[%s254 + $0x90] sm:$0x3]
        %v371 = vld [vmem:[%s254 + $0x92] sm:$0x3]
        %v372 = vld [vmem:[%s254 + $0x94] sm:$0x3]
        %v373 = vld [vmem:[%s254 + $0x96] sm:$0x3]
        %v374 = vld [vmem:[%s254 + $0x98] sm:$0x3]
        %v375 = vld [vmem:[%s254 + $0x9a] sm:$0x3]
        %v376 = vld [vmem:[%s254 + $0x9c] sm:$0x3]
        %v377 = vld [vmem:[%s254 + $0x9e] sm:$0x3]
        %v378 = vld [vmem:[%s254 + $0xa0] sm:$0x3]
        %v379 = vld [vmem:[%s254 + $0xa2] sm:$0x3]
        %v380 = vld [vmem:[%s254 + $0xa4] sm:$0x3]
        %v381 = vld [vmem:[%s254 + $0xa6] sm:$0x3]
        %v382 = vld [vmem:[%s254 + $0xa8] sm:$0x3]
        %v383 = vld [vmem:[%s254 + $0xaa] sm:$0x3]
        %v384 = vld [vmem:[%s254 + $0xac] sm:$0x3]
        %v385 = vld [vmem:[%s254 + $0xae] sm:$0x3]
        %v386 = vld [vmem:[%s254 + $0xb0] sm:$0x3]
        %v387 = vld [vmem:[%s254 + $0xb2] sm:$0x3]
        %v388 = vld [vmem:[%s254 + $0xb4] sm:$0x3]
        %v389 = vld [vmem:[%s254 + $0xb6] sm:$0x3]
        %v390 = vld [vmem:[%s254 + $0xb8] sm:$0x3]
        %v391 = vld [vmem:[%s254 + $0xba] sm:$0x3]
        %v392 = vld [vmem:[%s254 + $0xbc] sm:$0x3]
        %v393 = vld [vmem:[%s254 + $0xbe] sm:$0x3]
        %v394 = vld [vmem:[%s254 + $0xc0] sm:$0x3]
        %v395 = vld [vmem:[%s254 + $0xc2] sm:$0x3]
        %v396 = vld [vmem:[%s254 + $0xc4] sm:$0x3]
        %v397 = vld [vmem:[%s254 + $0xc6] sm:$0x3]
        %v398 = vld [vmem:[%s254 + $0xc8] sm:$0x3]
        %v399 = vld [vmem:[%s254 + $0xca] sm:$0x3]
        %v400 = vld [vmem:[%s254 + $0xcc] sm:$0x3]
        %v401 = vld [vmem:[%s254 + $0xce] sm:$0x3]
        %v402 = vld [vmem:[%s254 + $0xd0] sm:$0x3]
        %v403 = vld [vmem:[%s254 + $0xd2] sm:$0x3]
        %v404 = vld [vmem:[%s254 + $0xd4] sm:$0x3]
        %v405 = vld [vmem:[%s254 + $0xd6] sm:$0x3]
        %v406 = vld [vmem:[%s254 + $0xd8] sm:$0x3]
        %v407 = vld [vmem:[%s254 + $0xda] sm:$0x3]
        %v408 = vld [vmem:[%s254 + $0xdc] sm:$0x3]
        %v409 = vld [vmem:[%s254 + $0xde] sm:$0x3]
        %v410 = vld [vmem:[%s254 + $0xe0] sm:$0x3]
        %v411 = vld [vmem:[%s254 + $0xe2] sm:$0x3]
        %v412 = vld [vmem:[%s254 + $0xe4] sm:$0x3]
        %v413 = vld [vmem:[%s254 + $0xe6] sm:$0x3]
        %v414 = vld [vmem:[%s254 + $0xe8] sm:$0x3]
        %v415 = vld [vmem:[%s254 + $0xea] sm:$0x3]
        %v416 = vld [vmem:[%s254 + $0xec] sm:$0x3]
        %v417 = vld [vmem:[%s254 + $0xee] sm:$0x3]
        %v418 = vld [vmem:[%s254 + $0xf0] sm:$0x3]
        %v419 = vld [vmem:[%s254 + $0xf2] sm:$0x3]
        %v420 = vld [vmem:[%s254 + $0xf4] sm:$0x3]
        %v421 = vld [vmem:[%s254 + $0xf6] sm:$0x3]
        %v422 = vld [vmem:[%s254 + $0xf8] sm:$0x3]
        %v423 = vld [vmem:[%s254 + $0xfa] sm:$0x3]
        %v424 = vld [vmem:[%s254 + $0xfc] sm:$0x3]
        %v425 = vld [vmem:[%s254 + $0xfe] sm:$0x3]
        %v426 = vmax.f32 %v298, %v306
        %v427 = vmax.f32 %v299, %v307
        %v428 = vmax.f32 %v300, %v308
        %v429 = vmax.f32 %v301, %v309
        %v430 = vmax.f32 %v302, %v310
        %v431 = vmax.f32 %v303, %v311
        %v432 = vmax.f32 %v304, %v312
        %v433 = vmax.f32 %v305, %v313
        %v434 = vmax.f32 %v314, %v322
        %v435 = vmax.f32 %v315, %v323
        %v436 = vmax.f32 %v316, %v324
        %v437 = vmax.f32 %v317, %v325
        %v438 = vmax.f32 %v318, %v326
        %v439 = vmax.f32 %v319, %v327
        %v440 = vmax.f32 %v320, %v328
        %v441 = vmax.f32 %v321, %v329
        %v442 = vmax.f32 %v330, %v338
        %v443 = vmax.f32 %v331, %v339
        %v444 = vmax.f32 %v332, %v340
        %v445 = vmax.f32 %v333, %v341
        %v446 = vmax.f32 %v334, %v342
        %v447 = vmax.f32 %v335, %v343
        %v448 = vmax.f32 %v336, %v344
        %v449 = vmax.f32 %v337, %v345
        %v450 = vmax.f32 %v346, %v354
        %v451 = vmax.f32 %v347, %v355
        %v452 = vmax.f32 %v348, %v356
        %v453 = vmax.f32 %v349, %v357
        %v454 = vmax.f32 %v350, %v358
        %v455 = vmax.f32 %v351, %v359
        %v456 = vmax.f32 %v352, %v360
        %v457 = vmax.f32 %v353, %v361
        %v458 = vmax.f32 %v362, %v370
        %v459 = vmax.f32 %v363, %v371
        %v460 = vmax.f32 %v364, %v372
        %v461 = vmax.f32 %v365, %v373
        %v462 = vmax.f32 %v366, %v374
        %v463 = vmax.f32 %v367, %v375
        %v464 = vmax.f32 %v368, %v376
        %v465 = vmax.f32 %v369, %v377
        %v466 = vmax.f32 %v378, %v386
        %v467 = vmax.f32 %v379, %v387
        %v468 = vmax.f32 %v380, %v388
        %v469 = vmax.f32 %v381, %v389
        %v470 = vmax.f32 %v382, %v390
        %v471 = vmax.f32 %v383, %v391
        %v472 = vmax.f32 %v384, %v392
        %v473 = vmax.f32 %v385, %v393
        %v474 = vmax.f32 %v394, %v402
        %v475 = vmax.f32 %v395, %v403
        %v476 = vmax.f32 %v396, %v404
        %v477 = vmax.f32 %v397, %v405
        %v478 = vmax.f32 %v398, %v406
        %v479 = vmax.f32 %v399, %v407
        %v480 = vmax.f32 %v400, %v408
        %v481 = vmax.f32 %v401, %v409
        %v482 = vmax.f32 %v410, %v418
        %v483 = vmax.f32 %v411, %v419
        %v484 = vmax.f32 %v412, %v420
        %v485 = vmax.f32 %v413, %v421
        %v486 = vmax.f32 %v414, %v422
        %v487 = vmax.f32 %v415, %v423
        %v488 = vmax.f32 %v416, %v424
        %v489 = vmax.f32 %v417, %v425
        %v554 = vrot.slane %v426, 1
        %v555 = vrot.slane %v427, 1
        %v556 = vrot.slane %v428, 1
        %v557 = vrot.slane %v429, 1
        %v558 = vrot.slane %v430, 1
        %v559 = vrot.slane %v431, 1
        %v560 = vrot.slane %v432, 1
        %v561 = vrot.slane %v433, 1
        %v562 = vrot.slane %v434, 1
        %v563 = vrot.slane %v435, 1
        %v564 = vrot.slane %v436, 1
        %v565 = vrot.slane %v437, 1
        %v566 = vrot.slane %v438, 1
        %v567 = vrot.slane %v439, 1
        %v568 = vrot.slane %v440, 1
        %v569 = vrot.slane %v441, 1
        %v570 = vrot.slane %v442, 1
        %v571 = vrot.slane %v443, 1
        %v572 = vrot.slane %v444, 1
        %v573 = vrot.slane %v445, 1
        %v574 = vrot.slane %v446, 1
        %v575 = vrot.slane %v447, 1
        %v576 = vrot.slane %v448, 1
        %v577 = vrot.slane %v449, 1
        %v578 = vrot.slane %v450, 1
        %v579 = vrot.slane %v451, 1
        %v580 = vrot.slane %v452, 1
        %v581 = vrot.slane %v453, 1
        %v582 = vrot.slane %v454, 1
        %v583 = vrot.slane %v455, 1
        %v584 = vrot.slane %v456, 1
        %v585 = vrot.slane %v457, 1
        %v586 = vrot.slane %v458, 1
        %v587 = vrot.slane %v459, 1
        %v588 = vrot.slane %v460, 1
        %v589 = vrot.slane %v461, 1
        %v590 = vrot.slane %v462, 1
        %v591 = vrot.slane %v463, 1
        %v592 = vrot.slane %v464, 1
        %v593 = vrot.slane %v465, 1
        %v594 = vrot.slane %v466, 1
        %v595 = vrot.slane %v467, 1
        %v596 = vrot.slane %v468, 1
        %v597 = vrot.slane %v469, 1
        %v598 = vrot.slane %v470, 1
        %v599 = vrot.slane %v471, 1
        %v600 = vrot.slane %v472, 1
        %v601 = vrot.slane %v473, 1
        %v602 = vrot.slane %v474, 1
        %v603 = vrot.slane %v475, 1
        %v604 = vrot.slane %v476, 1
        %v605 = vrot.slane %v477, 1
        %v606 = vrot.slane %v478, 1
        %v607 = vrot.slane %v479, 1
        %v608 = vrot.slane %v480, 1
        %v609 = vrot.slane %v481, 1
        %v610 = vrot.slane %v482, 1
        %v611 = vrot.slane %v483, 1
        %v612 = vrot.slane %v484, 1
        %v613 = vrot.slane %v485, 1
        %v614 = vrot.slane %v486, 1
        %v615 = vrot.slane %v487, 1
        %v616 = vrot.slane %v488, 1
        %v617 = vrot.slane %v489, 1
        %v682 = vmax.f32 %v426, %v554
        %v683 = vmax.f32 %v427, %v555
        %v684 = vmax.f32 %v428, %v556
        %v685 = vmax.f32 %v429, %v557
        %v686 = vmax.f32 %v430, %v558
        %v687 = vmax.f32 %v431, %v559
        %v688 = vmax.f32 %v432, %v560
        %v689 = vmax.f32 %v433, %v561
        %v690 = vmax.f32 %v434, %v562
        %v691 = vmax.f32 %v435, %v563
        %v692 = vmax.f32 %v436, %v564
        %v693 = vmax.f32 %v437, %v565
        %v694 = vmax.f32 %v438, %v566
        %v695 = vmax.f32 %v439, %v567
        %v696 = vmax.f32 %v440, %v568
        %v697 = vmax.f32 %v441, %v569
        %v698 = vmax.f32 %v442, %v570
        %v699 = vmax.f32 %v443, %v571
        %v700 = vmax.f32 %v444, %v572
        %v701 = vmax.f32 %v445, %v573
        %v702 = vmax.f32 %v446, %v574
        %v703 = vmax.f32 %v447, %v575
        %v704 = vmax.f32 %v448, %v576
        %v705 = vmax.f32 %v449, %v577
        %v706 = vmax.f32 %v450, %v578
        %v707 = vmax.f32 %v451, %v579
        %v708 = vmax.f32 %v452, %v580
        %v709 = vmax.f32 %v453, %v581
        %v710 = vmax.f32 %v454, %v582
        %v711 = vmax.f32 %v455, %v583
        %v712 = vmax.f32 %v456, %v584
        %v713 = vmax.f32 %v457, %v585
        %v714 = vmax.f32 %v458, %v586
        %v715 = vmax.f32 %v459, %v587
        %v716 = vmax.f32 %v460, %v588
        %v717 = vmax.f32 %v461, %v589
        %v718 = vmax.f32 %v462, %v590
        %v719 = vmax.f32 %v463, %v591
        %v720 = vmax.f32 %v464, %v592
        %v721 = vmax.f32 %v465, %v593
        %v722 = vmax.f32 %v466, %v594
        %v723 = vmax.f32 %v467, %v595
        %v724 = vmax.f32 %v468, %v596
        %v725 = vmax.f32 %v469, %v597
        %v726 = vmax.f32 %v470, %v598
        %v727 = vmax.f32 %v471, %v599
        %v728 = vmax.f32 %v472, %v600
        %v729 = vmax.f32 %v473, %v601
        %v730 = vmax.f32 %v474, %v602
        %v731 = vmax.f32 %v475, %v603
        %v732 = vmax.f32 %v476, %v604
        %v733 = vmax.f32 %v477, %v605
        %v734 = vmax.f32 %v478, %v606
        %v735 = vmax.f32 %v479, %v607
        %v736 = vmax.f32 %v480, %v608
        %v737 = vmax.f32 %v481, %v609
        %v738 = vmax.f32 %v482, %v610
        %v739 = vmax.f32 %v483, %v611
        %v740 = vmax.f32 %v484, %v612
        %v741 = vmax.f32 %v485, %v613
        %v742 = vmax.f32 %v486, %v614
        %v743 = vmax.f32 %v487, %v615
        %v744 = vmax.f32 %v488, %v616
        %v745 = vmax.f32 %v489, %v617
        %v746 = vlaneseq
        %v747 = vshrl.u32 %v746, 7
        %vm748 = vcmp.lt.s32.totalorder %v747, 7
        %vm749 = vcmp.gt.s32.totalorder %v747, 0
        %v750 = vsel %vm748, 1, 0
        %vm751 = vcmp.eq.s32.totalorder %v750, 1
        %v816 = vrot.slane %v683, 7
        %vm817 = vcmask 1041409
        %v818 = vsel %vm817, %v816, %v682
        %v819 = vrot.slane %v684, 6
        %vm820 = vcmask 1042434
        %v821 = vsel %vm820, %v819, %v818
        %v822 = vrot.slane %v685, 5
        %vm823 = vcmask 1043459
        %v824 = vsel %vm823, %v822, %v821
        %v825 = vrot.slane %v686, 4
        %vm826 = vcmask 1044484
        %v827 = vsel %vm826, %v825, %v824
        %v828 = vrot.slane %v687, 3
        %vm829 = vcmask 1045509
        %v830 = vsel %vm829, %v828, %v827
        %v831 = vrot.slane %v688, 2
        %vm832 = vcmask 1046534
        %v833 = vsel %vm832, %v831, %v830
        %v834 = vrot.slane %v689, 1
        %vm835 = vcmask 1047559
        %v836 = vsel %vm835, %v834, %v833
        %v837 = vrot.slane %v691, 7
        %v838 = vsel %vm817, %v837, %v690
        %v839 = vrot.slane %v692, 6
        %v840 = vsel %vm820, %v839, %v838
        %v841 = vrot.slane %v693, 5
        %v842 = vsel %vm823, %v841, %v840
        %v843 = vrot.slane %v694, 4
        %v844 = vsel %vm826, %v843, %v842
        %v845 = vrot.slane %v695, 3
        %v846 = vsel %vm829, %v845, %v844
        %v847 = vrot.slane %v696, 2
        %v848 = vsel %vm832, %v847, %v846
        %v849 = vrot.slane %v697, 1
        %v850 = vsel %vm835, %v849, %v848
        %v851 = vrot.slane %v699, 7
        %v852 = vsel %vm817, %v851, %v698
        %v853 = vrot.slane %v700, 6
        %v854 = vsel %vm820, %v853, %v852
        %v855 = vrot.slane %v701, 5
        %v856 = vsel %vm823, %v855, %v854
        %v857 = vrot.slane %v702, 4
        %v858 = vsel %vm826, %v857, %v856
        %v859 = vrot.slane %v703, 3
        %v860 = vsel %vm829, %v859, %v858
        %v861 = vrot.slane %v704, 2
        %v862 = vsel %vm832, %v861, %v860
        %v863 = vrot.slane %v705, 1
        %v864 = vsel %vm835, %v863, %v862
        %v865 = vrot.slane %v707, 7
        %v866 = vsel %vm817, %v865, %v706
        %v867 = vrot.slane %v708, 6
        %v868 = vsel %vm820, %v867, %v866
        %v869 = vrot.slane %v709, 5
        %v870 = vsel %vm823, %v869, %v868
        %v871 = vrot.slane %v710, 4
        %v872 = vsel %vm826, %v871, %v870
        %v873 = vrot.slane %v711, 3
        %v874 = vsel %vm829, %v873, %v872
        %v875 = vrot.slane %v712, 2
        %v876 = vsel %vm832, %v875, %v874
        %v877 = vrot.slane %v713, 1
        %v878 = vsel %vm835, %v877, %v876
        %v879 = vrot.slane %v715, 7
        %v880 = vsel %vm817, %v879, %v714
        %v881 = vrot.slane %v716, 6
        %v882 = vsel %vm820, %v881, %v880
        %v883 = vrot.slane %v717, 5
        %v884 = vsel %vm823, %v883, %v882
        %v885 = vrot.slane %v718, 4
        %v886 = vsel %vm826, %v885, %v884
        %v887 = vrot.slane %v719, 3
        %v888 = vsel %vm829, %v887, %v886
        %v889 = vrot.slane %v720, 2
        %v890 = vsel %vm832, %v889, %v888
        %v891 = vrot.slane %v721, 1
        %v892 = vsel %vm835, %v891, %v890
        %v893 = vrot.slane %v723, 7
        %v894 = vsel %vm817, %v893, %v722
        %v895 = vrot.slane %v724, 6
        %v896 = vsel %vm820, %v895, %v894
        %v897 = vrot.slane %v725, 5
        %v898 = vsel %vm823, %v897, %v896
        %v899 = vrot.slane %v726, 4
        %v900 = vsel %vm826, %v899, %v898
        %v901 = vrot.slane %v727, 3
        %v902 = vsel %vm829, %v901, %v900
        %v903 = vrot.slane %v728, 2
        %v904 = vsel %vm832, %v903, %v902
        %v905 = vrot.slane %v729, 1
        %v906 = vsel %vm835, %v905, %v904
        %v907 = vrot.slane %v731, 7
        %v908 = vsel %vm817, %v907, %v730
        %v909 = vrot.slane %v732, 6
        %v910 = vsel %vm820, %v909, %v908
        %v911 = vrot.slane %v733, 5
        %v912 = vsel %vm823, %v911, %v910
        %v913 = vrot.slane %v734, 4
        %v914 = vsel %vm826, %v913, %v912
        %v915 = vrot.slane %v735, 3
        %v916 = vsel %vm829, %v915, %v914
        %v917 = vrot.slane %v736, 2
        %v918 = vsel %vm832, %v917, %v916
        %v919 = vrot.slane %v737, 1
        %v920 = vsel %vm835, %v919, %v918
        %v921 = vrot.slane %v739, 7
        %v922 = vsel %vm817, %v921, %v738
        %v923 = vrot.slane %v740, 6
        %v924 = vsel %vm820, %v923, %v922
        %v925 = vrot.slane %v741, 5
        %v926 = vsel %vm823, %v925, %v924
        %v927 = vrot.slane %v742, 4
        %v928 = vsel %vm826, %v927, %v926
        %v929 = vrot.slane %v743, 3
        %v930 = vsel %vm829, %v929, %v928
        %v931 = vrot.slane %v744, 2
        %v932 = vsel %vm832, %v931, %v930
        %v933 = vrot.slane %v745, 1
        %v934 = vsel %vm835, %v933, %v932
        %v943 = vsel %vm751, %v836, 0.0
        %v944 = vsel %vm751, %v850, 0.0
        %v945 = vsel %vm751, %v864, 0.0
        %v946 = vsel %vm751, %v878, 0.0
        %v947 = vsel %vm751, %v892, 0.0
        %v948 = vsel %vm751, %v906, 0.0
        %v949 = vsel %vm751, %v920, 0.0
        %v950 = vsel %vm751, %v934, 0.0
        %v951 = vsel %vm749, 1, 0
        %vm952 = vcmp.eq.s32.totalorder %v951, 1
        %v953 = vsel %vm952, %v836, 0.0
        %v954 = vsel %vm952, %v850, 0.0
        %v955 = vsel %vm952, %v864, 0.0
        %v956 = vsel %vm952, %v878, 0.0
        %v957 = vsel %vm952, %v892, 0.0
        %v958 = vsel %vm952, %v906, 0.0
        %v959 = vsel %vm952, %v920, 0.0
        %v960 = vsel %vm952, %v934, 0.0
        %vm968 = vcmask 1040384
        %v969 = vrot.slane %v943, 7
        %v970 = vrot.slane %v944, 7
        %v971 = vsel %vm968, %v969, %v970
        %v972 = vrot.slane %v945, 7
        %v973 = vsel %vm968, %v970, %v972
        %v974 = vrot.slane %v946, 7
        %v975 = vsel %vm968, %v972, %v974
        %v976 = vrot.slane %v947, 7
        %v977 = vsel %vm968, %v974, %v976
        %v978 = vrot.slane %v948, 7
        %v979 = vsel %vm968, %v976, %v978
        %v980 = vrot.slane %v949, 7
        %v981 = vsel %vm968, %v978, %v980
        %v989 = vsel %vm968, 0.0, %v969
        %v990 = vpack.c.bf16 %v989, 0.0
        %v991 = vpack.c.bf16 %v973, %v971
        %v992 = vpack.c.bf16 %v977, %v975
        %v993 = vpack.c.bf16 %v981, %v979
        %v994 = vld [vmem:[#allocation5] sm:$0x3]
        %v995 = vpack.c.bf16 %v836, 0.0
        %v996 = vpack.c.bf16 %v864, %v850
        %v997 = vpack.c.bf16 %v892, %v878
        %v998 = vpack.c.bf16 %v920, %v906
        %s999 = scalar_lea.vmem [#allocation5], 2
        %v1000 = vld [vmem:[%s999] sm:$0x3]
        %vm1001 = vcmask 31744
        %v1003 = vsel %vm1001, %v995, 0
        %v1006 = vsel %vm1001, %v996, 0
        %v1009 = vsel %vm1001, %v997, 0
        %v1012 = vsel %vm1001, %v998, 0
        %vm1014 = vcmask 1041408
        %v1016 = vsel %vm1014, %v1000, 0
        %1018 = vmatprep.subr.bf16.mxu0 0
        %1019 = vmatpush1.bf16.msra.mxu0 %v1016
        %1020 = vmatprep.subr.bf16.mxu0 0
        %1021 = vmatpush1.bf16.msra.mxu0 0
        %1022 = vmatprep.subr.bf16.mxu0 0
        %1023 = vmatpush1.bf16.msra.mxu0 0
        %1024 = vmatprep.subr.bf16.mxu0 0
        %1025 = vmatpush1.bf16.msra.mxu0 0
        %1026 = vmatprep.subr.bf16.mxu0 0
        %1027 = vmatpush1.bf16.msra.mxu0 0
        %1028 = vmatprep.subr.bf16.mxu0 0
        %1029 = vmatpush1.bf16.msra.mxu0 0
        %1030 = vmatprep.subr.bf16.mxu0 0
        %1031 = vmatpush1.bf16.msra.mxu0 0
        %1032 = vmatprep.subr.bf16.mxu0 0
        %1033 = vmatpush1.bf16.msra.mxu0 0
        %1034 = vmatprep.subr.bf16.mxu0 0
        %1035 = vmatpush1.bf16.msra.mxu0 0
        %1036 = vmatprep.subr.bf16.mxu0 0
        %1037 = vmatpush1.bf16.msra.mxu0 0
        %1038 = vmatprep.subr.bf16.mxu0 0
        %1039 = vmatpush1.bf16.msra.mxu0 0
        %1040 = vmatprep.subr.bf16.mxu0 0
        %1041 = vmatpush1.bf16.msra.mxu0 0
        %1042 = vmatprep.subr.bf16.mxu0 0
        %1043 = vmatpush1.bf16.msra.mxu0 0
        %1044 = vmatprep.subr.bf16.mxu0 0
        %1045 = vmatpush1.bf16.msra.mxu0 0
        %1046 = vmatprep.subr.bf16.mxu0 0
        %1047 = vmatpush1.bf16.msra.mxu0 0
        %1048 = vmatprep.subr.bf16.mxu0 0
        %1049 = vmatpush1.bf16.msra.mxu0 0
        %1050 = vmatprep.mubr.bf16.mxu0 0
        %1051 = vmatmul.mubr.bf16.gmra.mrb[0].mxu0 %v1003
        %v1052 = vpop.f32.mrb[0].mxu0
        %v1053 = vadd.f32 0.0, %v1052
        %v1054 = vpop.f32.mrb[0].mxu0
        %v1055 = vpop.f32.mrb[0].mxu0
        %v1056 = vadd.f32 0.0, %v1055
        %v1057 = vpop.f32.mrb[0].mxu0
        %1058 = vmatprep.mubr.bf16.mxu0 0
        %1059 = vmatmul.mubr.bf16.gmra.mrb[0].mxu0 %v1006
        %v1060 = vpop.f32.mrb[0].mxu0
        %v1061 = vadd.f32 0.0, %v1060
        %v1062 = vpop.f32.mrb[0].mxu0
        %v1063 = vpop.f32.mrb[0].mxu0
        %v1064 = vadd.f32 0.0, %v1063
        %v1065 = vpop.f32.mrb[0].mxu0
        %1066 = vmatprep.mubr.bf16.mxu0 0
        %1067 = vmatmul.mubr.bf16.gmra.mrb[0].mxu0 %v1009
        %v1068 = vpop.f32.mrb[0].mxu0
        %v1069 = vadd.f32 0.0, %v1068
        %v1070 = vpop.f32.mrb[0].mxu0
        %v1071 = vpop.f32.mrb[0].mxu0
        %v1072 = vadd.f32 0.0, %v1071
        %v1073 = vpop.f32.mrb[0].mxu0
        %1074 = vmatprep.mubr.bf16.mxu0 0
        %1075 = vmatmul.mubr.bf16.gmra.mrb[0].mxu0 %v1012
        %v1076 = vpop.f32.mrb[0].mxu0
        %v1077 = vadd.f32 0.0, %v1076
        %v1078 = vpop.f32.mrb[0].mxu0
        %v1079 = vpop.f32.mrb[0].mxu0
        %v1080 = vadd.f32 0.0, %v1079
        %v1081 = vpop.f32.mrb[0].mxu0
        %1082 = vdwg.mxu0
        %v1084 = vsel %vm1001, %v990, 0
        %v1087 = vsel %vm1001, %v991, 0
        %v1090 = vsel %vm1001, %v992, 0
        %v1093 = vsel %vm1001, %v993, 0
        %v1096 = vsel %vm1014, %v994, 0
        %1098 = vmatprep.subr.bf16.mxu0 0
        %1099 = vmatpush1.bf16.msra.mxu0 %v1096
        %1100 = vmatprep.subr.bf16.mxu0 0
        %1101 = vmatpush1.bf16.msra.mxu0 0
        %1102 = vmatprep.subr.bf16.mxu0 0
        %1103 = vmatpush1.bf16.msra.mxu0 0
        %1104 = vmatprep.subr.bf16.mxu0 0
        %1105 = vmatpush1.bf16.msra.mxu0 0
        %1106 = vmatprep.subr.bf16.mxu0 0
        %1107 = vmatpush1.bf16.msra.mxu0 0
        %1108 = vmatprep.subr.bf16.mxu0 0
        %1109 = vmatpush1.bf16.msra.mxu0 0
        %1110 = vmatprep.subr.bf16.mxu0 0
        %1111 = vmatpush1.bf16.msra.mxu0 0
        %1112 = vmatprep.subr.bf16.mxu0 0
        %1113 = vmatpush1.bf16.msra.mxu0 0
        %1114 = vmatprep.subr.bf16.mxu0 0
        %1115 = vmatpush1.bf16.msra.mxu0 0
        %1116 = vmatprep.subr.bf16.mxu0 0
        %1117 = vmatpush1.bf16.msra.mxu0 0
        %1118 = vmatprep.subr.bf16.mxu0 0
        %1119 = vmatpush1.bf16.msra.mxu0 0
        %1120 = vmatprep.subr.bf16.mxu0 0
        %1121 = vmatpush1.bf16.msra.mxu0 0
        %1122 = vmatprep.subr.bf16.mxu0 0
        %1123 = vmatpush1.bf16.msra.mxu0 0
        %1124 = vmatprep.subr.bf16.mxu0 0
        %1125 = vmatpush1.bf16.msra.mxu0 0
        %1126 = vmatprep.subr.bf16.mxu0 0
        %1127 = vmatpush1.bf16.msra.mxu0 0
        %1128 = vmatprep.subr.bf16.mxu0 0
        %1129 = vmatpush1.bf16.msra.mxu0 0
        %1130 = vmatprep.mubr.bf16.mxu0 0
        %1131 = vmatmul.mubr.bf16.gmra.mrb[0].mxu0 %v1084
        %v1132 = vpop.f32.mrb[0].mxu0
        %v1133 = vadd.f32 %v1053, %v1132
        %v1134 = vpop.f32.mrb[0].mxu0
        %v1135 = vpop.f32.mrb[0].mxu0
        %v1136 = vadd.f32 %v1056, %v1135
        %v1137 = vpop.f32.mrb[0].mxu0
        %1138 = vmatprep.mubr.bf16.mxu0 0
        %1139 = vmatmul.mubr.bf16.gmra.mrb[0].mxu0 %v1087
        %v1140 = vpop.f32.mrb[0].mxu0
        %v1141 = vadd.f32 %v1061, %v1140
        %v1142 = vpop.f32.mrb[0].mxu0
        %v1143 = vpop.f32.mrb[0].mxu0
        %v1144 = vadd.f32 %v1064, %v1143
        %v1145 = vpop.f32.mrb[0].mxu0
        %1146 = vmatprep.mubr.bf16.mxu0 0
        %1147 = vmatmul.mubr.bf16.gmra.mrb[0].mxu0 %v1090
        %v1148 = vpop.f32.mrb[0].mxu0
        %v1149 = vadd.f32 %v1069, %v1148
        %v1150 = vpop.f32.mrb[0].mxu0
        %v1151 = vpop.f32.mrb[0].mxu0
        %v1152 = vadd.f32 %v1072, %v1151
        %v1153 = vpop.f32.mrb[0].mxu0
        %1154 = vmatprep.mubr.bf16.mxu0 0
        %1155 = vmatmul.mubr.bf16.gmra.mrb[0].mxu0 %v1093
        %v1156 = vpop.f32.mrb[0].mxu0
        %v1157 = vadd.f32 %v1077, %v1156
        %v1158 = vpop.f32.mrb[0].mxu0
        %v1159 = vpop.f32.mrb[0].mxu0
        %v1160 = vadd.f32 %v1080, %v1159
        %v1161 = vpop.f32.mrb[0].mxu0
        %1162 = vdwg.mxu0
        %vm1171 = vcmask 1046528
        %v1172 = vrot.slane %v953, 1
        %v1173 = vrot.slane %v954, 1
        %v1174 = vsel %vm1171, %v1172, %v1173
        %v1175 = vrot.slane %v955, 1
        %v1176 = vsel %vm1171, %v1173, %v1175
        %v1177 = vrot.slane %v956, 1
        %v1178 = vsel %vm1171, %v1175, %v1177
        %v1179 = vrot.slane %v957, 1
        %v1180 = vsel %vm1171, %v1177, %v1179
        %v1181 = vrot.slane %v958, 1
        %v1182 = vsel %vm1171, %v1179, %v1181
        %v1183 = vrot.slane %v959, 1
        %v1184 = vsel %vm1171, %v1181, %v1183
        %v1185 = vrot.slane %v960, 1
        %v1186 = vsel %vm1171, %v1183, %v1185
        %v1195 = vsel %vm1171, 0.0, %v1172
        %v1196 = vpack.c.bf16 %v1174, %v1195
        %v1197 = vpack.c.bf16 %v1178, %v1176
        %v1198 = vpack.c.bf16 %v1182, %v1180
        %v1199 = vpack.c.bf16 %v1186, %v1184
        %s1200 = scalar_lea.vmem [#allocation5], 4
        %v1201 = vld [vmem:[%s1200] sm:$0x3]
        %v1203 = vsel %vm1001, %v1196, 0
        %v1206 = vsel %vm1001, %v1197, 0
        %v1209 = vsel %vm1001, %v1198, 0
        %v1212 = vsel %vm1001, %v1199, 0
        %v1215 = vsel %vm1014, %v1201, 0
        %1217 = vmatprep.subr.bf16.mxu0 0
        %1218 = vmatpush1.bf16.msra.mxu0 %v1215
        %1219 = vmatprep.subr.bf16.mxu0 0
        %1220 = vmatpush1.bf16.msra.mxu0 0
        %1221 = vmatprep.subr.bf16.mxu0 0
        %1222 = vmatpush1.bf16.msra.mxu0 0
        %1223 = vmatprep.subr.bf16.mxu0 0
        %1224 = vmatpush1.bf16.msra.mxu0 0
        %1225 = vmatprep.subr.bf16.mxu0 0
        %1226 = vmatpush1.bf16.msra.mxu0 0
        %1227 = vmatprep.subr.bf16.mxu0 0
        %1228 = vmatpush1.bf16.msra.mxu0 0
        %1229 = vmatprep.subr.bf16.mxu0 0
        %1230 = vmatpush1.bf16.msra.mxu0 0
        %1231 = vmatprep.subr.bf16.mxu0 0
        %1232 = vmatpush1.bf16.msra.mxu0 0
        %1233 = vmatprep.subr.bf16.mxu0 0
        %1234 = vmatpush1.bf16.msra.mxu0 0
        %1235 = vmatprep.subr.bf16.mxu0 0
        %1236 = vmatpush1.bf16.msra.mxu0 0
        %1237 = vmatprep.subr.bf16.mxu0 0
        %1238 = vmatpush1.bf16.msra.mxu0 0
        %1239 = vmatprep.subr.bf16.mxu0 0
        %1240 = vmatpush1.bf16.msra.mxu0 0
        %1241 = vmatprep.subr.bf16.mxu0 0
        %1242 = vmatpush1.bf16.msra.mxu0 0
        %1243 = vmatprep.subr.bf16.mxu0 0
        %1244 = vmatpush1.bf16.msra.mxu0 0
        %1245 = vmatprep.subr.bf16.mxu0 0
        %1246 = vmatpush1.bf16.msra.mxu0 0
        %1247 = vmatprep.subr.bf16.mxu0 0
        %1248 = vmatpush1.bf16.msra.mxu0 0
        %1249 = vmatprep.mubr.bf16.mxu0 0
        %1250 = vmatmul.mubr.bf16.gmra.mrb[0].mxu0 %v1203
        %v1251 = vpop.f32.mrb[0].mxu0
        %v1252 = vadd.f32 0.0, %v1251
        %v1253 = vpop.f32.mrb[0].mxu0
        %v1254 = vpop.f32.mrb[0].mxu0
        %v1255 = vadd.f32 0.0, %v1254
        %v1256 = vpop.f32.mrb[0].mxu0
        %1257 = vmatprep.mubr.bf16.mxu0 0
        %1258 = vmatmul.mubr.bf16.gmra.mrb[0].mxu0 %v1206
        %v1259 = vpop.f32.mrb[0].mxu0
        %v1260 = vadd.f32 0.0, %v1259
        %v1261 = vpop.f32.mrb[0].mxu0
        %v1262 = vpop.f32.mrb[0].mxu0
        %v1263 = vadd.f32 0.0, %v1262
        %v1264 = vpop.f32.mrb[0].mxu0
        %1265 = vmatprep.mubr.bf16.mxu0 0
        %1266 = vmatmul.mubr.bf16.gmra.mrb[0].mxu0 %v1209
        %v1267 = vpop.f32.mrb[0].mxu0
        %v1268 = vadd.f32 0.0, %v1267
        %v1269 = vpop.f32.mrb[0].mxu0
        %v1270 = vpop.f32.mrb[0].mxu0
        %v1271 = vadd.f32 0.0, %v1270
        %v1272 = vpop.f32.mrb[0].mxu0
        %1273 = vmatprep.mubr.bf16.mxu0 0
        %1274 = vmatmul.mubr.bf16.gmra.mrb[0].mxu0 %v1212
        %v1275 = vpop.f32.mrb[0].mxu0
        %v1276 = vadd.f32 0.0, %v1275
        %v1277 = vpop.f32.mrb[0].mxu0
        %v1278 = vpop.f32.mrb[0].mxu0
        %v1279 = vadd.f32 0.0, %v1278
        %v1280 = vpop.f32.mrb[0].mxu0
        %1281 = vdwg.mxu0
        %v1282 = vadd.f32 %v1133, %v1252
        %v1283 = vadd.f32 %v1136, %v1255
        %v1284 = vadd.f32 %v1141, %v1260
        %v1285 = vadd.f32 %v1144, %v1263
        %v1286 = vadd.f32 %v1149, %v1268
        %v1287 = vadd.f32 %v1152, %v1271
        %v1288 = vadd.f32 %v1157, %v1276
        %v1289 = vadd.f32 %v1160, %v1279
        %v1291 = vrot.slane %v950, 7
        %v1292 = vsel %vm968, %v980, %v1291
        %v1294 = vpack.c.bf16 %v971, %v989
        %v1295 = vpack.c.bf16 %v975, %v973
        %v1296 = vpack.c.bf16 %v979, %v977
        %v1297 = vpack.c.bf16 %v1292, %v981
        %s1298 = scalar_lea.vmem [#allocation5], 6
        %v1299 = vld [vmem:[%s1298] sm:$0x3]
        %v1301 = vsel %vm1001, %v1294, 0
        %v1304 = vsel %vm1001, %v1295, 0
        %v1307 = vsel %vm1001, %v1296, 0
        %v1310 = vsel %vm1001, %v1297, 0
        %v1313 = vsel %vm1014, %v1299, 0
        %1315 = vmatprep.subr.bf16.mxu0 0
        %1316 = vmatpush1.bf16.msra.mxu0 %v1313
        %1317 = vmatprep.subr.bf16.mxu0 0
        %1318 = vmatpush1.bf16.msra.mxu0 0
        %1319 = vmatprep.subr.bf16.mxu0 0
        %1320 = vmatpush1.bf16.msra.mxu0 0
        %1321 = vmatprep.subr.bf16.mxu0 0
        %1322 = vmatpush1.bf16.msra.mxu0 0
        %1323 = vmatprep.subr.bf16.mxu0 0
        %1324 = vmatpush1.bf16.msra.mxu0 0
        %1325 = vmatprep.subr.bf16.mxu0 0
        %1326 = vmatpush1.bf16.msra.mxu0 0
        %1327 = vmatprep.subr.bf16.mxu0 0
        %1328 = vmatpush1.bf16.msra.mxu0 0
        %1329 = vmatprep.subr.bf16.mxu0 0
        %1330 = vmatpush1.bf16.msra.mxu0 0
        %1331 = vmatprep.subr.bf16.mxu0 0
        %1332 = vmatpush1.bf16.msra.mxu0 0
        %1333 = vmatprep.subr.bf16.mxu0 0
        %1334 = vmatpush1.bf16.msra.mxu0 0
        %1335 = vmatprep.subr.bf16.mxu0 0
        %1336 = vmatpush1.bf16.msra.mxu0 0
        %1337 = vmatprep.subr.bf16.mxu0 0
        %1338 = vmatpush1.bf16.msra.mxu0 0
        %1339 = vmatprep.subr.bf16.mxu0 0
        %1340 = vmatpush1.bf16.msra.mxu0 0
        %1341 = vmatprep.subr.bf16.mxu0 0
        %1342 = vmatpush1.bf16.msra.mxu0 0
        %1343 = vmatprep.subr.bf16.mxu0 0
        %1344 = vmatpush1.bf16.msra.mxu0 0
        %1345 = vmatprep.subr.bf16.mxu0 0
        %1346 = vmatpush1.bf16.msra.mxu0 0
        %1347 = vmatprep.mubr.bf16.mxu0 0
        %1348 = vmatmul.mubr.bf16.gmra.mrb[0].mxu0 %v1301
        %v1349 = vpop.f32.mrb[0].mxu0
        %v1350 = vadd.f32 0.0, %v1349
        %v1351 = vpop.f32.mrb[0].mxu0
        %v1352 = vpop.f32.mrb[0].mxu0
        %v1353 = vadd.f32 0.0, %v1352
        %v1354 = vpop.f32.mrb[0].mxu0
        %1355 = vmatprep.mubr.bf16.mxu0 0
        %1356 = vmatmul.mubr.bf16.gmra.mrb[0].mxu0 %v1304
        %v1357 = vpop.f32.mrb[0].mxu0
        %v1358 = vadd.f32 0.0, %v1357
        %v1359 = vpop.f32.mrb[0].mxu0
        %v1360 = vpop.f32.mrb[0].mxu0
        %v1361 = vadd.f32 0.0, %v1360
        %v1362 = vpop.f32.mrb[0].mxu0
        %1363 = vmatprep.mubr.bf16.mxu0 0
        %1364 = vmatmul.mubr.bf16.gmra.mrb[0].mxu0 %v1307
        %v1365 = vpop.f32.mrb[0].mxu0
        %v1366 = vadd.f32 0.0, %v1365
        %v1367 = vpop.f32.mrb[0].mxu0
        %v1368 = vpop.f32.mrb[0].mxu0
        %v1369 = vadd.f32 0.0, %v1368
        %v1370 = vpop.f32.mrb[0].mxu0
        %1371 = vmatprep.mubr.bf16.mxu0 0
        %1372 = vmatmul.mubr.bf16.gmra.mrb[0].mxu0 %v1310
        %v1373 = vpop.f32.mrb[0].mxu0
        %v1374 = vadd.f32 0.0, %v1373
        %v1375 = vpop.f32.mrb[0].mxu0
        %v1376 = vpop.f32.mrb[0].mxu0
        %v1377 = vadd.f32 0.0, %v1376
        %v1378 = vpop.f32.mrb[0].mxu0
        %1379 = vdwg.mxu0
        %v1380 = vadd.f32 %v1282, %v1350
        %v1381 = vadd.f32 %v1283, %v1353
        %v1382 = vadd.f32 %v1284, %v1358
        %v1383 = vadd.f32 %v1285, %v1361
        %v1384 = vadd.f32 %v1286, %v1366
        %v1385 = vadd.f32 %v1287, %v1369
        %v1386 = vadd.f32 %v1288, %v1374
        %v1387 = vadd.f32 %v1289, %v1377
        %v1388 = vpack.c.bf16 %v682, %v682
        %v1389 = vpack.c.bf16 %v683, %v683
        %v1390 = vpack.c.bf16 %v684, %v684
        %v1391 = vpack.c.bf16 %v685, %v685
        %v1392 = vpack.c.bf16 %v686, %v686
        %v1393 = vpack.c.bf16 %v687, %v687
        %v1394 = vpack.c.bf16 %v688, %v688
        %v1395 = vpack.c.bf16 %v689, %v689
        %v1396 = vpack.c.bf16 %v690, %v690
        %v1397 = vpack.c.bf16 %v691, %v691
        %v1398 = vpack.c.bf16 %v692, %v692
        %v1399 = vpack.c.bf16 %v693, %v693
        %v1400 = vpack.c.bf16 %v694, %v694
        %v1401 = vpack.c.bf16 %v695, %v695
        %v1402 = vpack.c.bf16 %v696, %v696
        %v1403 = vpack.c.bf16 %v697, %v697
        %v1404 = vpack.c.bf16 %v698, %v698
        %v1405 = vpack.c.bf16 %v699, %v699
        %v1406 = vpack.c.bf16 %v700, %v700
        %v1407 = vpack.c.bf16 %v701, %v701
        %v1408 = vpack.c.bf16 %v702, %v702
        %v1409 = vpack.c.bf16 %v703, %v703
        %v1410 = vpack.c.bf16 %v704, %v704
        %v1411 = vpack.c.bf16 %v705, %v705
        %v1412 = vpack.c.bf16 %v706, %v706
        %v1413 = vpack.c.bf16 %v707, %v707
        %v1414 = vpack.c.bf16 %v708, %v708
        %v1415 = vpack.c.bf16 %v709, %v709
        %v1416 = vpack.c.bf16 %v710, %v710
        %v1417 = vpack.c.bf16 %v711, %v711
        %v1418 = vpack.c.bf16 %v712, %v712
        %v1419 = vpack.c.bf16 %v713, %v713
        %v1420 = vpack.c.bf16 %v714, %v714
        %v1421 = vpack.c.bf16 %v715, %v715
        %v1422 = vpack.c.bf16 %v716, %v716
        %v1423 = vpack.c.bf16 %v717, %v717
        %v1424 = vpack.c.bf16 %v718, %v718
        %v1425 = vpack.c.bf16 %v719, %v719
        %v1426 = vpack.c.bf16 %v720, %v720
        %v1427 = vpack.c.bf16 %v721, %v721
        %v1428 = vpack.c.bf16 %v722, %v722
        %v1429 = vpack.c.bf16 %v723, %v723
        %v1430 = vpack.c.bf16 %v724, %v724
        %v1431 = vpack.c.bf16 %v725, %v725
        %v1432 = vpack.c.bf16 %v726, %v726
        %v1433 = vpack.c.bf16 %v727, %v727
        %v1434 = vpack.c.bf16 %v728, %v728
        %v1435 = vpack.c.bf16 %v729, %v729
        %v1436 = vpack.c.bf16 %v730, %v730
        %v1437 = vpack.c.bf16 %v731, %v731
        %v1438 = vpack.c.bf16 %v732, %v732
        %v1439 = vpack.c.bf16 %v733, %v733
        %v1440 = vpack.c.bf16 %v734, %v734
        %v1441 = vpack.c.bf16 %v735, %v735
        %v1442 = vpack.c.bf16 %v736, %v736
        %v1443 = vpack.c.bf16 %v737, %v737
        %v1444 = vpack.c.bf16 %v738, %v738
        %v1445 = vpack.c.bf16 %v739, %v739
        %v1446 = vpack.c.bf16 %v740, %v740
        %v1447 = vpack.c.bf16 %v741, %v741
        %v1448 = vpack.c.bf16 %v742, %v742
        %v1449 = vpack.c.bf16 %v743, %v743
        %v1450 = vpack.c.bf16 %v744, %v744
        %v1451 = vpack.c.bf16 %v745, %v745
        %s1452 = scalar_lea.vmem [#allocation5], 8
        %v1453 = vld [vmem:[%s1452] sm:$0x3]
        %v1518 = vunpack.c.l.b16 %v1388
        %v1519 = vunpack.c.l.b16 %v1389
        %v1520 = vunpack.c.l.b16 %v1390
        %v1521 = vunpack.c.l.b16 %v1391
        %v1522 = vunpack.c.l.b16 %v1392
        %v1523 = vunpack.c.l.b16 %v1393
        %v1524 = vunpack.c.l.b16 %v1394
        %v1525 = vunpack.c.l.b16 %v1395
        %v1526 = vunpack.c.l.b16 %v1396
        %v1527 = vunpack.c.l.b16 %v1397
        %v1528 = vunpack.c.l.b16 %v1398
        %v1529 = vunpack.c.l.b16 %v1399
        %v1530 = vunpack.c.l.b16 %v1400
        %v1531 = vunpack.c.l.b16 %v1401
        %v1532 = vunpack.c.l.b16 %v1402
        %v1533 = vunpack.c.l.b16 %v1403
        %v1534 = vunpack.c.l.b16 %v1404
        %v1535 = vunpack.c.l.b16 %v1405
        %v1536 = vunpack.c.l.b16 %v1406
        %v1537 = vunpack.c.l.b16 %v1407
        %v1538 = vunpack.c.l.b16 %v1408
        %v1539 = vunpack.c.l.b16 %v1409
        %v1540 = vunpack.c.l.b16 %v1410
        %v1541 = vunpack.c.l.b16 %v1411
        %v1542 = vunpack.c.l.b16 %v1412
        %v1543 = vunpack.c.l.b16 %v1413
        %v1544 = vunpack.c.l.b16 %v1414
        %v1545 = vunpack.c.l.b16 %v1415
        %v1546 = vunpack.c.l.b16 %v1416
        %v1547 = vunpack.c.l.b16 %v1417
        %v1548 = vunpack.c.l.b16 %v1418
        %v1549 = vunpack.c.l.b16 %v1419
        %v1550 = vunpack.c.l.b16 %v1420
        %v1551 = vunpack.c.l.b16 %v1421
        %v1552 = vunpack.c.l.b16 %v1422
        %v1553 = vunpack.c.l.b16 %v1423
        %v1554 = vunpack.c.l.b16 %v1424
        %v1555 = vunpack.c.l.b16 %v1425
        %v1556 = vunpack.c.l.b16 %v1426
        %v1557 = vunpack.c.l.b16 %v1427
        %v1558 = vunpack.c.l.b16 %v1428
        %v1559 = vunpack.c.l.b16 %v1429
        %v1560 = vunpack.c.l.b16 %v1430
        %v1561 = vunpack.c.l.b16 %v1431
        %v1562 = vunpack.c.l.b16 %v1432
        %v1563 = vunpack.c.l.b16 %v1433
        %v1564 = vunpack.c.l.b16 %v1434
        %v1565 = vunpack.c.l.b16 %v1435
        %v1566 = vunpack.c.l.b16 %v1436
        %v1567 = vunpack.c.l.b16 %v1437
        %v1568 = vunpack.c.l.b16 %v1438
        %v1569 = vunpack.c.l.b16 %v1439
        %v1570 = vunpack.c.l.b16 %v1440
        %v1571 = vunpack.c.l.b16 %v1441
        %v1572 = vunpack.c.l.b16 %v1442
        %v1573 = vunpack.c.l.b16 %v1443
        %v1574 = vunpack.c.l.b16 %v1444
        %v1575 = vunpack.c.l.b16 %v1445
        %v1576 = vunpack.c.l.b16 %v1446
        %v1577 = vunpack.c.l.b16 %v1447
        %v1578 = vunpack.c.l.b16 %v1448
        %v1579 = vunpack.c.l.b16 %v1449
        %v1580 = vunpack.c.l.b16 %v1450
        %v1581 = vunpack.c.l.b16 %v1451
        %v1582 = vrot.slane %v1519, 7
        %v1583 = vsel %vm817, %v1582, %v1518
        %v1584 = vrot.slane %v1520, 6
        %v1585 = vsel %vm820, %v1584, %v1583
        %v1586 = vrot.slane %v1521, 5
        %v1587 = vsel %vm823, %v1586, %v1585
        %v1588 = vrot.slane %v1522, 4
        %v1589 = vsel %vm826, %v1588, %v1587
        %v1590 = vrot.slane %v1523, 3
        %v1591 = vsel %vm829, %v1590, %v1589
        %v1592 = vrot.slane %v1524, 2
        %v1593 = vsel %vm832, %v1592, %v1591
        %v1594 = vrot.slane %v1525, 1
        %v1595 = vsel %vm835, %v1594, %v1593
        %v1596 = vrot.slane %v1527, 7
        %v1597 = vsel %vm817, %v1596, %v1526
        %v1598 = vrot.slane %v1528, 6
        %v1599 = vsel %vm820, %v1598, %v1597
        %v1600 = vrot.slane %v1529, 5
        %v1601 = vsel %vm823, %v1600, %v1599
        %v1602 = vrot.slane %v1530, 4
        %v1603 = vsel %vm826, %v1602, %v1601
        %v1604 = vrot.slane %v1531, 3
        %v1605 = vsel %vm829, %v1604, %v1603
        %v1606 = vrot.slane %v1532, 2
        %v1607 = vsel %vm832, %v1606, %v1605
        %v1608 = vrot.slane %v1533, 1
        %v1609 = vsel %vm835, %v1608, %v1607
        %v1610 = vrot.slane %v1535, 7
        %v1611 = vsel %vm817, %v1610, %v1534
        %v1612 = vrot.slane %v1536, 6
        %v1613 = vsel %vm820, %v1612, %v1611
        %v1614 = vrot.slane %v1537, 5
        %v1615 = vsel %vm823, %v1614, %v1613
        %v1616 = vrot.slane %v1538, 4
        %v1617 = vsel %vm826, %v1616, %v1615
        %v1618 = vrot.slane %v1539, 3
        %v1619 = vsel %vm829, %v1618, %v1617
        %v1620 = vrot.slane %v1540, 2
        %v1621 = vsel %vm832, %v1620, %v1619
        %v1622 = vrot.slane %v1541, 1
        %v1623 = vsel %vm835, %v1622, %v1621
        %v1624 = vrot.slane %v1543, 7
        %v1625 = vsel %vm817, %v1624, %v1542
        %v1626 = vrot.slane %v1544, 6
        %v1627 = vsel %vm820, %v1626, %v1625
        %v1628 = vrot.slane %v1545, 5
        %v1629 = vsel %vm823, %v1628, %v1627
        %v1630 = vrot.slane %v1546, 4
        %v1631 = vsel %vm826, %v1630, %v1629
        %v1632 = vrot.slane %v1547, 3
        %v1633 = vsel %vm829, %v1632, %v1631
        %v1634 = vrot.slane %v1548, 2
        %v1635 = vsel %vm832, %v1634, %v1633
        %v1636 = vrot.slane %v1549, 1
        %v1637 = vsel %vm835, %v1636, %v1635
        %v1638 = vrot.slane %v1551, 7
        %v1639 = vsel %vm817, %v1638, %v1550
        %v1640 = vrot.slane %v1552, 6
        %v1641 = vsel %vm820, %v1640, %v1639
        %v1642 = vrot.slane %v1553, 5
        %v1643 = vsel %vm823, %v1642, %v1641
        %v1644 = vrot.slane %v1554, 4
        %v1645 = vsel %vm826, %v1644, %v1643
        %v1646 = vrot.slane %v1555, 3
        %v1647 = vsel %vm829, %v1646, %v1645
        %v1648 = vrot.slane %v1556, 2
        %v1649 = vsel %vm832, %v1648, %v1647
        %v1650 = vrot.slane %v1557, 1
        %v1651 = vsel %vm835, %v1650, %v1649
        %v1652 = vrot.slane %v1559, 7
        %v1653 = vsel %vm817, %v1652, %v1558
        %v1654 = vrot.slane %v1560, 6
        %v1655 = vsel %vm820, %v1654, %v1653
        %v1656 = vrot.slane %v1561, 5
        %v1657 = vsel %vm823, %v1656, %v1655
        %v1658 = vrot.slane %v1562, 4
        %v1659 = vsel %vm826, %v1658, %v1657
        %v1660 = vrot.slane %v1563, 3
        %v1661 = vsel %vm829, %v1660, %v1659
        %v1662 = vrot.slane %v1564, 2
        %v1663 = vsel %vm832, %v1662, %v1661
        %v1664 = vrot.slane %v1565, 1
        %v1665 = vsel %vm835, %v1664, %v1663
        %v1666 = vrot.slane %v1567, 7
        %v1667 = vsel %vm817, %v1666, %v1566
        %v1668 = vrot.slane %v1568, 6
        %v1669 = vsel %vm820, %v1668, %v1667
        %v1670 = vrot.slane %v1569, 5
        %v1671 = vsel %vm823, %v1670, %v1669
        %v1672 = vrot.slane %v1570, 4
        %v1673 = vsel %vm826, %v1672, %v1671
        %v1674 = vrot.slane %v1571, 3
        %v1675 = vsel %vm829, %v1674, %v1673
        %v1676 = vrot.slane %v1572, 2
        %v1677 = vsel %vm832, %v1676, %v1675
        %v1678 = vrot.slane %v1573, 1
        %v1679 = vsel %vm835, %v1678, %v1677
        %v1680 = vrot.slane %v1575, 7
        %v1681 = vsel %vm817, %v1680, %v1574
        %v1682 = vrot.slane %v1576, 6
        %v1683 = vsel %vm820, %v1682, %v1681
        %v1684 = vrot.slane %v1577, 5
        %v1685 = vsel %vm823, %v1684, %v1683
        %v1686 = vrot.slane %v1578, 4
        %v1687 = vsel %vm826, %v1686, %v1685
        %v1688 = vrot.slane %v1579, 3
        %v1689 = vsel %vm829, %v1688, %v1687
        %v1690 = vrot.slane %v1580, 2
        %v1691 = vsel %vm832, %v1690, %v1689
        %v1692 = vrot.slane %v1581, 1
        %v1693 = vsel %vm835, %v1692, %v1691
        %v1694 = vpack.c.b16 %v1609, %v1595
        %v1695 = vpack.c.b16 %v1637, %v1623
        %v1696 = vpack.c.b16 %v1665, %v1651
        %v1697 = vpack.c.b16 %v1693, %v1679
        %v1699 = vsel %vm1001, %v1694, 0
        %v1702 = vsel %vm1001, %v1695, 0
        %v1705 = vsel %vm1001, %v1696, 0
        %v1708 = vsel %vm1001, %v1697, 0
        %v1711 = vsel %vm1014, %v1453, 0
        %1713 = vmatprep.subr.bf16.mxu0 0
        %1714 = vmatpush1.bf16.msra.mxu0 %v1711
        %1715 = vmatprep.subr.bf16.mxu0 0
        %1716 = vmatpush1.bf16.msra.mxu0 0
        %1717 = vmatprep.subr.bf16.mxu0 0
        %1718 = vmatpush1.bf16.msra.mxu0 0
        %1719 = vmatprep.subr.bf16.mxu0 0
        %1720 = vmatpush1.bf16.msra.mxu0 0
        %1721 = vmatprep.subr.bf16.mxu0 0
        %1722 = vmatpush1.bf16.msra.mxu0 0
        %1723 = vmatprep.subr.bf16.mxu0 0
        %1724 = vmatpush1.bf16.msra.mxu0 0
        %1725 = vmatprep.subr.bf16.mxu0 0
        %1726 = vmatpush1.bf16.msra.mxu0 0
        %1727 = vmatprep.subr.bf16.mxu0 0
        %1728 = vmatpush1.bf16.msra.mxu0 0
        %1729 = vmatprep.subr.bf16.mxu0 0
        %1730 = vmatpush1.bf16.msra.mxu0 0
        %1731 = vmatprep.subr.bf16.mxu0 0
        %1732 = vmatpush1.bf16.msra.mxu0 0
        %1733 = vmatprep.subr.bf16.mxu0 0
        %1734 = vmatpush1.bf16.msra.mxu0 0
        %1735 = vmatprep.subr.bf16.mxu0 0
        %1736 = vmatpush1.bf16.msra.mxu0 0
        %1737 = vmatprep.subr.bf16.mxu0 0
        %1738 = vmatpush1.bf16.msra.mxu0 0
        %1739 = vmatprep.subr.bf16.mxu0 0
        %1740 = vmatpush1.bf16.msra.mxu0 0
        %1741 = vmatprep.subr.bf16.mxu0 0
        %1742 = vmatpush1.bf16.msra.mxu0 0
        %1743 = vmatprep.subr.bf16.mxu0 0
        %1744 = vmatpush1.bf16.msra.mxu0 0
        %1745 = vmatprep.mubr.bf16.mxu0 0
        %1746 = vmatmul.mubr.bf16.gmra.mrb[0].mxu0 %v1699
        %v1747 = vpop.f32.mrb[0].mxu0
        %v1748 = vadd.f32 0.0, %v1747
        %v1749 = vpop.f32.mrb[0].mxu0
        %v1750 = vpop.f32.mrb[0].mxu0
        %v1751 = vadd.f32 0.0, %v1750
        %v1752 = vpop.f32.mrb[0].mxu0
        %1753 = vmatprep.mubr.bf16.mxu0 0
        %1754 = vmatmul.mubr.bf16.gmra.mrb[0].mxu0 %v1702
        %v1755 = vpop.f32.mrb[0].mxu0
        %v1756 = vadd.f32 0.0, %v1755
        %v1757 = vpop.f32.mrb[0].mxu0
        %v1758 = vpop.f32.mrb[0].mxu0
        %v1759 = vadd.f32 0.0, %v1758
        %v1760 = vpop.f32.mrb[0].mxu0
        %1761 = vmatprep.mubr.bf16.mxu0 0
        %1762 = vmatmul.mubr.bf16.gmra.mrb[0].mxu0 %v1705
        %v1763 = vpop.f32.mrb[0].mxu0
        %v1764 = vadd.f32 0.0, %v1763
        %v1765 = vpop.f32.mrb[0].mxu0
        %v1766 = vpop.f32.mrb[0].mxu0
        %v1767 = vadd.f32 0.0, %v1766
        %v1768 = vpop.f32.mrb[0].mxu0
        %1769 = vmatprep.mubr.bf16.mxu0 0
        %1770 = vmatmul.mubr.bf16.gmra.mrb[0].mxu0 %v1708
        %v1771 = vpop.f32.mrb[0].mxu0
        %v1772 = vadd.f32 0.0, %v1771
        %v1773 = vpop.f32.mrb[0].mxu0
        %v1774 = vpop.f32.mrb[0].mxu0
        %v1775 = vadd.f32 0.0, %v1774
        %v1776 = vpop.f32.mrb[0].mxu0
        %1777 = vdwg.mxu0
        %v1778 = vadd.f32 %v1380, %v1748
        %v1779 = vadd.f32 %v1381, %v1751
        %v1780 = vadd.f32 %v1382, %v1756
        %v1781 = vadd.f32 %v1383, %v1759
        %v1782 = vadd.f32 %v1384, %v1764
        %v1783 = vadd.f32 %v1385, %v1767
        %v1784 = vadd.f32 %v1386, %v1772
        %v1785 = vadd.f32 %v1387, %v1775
        %v1787 = vsel %vm1171, %v1185, 0.0
        %v1788 = vpack.c.bf16 %v1176, %v1174
        %v1789 = vpack.c.bf16 %v1180, %v1178
        %v1790 = vpack.c.bf16 %v1184, %v1182
        %v1791 = vpack.c.bf16 %v1787, %v1186
        %s1792 = scalar_lea.vmem [#allocation5], 10
        %v1793 = vld [vmem:[%s1792] sm:$0x3]
        %v1795 = vsel %vm1001, %v1788, 0
        %v1798 = vsel %vm1001, %v1789, 0
        %v1801 = vsel %vm1001, %v1790, 0
        %v1804 = vsel %vm1001, %v1791, 0
        %v1807 = vsel %vm1014, %v1793, 0
        %1809 = vmatprep.subr.bf16.mxu0 0
        %1810 = vmatpush1.bf16.msra.mxu0 %v1807
        %1811 = vmatprep.subr.bf16.mxu0 0
        %1812 = vmatpush1.bf16.msra.mxu0 0
        %1813 = vmatprep.subr.bf16.mxu0 0
        %1814 = vmatpush1.bf16.msra.mxu0 0
        %1815 = vmatprep.subr.bf16.mxu0 0
        %1816 = vmatpush1.bf16.msra.mxu0 0
        %1817 = vmatprep.subr.bf16.mxu0 0
        %1818 = vmatpush1.bf16.msra.mxu0 0
        %1819 = vmatprep.subr.bf16.mxu0 0
        %1820 = vmatpush1.bf16.msra.mxu0 0
        %1821 = vmatprep.subr.bf16.mxu0 0
        %1822 = vmatpush1.bf16.msra.mxu0 0
        %1823 = vmatprep.subr.bf16.mxu0 0
        %1824 = vmatpush1.bf16.msra.mxu0 0
        %1825 = vmatprep.subr.bf16.mxu0 0
        %1826 = vmatpush1.bf16.msra.mxu0 0
        %1827 = vmatprep.subr.bf16.mxu0 0
        %1828 = vmatpush1.bf16.msra.mxu0 0
        %1829 = vmatprep.subr.bf16.mxu0 0
        %1830 = vmatpush1.bf16.msra.mxu0 0
        %1831 = vmatprep.subr.bf16.mxu0 0
        %1832 = vmatpush1.bf16.msra.mxu0 0
        %1833 = vmatprep.subr.bf16.mxu0 0
        %1834 = vmatpush1.bf16.msra.mxu0 0
        %1835 = vmatprep.subr.bf16.mxu0 0
        %1836 = vmatpush1.bf16.msra.mxu0 0
        %1837 = vmatprep.subr.bf16.mxu0 0
        %1838 = vmatpush1.bf16.msra.mxu0 0
        %1839 = vmatprep.subr.bf16.mxu0 0
        %1840 = vmatpush1.bf16.msra.mxu0 0
        %1841 = vmatprep.mubr.bf16.mxu0 0
        %1842 = vmatmul.mubr.bf16.gmra.mrb[0].mxu0 %v1795
        %v1843 = vpop.f32.mrb[0].mxu0
        %v1844 = vadd.f32 0.0, %v1843
        %v1845 = vpop.f32.mrb[0].mxu0
        %v1846 = vpop.f32.mrb[0].mxu0
        %v1847 = vadd.f32 0.0, %v1846
        %v1848 = vpop.f32.mrb[0].mxu0
        %1849 = vmatprep.mubr.bf16.mxu0 0
        %1850 = vmatmul.mubr.bf16.gmra.mrb[0].mxu0 %v1798
        %v1851 = vpop.f32.mrb[0].mxu0
        %v1852 = vadd.f32 0.0, %v1851
        %v1853 = vpop.f32.mrb[0].mxu0
        %v1854 = vpop.f32.mrb[0].mxu0
        %v1855 = vadd.f32 0.0, %v1854
        %v1856 = vpop.f32.mrb[0].mxu0
        %1857 = vmatprep.mubr.bf16.mxu0 0
        %1858 = vmatmul.mubr.bf16.gmra.mrb[0].mxu0 %v1801
        %v1859 = vpop.f32.mrb[0].mxu0
        %v1860 = vadd.f32 0.0, %v1859
        %v1861 = vpop.f32.mrb[0].mxu0
        %v1862 = vpop.f32.mrb[0].mxu0
        %v1863 = vadd.f32 0.0, %v1862
        %v1864 = vpop.f32.mrb[0].mxu0
        %1865 = vmatprep.mubr.bf16.mxu0 0
        %1866 = vmatmul.mubr.bf16.gmra.mrb[0].mxu0 %v1804
        %v1867 = vpop.f32.mrb[0].mxu0
        %v1868 = vadd.f32 0.0, %v1867
        %v1869 = vpop.f32.mrb[0].mxu0
        %v1870 = vpop.f32.mrb[0].mxu0
        %v1871 = vadd.f32 0.0, %v1870
        %v1872 = vpop.f32.mrb[0].mxu0
        %1873 = vdwg.mxu0
        %v1874 = vadd.f32 %v1778, %v1844
        %v1875 = vadd.f32 %v1779, %v1847
        %v1876 = vadd.f32 %v1780, %v1852
        %v1877 = vadd.f32 %v1781, %v1855
        %v1878 = vadd.f32 %v1782, %v1860
        %v1879 = vadd.f32 %v1783, %v1863
        %v1880 = vadd.f32 %v1784, %v1868
        %v1881 = vadd.f32 %v1785, %v1871
        %v1883 = vsel %vm968, %v1291, 0.0
        %v1884 = vpack.c.bf16 %v1883, %v1292
        %s1885 = scalar_lea.vmem [#allocation5], 12
        %v1886 = vld [vmem:[%s1885] sm:$0x3]
        %v1888 = vsel %vm1001, %v1884, 0
        %v1891 = vsel %vm1014, %v1886, 0
        %1893 = vmatprep.subr.bf16.mxu0 0
        %1894 = vmatpush1.bf16.msra.mxu0 %v1891
        %1895 = vmatprep.subr.bf16.mxu0 0
        %1896 = vmatpush1.bf16.msra.mxu0 0
        %1897 = vmatprep.subr.bf16.mxu0 0
        %1898 = vmatpush1.bf16.msra.mxu0 0
        %1899 = vmatprep.subr.bf16.mxu0 0
        %1900 = vmatpush1.bf16.msra.mxu0 0
        %1901 = vmatprep.subr.bf16.mxu0 0
        %1902 = vmatpush1.bf16.msra.mxu0 0
        %1903 = vmatprep.subr.bf16.mxu0 0
        %1904 = vmatpush1.bf16.msra.mxu0 0
        %1905 = vmatprep.subr.bf16.mxu0 0
        %1906 = vmatpush1.bf16.msra.mxu0 0
        %1907 = vmatprep.subr.bf16.mxu0 0
        %1908 = vmatpush1.bf16.msra.mxu0 0
        %1909 = vmatprep.subr.bf16.mxu0 0
        %1910 = vmatpush1.bf16.msra.mxu0 0
        %1911 = vmatprep.subr.bf16.mxu0 0
        %1912 = vmatpush1.bf16.msra.mxu0 0
        %1913 = vmatprep.subr.bf16.mxu0 0
        %1914 = vmatpush1.bf16.msra.mxu0 0
        %1915 = vmatprep.subr.bf16.mxu0 0
        %1916 = vmatpush1.bf16.msra.mxu0 0
        %1917 = vmatprep.subr.bf16.mxu0 0
        %1918 = vmatpush1.bf16.msra.mxu0 0
        %1919 = vmatprep.subr.bf16.mxu0 0
        %1920 = vmatpush1.bf16.msra.mxu0 0
        %1921 = vmatprep.subr.bf16.mxu0 0
        %1922 = vmatpush1.bf16.msra.mxu0 0
        %1923 = vmatprep.subr.bf16.mxu0 0
        %1924 = vmatpush1.bf16.msra.mxu0 0
        %1925 = vmatprep.mubr.bf16.mxu0 0
        %1926 = vmatmul.mubr.bf16.gmra.mrb[0].mxu0 %v1087
        %v1927 = vpop.f32.mrb[0].mxu0
        %v1928 = vadd.f32 0.0, %v1927
        %v1929 = vpop.f32.mrb[0].mxu0
        %v1930 = vpop.f32.mrb[0].mxu0
        %v1931 = vadd.f32 0.0, %v1930
        %v1932 = vpop.f32.mrb[0].mxu0
        %1933 = vmatprep.mubr.bf16.mxu0 0
        %1934 = vmatmul.mubr.bf16.gmra.mrb[0].mxu0 %v1090
        %v1935 = vpop.f32.mrb[0].mxu0
        %v1936 = vadd.f32 0.0, %v1935
        %v1937 = vpop.f32.mrb[0].mxu0
        %v1938 = vpop.f32.mrb[0].mxu0
        %v1939 = vadd.f32 0.0, %v1938
        %v1940 = vpop.f32.mrb[0].mxu0
        %1941 = vmatprep.mubr.bf16.mxu0 0
        %1942 = vmatmul.mubr.bf16.gmra.mrb[0].mxu0 %v1093
        %v1943 = vpop.f32.mrb[0].mxu0
        %v1944 = vadd.f32 0.0, %v1943
        %v1945 = vpop.f32.mrb[0].mxu0
        %v1946 = vpop.f32.mrb[0].mxu0
        %v1947 = vadd.f32 0.0, %v1946
        %v1948 = vpop.f32.mrb[0].mxu0
        %1949 = vmatprep.mubr.bf16.mxu0 0
        %1950 = vmatmul.mubr.bf16.gmra.mrb[0].mxu0 %v1888
        %v1951 = vpop.f32.mrb[0].mxu0
        %v1952 = vadd.f32 0.0, %v1951
        %v1953 = vpop.f32.mrb[0].mxu0
        %v1954 = vpop.f32.mrb[0].mxu0
        %v1955 = vadd.f32 0.0, %v1954
        %v1956 = vpop.f32.mrb[0].mxu0
        %1957 = vdwg.mxu0
        %v1958 = vadd.f32 %v1874, %v1928
        %v1959 = vadd.f32 %v1875, %v1931
        %v1960 = vadd.f32 %v1876, %v1936
        %v1961 = vadd.f32 %v1877, %v1939
        %v1962 = vadd.f32 %v1878, %v1944
        %v1963 = vadd.f32 %v1879, %v1947
        %v1964 = vadd.f32 %v1880, %v1952
        %v1965 = vadd.f32 %v1881, %v1955
        %v1966 = vpack.c.bf16 0.0, %v934
        %s1967 = scalar_lea.vmem [#allocation5], 14
        %v1968 = vld [vmem:[%s1967] sm:$0x3]
        %v1970 = vsel %vm1001, %v1966, 0
        %v1973 = vsel %vm1014, %v1968, 0
        %1975 = vmatprep.subr.bf16.mxu0 0
        %1976 = vmatpush1.bf16.msra.mxu0 %v1973
        %1977 = vmatprep.subr.bf16.mxu0 0
        %1978 = vmatpush1.bf16.msra.mxu0 0
        %1979 = vmatprep.subr.bf16.mxu0 0
        %1980 = vmatpush1.bf16.msra.mxu0 0
        %1981 = vmatprep.subr.bf16.mxu0 0
        %1982 = vmatpush1.bf16.msra.mxu0 0
        %1983 = vmatprep.subr.bf16.mxu0 0
        %1984 = vmatpush1.bf16.msra.mxu0 0
        %1985 = vmatprep.subr.bf16.mxu0 0
        %1986 = vmatpush1.bf16.msra.mxu0 0
        %1987 = vmatprep.subr.bf16.mxu0 0
        %1988 = vmatpush1.bf16.msra.mxu0 0
        %1989 = vmatprep.subr.bf16.mxu0 0
        %1990 = vmatpush1.bf16.msra.mxu0 0
        %1991 = vmatprep.subr.bf16.mxu0 0
        %1992 = vmatpush1.bf16.msra.mxu0 0
        %1993 = vmatprep.subr.bf16.mxu0 0
        %1994 = vmatpush1.bf16.msra.mxu0 0
        %1995 = vmatprep.subr.bf16.mxu0 0
        %1996 = vmatpush1.bf16.msra.mxu0 0
        %1997 = vmatprep.subr.bf16.mxu0 0
        %1998 = vmatpush1.bf16.msra.mxu0 0
        %1999 = vmatprep.subr.bf16.mxu0 0
        %2000 = vmatpush1.bf16.msra.mxu0 0
        %2001 = vmatprep.subr.bf16.mxu0 0
        %2002 = vmatpush1.bf16.msra.mxu0 0
        %2003 = vmatprep.subr.bf16.mxu0 0
        %2004 = vmatpush1.bf16.msra.mxu0 0
        %2005 = vmatprep.subr.bf16.mxu0 0
        %2006 = vmatpush1.bf16.msra.mxu0 0
        %2007 = vmatprep.mubr.bf16.mxu0 0
        %2008 = vmatmul.mubr.bf16.gmra.mrb[0].mxu0 %v1006
        %v2009 = vpop.f32.mrb[0].mxu0
        %v2010 = vadd.f32 0.0, %v2009
        %v2011 = vpop.f32.mrb[0].mxu0
        %v2012 = vpop.f32.mrb[0].mxu0
        %v2013 = vadd.f32 0.0, %v2012
        %v2014 = vpop.f32.mrb[0].mxu0
        %2015 = vmatprep.mubr.bf16.mxu0 0
        %2016 = vmatmul.mubr.bf16.gmra.mrb[0].mxu0 %v1009
        %v2017 = vpop.f32.mrb[0].mxu0
        %v2018 = vadd.f32 0.0, %v2017
        %v2019 = vpop.f32.mrb[0].mxu0
        %v2020 = vpop.f32.mrb[0].mxu0
        %v2021 = vadd.f32 0.0, %v2020
        %v2022 = vpop.f32.mrb[0].mxu0
        %2023 = vmatprep.mubr.bf16.mxu0 0
        %2024 = vmatmul.mubr.bf16.gmra.mrb[0].mxu0 %v1012
        %v2025 = vpop.f32.mrb[0].mxu0
        %v2026 = vadd.f32 0.0, %v2025
        %v2027 = vpop.f32.mrb[0].mxu0
        %v2028 = vpop.f32.mrb[0].mxu0
        %v2029 = vadd.f32 0.0, %v2028
        %v2030 = vpop.f32.mrb[0].mxu0
        %2031 = vmatprep.mubr.bf16.mxu0 0
        %2032 = vmatmul.mubr.bf16.gmra.mrb[0].mxu0 %v1970
        %v2033 = vpop.f32.mrb[0].mxu0
        %v2034 = vadd.f32 0.0, %v2033
        %v2035 = vpop.f32.mrb[0].mxu0
        %v2036 = vpop.f32.mrb[0].mxu0
        %v2037 = vadd.f32 0.0, %v2036
        %v2038 = vpop.f32.mrb[0].mxu0
        %2039 = vdwg.mxu0
        %v2040 = vadd.f32 %v1958, %v2010
        %v2041 = vadd.f32 %v1959, %v2013
        %v2042 = vadd.f32 %v1960, %v2018
        %v2043 = vadd.f32 %v1961, %v2021
        %v2044 = vadd.f32 %v1962, %v2026
        %v2045 = vadd.f32 %v1963, %v2029
        %v2046 = vadd.f32 %v1964, %v2034
        %v2047 = vadd.f32 %v1965, %v2037
        %v2048 = vpack.c.bf16 0.0, %v1787
        %s2049 = scalar_lea.vmem [#allocation5], 16
        %v2050 = vld [vmem:[%s2049] sm:$0x3]
        %v2052 = vsel %vm1001, %v2048, 0
        %v2055 = vsel %vm1014, %v2050, 0
        %2057 = vmatprep.subr.bf16.mxu0 0
        %2058 = vmatpush1.bf16.msra.mxu0 %v2055
        %2059 = vmatprep.subr.bf16.mxu0 0
        %2060 = vmatpush1.bf16.msra.mxu0 0
        %2061 = vmatprep.subr.bf16.mxu0 0
        %2062 = vmatpush1.bf16.msra.mxu0 0
        %2063 = vmatprep.subr.bf16.mxu0 0
        %2064 = vmatpush1.bf16.msra.mxu0 0
        %2065 = vmatprep.subr.bf16.mxu0 0
        %2066 = vmatpush1.bf16.msra.mxu0 0
        %2067 = vmatprep.subr.bf16.mxu0 0
        %2068 = vmatpush1.bf16.msra.mxu0 0
        %2069 = vmatprep.subr.bf16.mxu0 0
        %2070 = vmatpush1.bf16.msra.mxu0 0
        %2071 = vmatprep.subr.bf16.mxu0 0
        %2072 = vmatpush1.bf16.msra.mxu0 0
        %2073 = vmatprep.subr.bf16.mxu0 0
        %2074 = vmatpush1.bf16.msra.mxu0 0
        %2075 = vmatprep.subr.bf16.mxu0 0
        %2076 = vmatpush1.bf16.msra.mxu0 0
        %2077 = vmatprep.subr.bf16.mxu0 0
        %2078 = vmatpush1.bf16.msra.mxu0 0
        %2079 = vmatprep.subr.bf16.mxu0 0
        %2080 = vmatpush1.bf16.msra.mxu0 0
        %2081 = vmatprep.subr.bf16.mxu0 0
        %2082 = vmatpush1.bf16.msra.mxu0 0
        %2083 = vmatprep.subr.bf16.mxu0 0
        %2084 = vmatpush1.bf16.msra.mxu0 0
        %2085 = vmatprep.subr.bf16.mxu0 0
        %2086 = vmatpush1.bf16.msra.mxu0 0
        %2087 = vmatprep.subr.bf16.mxu0 0
        %2088 = vmatpush1.bf16.msra.mxu0 0
        %2089 = vmatprep.mubr.bf16.mxu0 0
        %2090 = vmatmul.mubr.bf16.gmra.mrb[0].mxu0 %v1206
        %v2091 = vpop.f32.mrb[0].mxu0
        %v2092 = vadd.f32 0.0, %v2091
        %v2093 = vpop.f32.mrb[0].mxu0
        %v2094 = vpop.f32.mrb[0].mxu0
        %v2095 = vadd.f32 0.0, %v2094
        %v2096 = vpop.f32.mrb[0].mxu0
        %2097 = vmatprep.mubr.bf16.mxu0 0
        %2098 = vmatmul.mubr.bf16.gmra.mrb[0].mxu0 %v1209
        %v2099 = vpop.f32.mrb[0].mxu0
        %v2100 = vadd.f32 0.0, %v2099
        %v2101 = vpop.f32.mrb[0].mxu0
        %v2102 = vpop.f32.mrb[0].mxu0
        %v2103 = vadd.f32 0.0, %v2102
        %v2104 = vpop.f32.mrb[0].mxu0
        %2105 = vmatprep.mubr.bf16.mxu0 0
        %2106 = vmatmul.mubr.bf16.gmra.mrb[0].mxu0 %v1212
        %v2107 = vpop.f32.mrb[0].mxu0
        %v2108 = vadd.f32 0.0, %v2107
        %v2109 = vpop.f32.mrb[0].mxu0
        %v2110 = vpop.f32.mrb[0].mxu0
        %v2111 = vadd.f32 0.0, %v2110
        %v2112 = vpop.f32.mrb[0].mxu0
        %2113 = vmatprep.mubr.bf16.mxu0 0
        %2114 = vmatmul.mubr.bf16.gmra.mrb[0].mxu0 %v2052
        %v2115 = vpop.f32.mrb[0].mxu0
        %v2116 = vadd.f32 0.0, %v2115
        %v2117 = vpop.f32.mrb[0].mxu0
        %v2118 = vpop.f32.mrb[0].mxu0
        %v2119 = vadd.f32 0.0, %v2118
        %v2120 = vpop.f32.mrb[0].mxu0
        %2121 = vdwg.mxu0
        %v2122 = vadd.f32 %v2040, %v2092
        %v2123 = vadd.f32 %v2041, %v2095
        %v2124 = vadd.f32 %v2042, %v2100
        %v2125 = vadd.f32 %v2043, %v2103
        %v2126 = vadd.f32 %v2044, %v2108
        %v2127 = vadd.f32 %v2045, %v2111
        %v2128 = vadd.f32 %v2046, %v2116
        %v2129 = vadd.f32 %v2047, %v2119
        %v2130 = vld [vmem:[#allocation7] sm:$0x1]
        %v2132 = vlaneseq
        %v2133 = vshrl.u32 %v2132, 7
        %v2134 = vsub.s32 0, %v2133
        %v2135 = vrot.slane %v2130, %v2134
        %v2137 = vadd.f32 %v2122, %v2135
        %v2138 = vadd.f32 %v2123, %v2135
        %v2139 = vadd.f32 %v2124, %v2135
        %v2140 = vadd.f32 %v2125, %v2135
        %v2141 = vadd.f32 %v2126, %v2135
        %v2142 = vadd.f32 %v2127, %v2135
        %v2143 = vadd.f32 %v2128, %v2135
        %v2144 = vadd.f32 %v2129, %v2135
        %v2145 = vmax.f32 %v2137, 0.0
        %v2146 = vmax.f32 %v2138, 0.0
        %v2147 = vmax.f32 %v2139, 0.0
        %v2148 = vmax.f32 %v2140, 0.0
        %v2149 = vmax.f32 %v2141, 0.0
        %v2150 = vmax.f32 %v2142, 0.0
        %v2151 = vmax.f32 %v2143, 0.0
        %v2152 = vmax.f32 %v2144, 0.0
        %v2153 = vsel %vm751, %v2145, 0.0
        %v2154 = vsel %vm751, %v2146, 0.0
        %v2155 = vsel %vm751, %v2147, 0.0
        %v2156 = vsel %vm751, %v2148, 0.0
        %v2157 = vsel %vm751, %v2149, 0.0
        %v2158 = vsel %vm751, %v2150, 0.0
        %v2159 = vsel %vm751, %v2151, 0.0
        %v2160 = vsel %vm751, %v2152, 0.0
        %v2161 = vsel %vm952, %v2145, 0.0
        %v2162 = vsel %vm952, %v2146, 0.0
        %v2163 = vsel %vm952, %v2147, 0.0
        %v2164 = vsel %vm952, %v2148, 0.0
        %v2165 = vsel %vm952, %v2149, 0.0
        %v2166 = vsel %vm952, %v2150, 0.0
        %v2167 = vsel %vm952, %v2151, 0.0
        %v2168 = vsel %vm952, %v2152, 0.0
        %v2176 = vrot.slane %v2153, 7
        %v2177 = vrot.slane %v2154, 7
        %v2178 = vsel %vm968, %v2176, %v2177
        %v2179 = vrot.slane %v2155, 7
        %v2180 = vsel %vm968, %v2177, %v2179
        %v2181 = vrot.slane %v2156, 7
        %v2182 = vsel %vm968, %v2179, %v2181
        %v2183 = vrot.slane %v2157, 7
        %v2184 = vsel %vm968, %v2181, %v2183
        %v2185 = vrot.slane %v2158, 7
        %v2186 = vsel %vm968, %v2183, %v2185
        %v2187 = vrot.slane %v2159, 7
        %v2188 = vsel %vm968, %v2185, %v2187
        %v2196 = vsel %vm968, 0.0, %v2176
        %v2197 = vpack.c.bf16 %v2196, 0.0
        %v2198 = vpack.c.bf16 %v2180, %v2178
        %v2199 = vpack.c.bf16 %v2184, %v2182
        %v2200 = vpack.c.bf16 %v2188, %v2186
        %v2201 = vld [vmem:[#allocation8] sm:$0xf]
        %v2202 = vpack.c.bf16 %v2145, 0.0
        %v2203 = vpack.c.bf16 %v2147, %v2146
        %v2204 = vpack.c.bf16 %v2149, %v2148
        %v2205 = vpack.c.bf16 %v2151, %v2150
        %s2206 = scalar_lea.vmem [#allocation8], 4
        %v2207 = vld [vmem:[%s2206] sm:$0xf]
        %vm2208 = vcmask 64512
        %v2210 = vsel %vm2208, %v2202, 0
        %v2213 = vsel %vm2208, %v2203, 0
        %v2216 = vsel %vm2208, %v2204, 0
        %v2219 = vsel %vm2208, %v2205, 0
        %vm2221 = vcmask 1043456
        %v2223 = vsel %vm2221, %v2207, 0
        %2225 = vmatprep.subr.bf16.mxu0 0
        %2226 = vmatpush1.bf16.msra.mxu0 %v2223
        %2227 = vmatprep.subr.bf16.mxu0 0
        %2228 = vmatpush1.bf16.msra.mxu0 0
        %2229 = vmatprep.subr.bf16.mxu0 0
        %2230 = vmatpush1.bf16.msra.mxu0 0
        %2231 = vmatprep.subr.bf16.mxu0 0
        %2232 = vmatpush1.bf16.msra.mxu0 0
        %2233 = vmatprep.subr.bf16.mxu0 0
        %2234 = vmatpush1.bf16.msra.mxu0 0
        %2235 = vmatprep.subr.bf16.mxu0 0
        %2236 = vmatpush1.bf16.msra.mxu0 0
        %2237 = vmatprep.subr.bf16.mxu0 0
        %2238 = vmatpush1.bf16.msra.mxu0 0
        %2239 = vmatprep.subr.bf16.mxu0 0
        %2240 = vmatpush1.bf16.msra.mxu0 0
        %2241 = vmatprep.subr.bf16.mxu0 0
        %2242 = vmatpush1.bf16.msra.mxu0 0
        %2243 = vmatprep.subr.bf16.mxu0 0
        %2244 = vmatpush1.bf16.msra.mxu0 0
        %2245 = vmatprep.subr.bf16.mxu0 0
        %2246 = vmatpush1.bf16.msra.mxu0 0
        %2247 = vmatprep.subr.bf16.mxu0 0
        %2248 = vmatpush1.bf16.msra.mxu0 0
        %2249 = vmatprep.subr.bf16.mxu0 0
        %2250 = vmatpush1.bf16.msra.mxu0 0
        %2251 = vmatprep.subr.bf16.mxu0 0
        %2252 = vmatpush1.bf16.msra.mxu0 0
        %2253 = vmatprep.subr.bf16.mxu0 0
        %2254 = vmatpush1.bf16.msra.mxu0 0
        %2255 = vmatprep.subr.bf16.mxu0 0
        %2256 = vmatpush1.bf16.msra.mxu0 0
        %2257 = vmatprep.mubr.bf16.mxu0 0
        %2258 = vmatmul.mubr.bf16.gmra.mrb[0].mxu0 %v2210
        %v2259 = vpop.f32.mrb[0].mxu0
        %v2260 = vadd.f32 0.0, %v2259
        %v2261 = vpop.f32.mrb[0].mxu0
        %v2262 = vpop.f32.mrb[0].mxu0
        %v2263 = vadd.f32 0.0, %v2262
        %v2264 = vpop.f32.mrb[0].mxu0
        %2265 = vmatprep.mubr.bf16.mxu0 0
        %2266 = vmatmul.mubr.bf16.gmra.mrb[0].mxu0 %v2213
        %v2267 = vpop.f32.mrb[0].mxu0
        %v2268 = vadd.f32 0.0, %v2267
        %v2269 = vpop.f32.mrb[0].mxu0
        %v2270 = vpop.f32.mrb[0].mxu0
        %v2271 = vadd.f32 0.0, %v2270
        %v2272 = vpop.f32.mrb[0].mxu0
        %2273 = vmatprep.mubr.bf16.mxu0 0
        %2274 = vmatmul.mubr.bf16.gmra.mrb[0].mxu0 %v2216
        %v2275 = vpop.f32.mrb[0].mxu0
        %v2276 = vadd.f32 0.0, %v2275
        %v2277 = vpop.f32.mrb[0].mxu0
        %v2278 = vpop.f32.mrb[0].mxu0
        %v2279 = vadd.f32 0.0, %v2278
        %v2280 = vpop.f32.mrb[0].mxu0
        %2281 = vmatprep.mubr.bf16.mxu0 0
        %2282 = vmatmul.mubr.bf16.gmra.mrb[0].mxu0 %v2219
        %v2283 = vpop.f32.mrb[0].mxu0
        %v2284 = vadd.f32 0.0, %v2283
        %v2285 = vpop.f32.mrb[0].mxu0
        %v2286 = vpop.f32.mrb[0].mxu0
        %v2287 = vadd.f32 0.0, %v2286
        %v2288 = vpop.f32.mrb[0].mxu0
        %2289 = vdwg.mxu0
        %v2291 = vsel %vm2208, %v2197, 0
        %v2294 = vsel %vm2208, %v2198, 0
        %v2297 = vsel %vm2208, %v2199, 0
        %v2300 = vsel %vm2208, %v2200, 0
        %v2303 = vsel %vm2221, %v2201, 0
        %2305 = vmatprep.subr.bf16.mxu0 0
        %2306 = vmatpush1.bf16.msra.mxu0 %v2303
        %2307 = vmatprep.subr.bf16.mxu0 0
        %2308 = vmatpush1.bf16.msra.mxu0 0
        %2309 = vmatprep.subr.bf16.mxu0 0
        %2310 = vmatpush1.bf16.msra.mxu0 0
        %2311 = vmatprep.subr.bf16.mxu0 0
        %2312 = vmatpush1.bf16.msra.mxu0 0
        %2313 = vmatprep.subr.bf16.mxu0 0
        %2314 = vmatpush1.bf16.msra.mxu0 0
        %2315 = vmatprep.subr.bf16.mxu0 0
        %2316 = vmatpush1.bf16.msra.mxu0 0
        %2317 = vmatprep.subr.bf16.mxu0 0
        %2318 = vmatpush1.bf16.msra.mxu0 0
        %2319 = vmatprep.subr.bf16.mxu0 0
        %2320 = vmatpush1.bf16.msra.mxu0 0
        %2321 = vmatprep.subr.bf16.mxu0 0
        %2322 = vmatpush1.bf16.msra.mxu0 0
        %2323 = vmatprep.subr.bf16.mxu0 0
        %2324 = vmatpush1.bf16.msra.mxu0 0
        %2325 = vmatprep.subr.bf16.mxu0 0
        %2326 = vmatpush1.bf16.msra.mxu0 0
        %2327 = vmatprep.subr.bf16.mxu0 0
        %2328 = vmatpush1.bf16.msra.mxu0 0
        %2329 = vmatprep.subr.bf16.mxu0 0
        %2330 = vmatpush1.bf16.msra.mxu0 0
        %2331 = vmatprep.subr.bf16.mxu0 0
        %2332 = vmatpush1.bf16.msra.mxu0 0
        %2333 = vmatprep.subr.bf16.mxu0 0
        %2334 = vmatpush1.bf16.msra.mxu0 0
        %2335 = vmatprep.subr.bf16.mxu0 0
        %2336 = vmatpush1.bf16.msra.mxu0 0
        %2337 = vmatprep.mubr.bf16.mxu0 0
        %2338 = vmatmul.mubr.bf16.gmra.mrb[0].mxu0 %v2291
        %v2339 = vpop.f32.mrb[0].mxu0
        %v2340 = vadd.f32 %v2260, %v2339
        %v2341 = vpop.f32.mrb[0].mxu0
        %v2342 = vpop.f32.mrb[0].mxu0
        %v2343 = vadd.f32 %v2263, %v2342
        %v2344 = vpop.f32.mrb[0].mxu0
        %2345 = vmatprep.mubr.bf16.mxu0 0
        %2346 = vmatmul.mubr.bf16.gmra.mrb[0].mxu0 %v2294
        %v2347 = vpop.f32.mrb[0].mxu0
        %v2348 = vadd.f32 %v2268, %v2347
        %v2349 = vpop.f32.mrb[0].mxu0
        %v2350 = vpop.f32.mrb[0].mxu0
        %v2351 = vadd.f32 %v2271, %v2350
        %v2352 = vpop.f32.mrb[0].mxu0
        %2353 = vmatprep.mubr.bf16.mxu0 0
        %2354 = vmatmul.mubr.bf16.gmra.mrb[0].mxu0 %v2297
        %v2355 = vpop.f32.mrb[0].mxu0
        %v2356 = vadd.f32 %v2276, %v2355
        %v2357 = vpop.f32.mrb[0].mxu0
        %v2358 = vpop.f32.mrb[0].mxu0
        %v2359 = vadd.f32 %v2279, %v2358
        %v2360 = vpop.f32.mrb[0].mxu0
        %2361 = vmatprep.mubr.bf16.mxu0 0
        %2362 = vmatmul.mubr.bf16.gmra.mrb[0].mxu0 %v2300
        %v2363 = vpop.f32.mrb[0].mxu0
        %v2364 = vadd.f32 %v2284, %v2363
        %v2365 = vpop.f32.mrb[0].mxu0
        %v2366 = vpop.f32.mrb[0].mxu0
        %v2367 = vadd.f32 %v2287, %v2366
        %v2368 = vpop.f32.mrb[0].mxu0
        %2369 = vdwg.mxu0
        %v2378 = vrot.slane %v2161, 1
        %v2379 = vrot.slane %v2162, 1
        %v2380 = vsel %vm1171, %v2378, %v2379
        %v2381 = vrot.slane %v2163, 1
        %v2382 = vsel %vm1171, %v2379, %v2381
        %v2383 = vrot.slane %v2164, 1
        %v2384 = vsel %vm1171, %v2381, %v2383
        %v2385 = vrot.slane %v2165, 1
        %v2386 = vsel %vm1171, %v2383, %v2385
        %v2387 = vrot.slane %v2166, 1
        %v2388 = vsel %vm1171, %v2385, %v2387
        %v2389 = vrot.slane %v2167, 1
        %v2390 = vsel %vm1171, %v2387, %v2389
        %v2391 = vrot.slane %v2168, 1
        %v2392 = vsel %vm1171, %v2389, %v2391
        %v2401 = vsel %vm1171, 0.0, %v2378
        %v2402 = vpack.c.bf16 %v2380, %v2401
        %v2403 = vpack.c.bf16 %v2384, %v2382
        %v2404 = vpack.c.bf16 %v2388, %v2386
        %v2405 = vpack.c.bf16 %v2392, %v2390
        %s2406 = scalar_lea.vmem [#allocation8], 8
        %v2407 = vld [vmem:[%s2406] sm:$0xf]
        %v2409 = vsel %vm2208, %v2402, 0
        %v2412 = vsel %vm2208, %v2403, 0
        %v2415 = vsel %vm2208, %v2404, 0
        %v2418 = vsel %vm2208, %v2405, 0
        %v2421 = vsel %vm2221, %v2407, 0
        %2423 = vmatprep.subr.bf16.mxu0 0
        %2424 = vmatpush1.bf16.msra.mxu0 %v2421
        %2425 = vmatprep.subr.bf16.mxu0 0
        %2426 = vmatpush1.bf16.msra.mxu0 0
        %2427 = vmatprep.subr.bf16.mxu0 0
        %2428 = vmatpush1.bf16.msra.mxu0 0
        %2429 = vmatprep.subr.bf16.mxu0 0
        %2430 = vmatpush1.bf16.msra.mxu0 0
        %2431 = vmatprep.subr.bf16.mxu0 0
        %2432 = vmatpush1.bf16.msra.mxu0 0
        %2433 = vmatprep.subr.bf16.mxu0 0
        %2434 = vmatpush1.bf16.msra.mxu0 0
        %2435 = vmatprep.subr.bf16.mxu0 0
        %2436 = vmatpush1.bf16.msra.mxu0 0
        %2437 = vmatprep.subr.bf16.mxu0 0
        %2438 = vmatpush1.bf16.msra.mxu0 0
        %2439 = vmatprep.subr.bf16.mxu0 0
        %2440 = vmatpush1.bf16.msra.mxu0 0
        %2441 = vmatprep.subr.bf16.mxu0 0
        %2442 = vmatpush1.bf16.msra.mxu0 0
        %2443 = vmatprep.subr.bf16.mxu0 0
        %2444 = vmatpush1.bf16.msra.mxu0 0
        %2445 = vmatprep.subr.bf16.mxu0 0
        %2446 = vmatpush1.bf16.msra.mxu0 0
        %2447 = vmatprep.subr.bf16.mxu0 0
        %2448 = vmatpush1.bf16.msra.mxu0 0
        %2449 = vmatprep.subr.bf16.mxu0 0
        %2450 = vmatpush1.bf16.msra.mxu0 0
        %2451 = vmatprep.subr.bf16.mxu0 0
        %2452 = vmatpush1.bf16.msra.mxu0 0
        %2453 = vmatprep.subr.bf16.mxu0 0
        %2454 = vmatpush1.bf16.msra.mxu0 0
        %2455 = vmatprep.mubr.bf16.mxu0 0
        %2456 = vmatmul.mubr.bf16.gmra.mrb[0].mxu0 %v2409
        %v2457 = vpop.f32.mrb[0].mxu0
        %v2458 = vadd.f32 0.0, %v2457
        %v2459 = vpop.f32.mrb[0].mxu0
        %v2460 = vpop.f32.mrb[0].mxu0
        %v2461 = vadd.f32 0.0, %v2460
        %v2462 = vpop.f32.mrb[0].mxu0
        %2463 = vmatprep.mubr.bf16.mxu0 0
        %2464 = vmatmul.mubr.bf16.gmra.mrb[0].mxu0 %v2412
        %v2465 = vpop.f32.mrb[0].mxu0
        %v2466 = vadd.f32 0.0, %v2465
        %v2467 = vpop.f32.mrb[0].mxu0
        %v2468 = vpop.f32.mrb[0].mxu0
        %v2469 = vadd.f32 0.0, %v2468
        %v2470 = vpop.f32.mrb[0].mxu0
        %2471 = vmatprep.mubr.bf16.mxu0 0
        %2472 = vmatmul.mubr.bf16.gmra.mrb[0].mxu0 %v2415
        %v2473 = vpop.f32.mrb[0].mxu0
        %v2474 = vadd.f32 0.0, %v2473
        %v2475 = vpop.f32.mrb[0].mxu0
        %v2476 = vpop.f32.mrb[0].mxu0
        %v2477 = vadd.f32 0.0, %v2476
        %v2478 = vpop.f32.mrb[0].mxu0
        %2479 = vmatprep.mubr.bf16.mxu0 0
        %2480 = vmatmul.mubr.bf16.gmra.mrb[0].mxu0 %v2418
        %v2481 = vpop.f32.mrb[0].mxu0
        %v2482 = vadd.f32 0.0, %v2481
        %v2483 = vpop.f32.mrb[0].mxu0
        %v2484 = vpop.f32.mrb[0].mxu0
        %v2485 = vadd.f32 0.0, %v2484
        %v2486 = vpop.f32.mrb[0].mxu0
        %2487 = vdwg.mxu0
        %v2488 = vadd.f32 %v2340, %v2458
        %v2489 = vadd.f32 %v2343, %v2461
        %v2490 = vadd.f32 %v2348, %v2466
        %v2491 = vadd.f32 %v2351, %v2469
        %v2492 = vadd.f32 %v2356, %v2474
        %v2493 = vadd.f32 %v2359, %v2477
        %v2494 = vadd.f32 %v2364, %v2482
        %v2495 = vadd.f32 %v2367, %v2485
        %v2497 = vrot.slane %v2160, 7
        %v2498 = vsel %vm968, %v2187, %v2497
        %v2500 = vpack.c.bf16 %v2178, %v2196
        %v2501 = vpack.c.bf16 %v2182, %v2180
        %v2502 = vpack.c.bf16 %v2186, %v2184
        %v2503 = vpack.c.bf16 %v2498, %v2188
        %s2504 = scalar_lea.vmem [#allocation8], 12
        %v2505 = vld [vmem:[%s2504] sm:$0xf]
        %v2507 = vsel %vm2208, %v2500, 0
        %v2510 = vsel %vm2208, %v2501, 0
        %v2513 = vsel %vm2208, %v2502, 0
        %v2516 = vsel %vm2208, %v2503, 0
        %v2519 = vsel %vm2221, %v2505, 0
        %2521 = vmatprep.subr.bf16.mxu0 0
        %2522 = vmatpush1.bf16.msra.mxu0 %v2519
        %2523 = vmatprep.subr.bf16.mxu0 0
        %2524 = vmatpush1.bf16.msra.mxu0 0
        %2525 = vmatprep.subr.bf16.mxu0 0
        %2526 = vmatpush1.bf16.msra.mxu0 0
        %2527 = vmatprep.subr.bf16.mxu0 0
        %2528 = vmatpush1.bf16.msra.mxu0 0
        %2529 = vmatprep.subr.bf16.mxu0 0
        %2530 = vmatpush1.bf16.msra.mxu0 0
        %2531 = vmatprep.subr.bf16.mxu0 0
        %2532 = vmatpush1.bf16.msra.mxu0 0
        %2533 = vmatprep.subr.bf16.mxu0 0
        %2534 = vmatpush1.bf16.msra.mxu0 0
        %2535 = vmatprep.subr.bf16.mxu0 0
        %2536 = vmatpush1.bf16.msra.mxu0 0
        %2537 = vmatprep.subr.bf16.mxu0 0
        %2538 = vmatpush1.bf16.msra.mxu0 0
        %2539 = vmatprep.subr.bf16.mxu0 0
        %2540 = vmatpush1.bf16.msra.mxu0 0
        %2541 = vmatprep.subr.bf16.mxu0 0
        %2542 = vmatpush1.bf16.msra.mxu0 0
        %2543 = vmatprep.subr.bf16.mxu0 0
        %2544 = vmatpush1.bf16.msra.mxu0 0
        %2545 = vmatprep.subr.bf16.mxu0 0
        %2546 = vmatpush1.bf16.msra.mxu0 0
        %2547 = vmatprep.subr.bf16.mxu0 0
        %2548 = vmatpush1.bf16.msra.mxu0 0
        %2549 = vmatprep.subr.bf16.mxu0 0
        %2550 = vmatpush1.bf16.msra.mxu0 0
        %2551 = vmatprep.subr.bf16.mxu0 0
        %2552 = vmatpush1.bf16.msra.mxu0 0
        %2553 = vmatprep.mubr.bf16.mxu0 0
        %2554 = vmatmul.mubr.bf16.gmra.mrb[0].mxu0 %v2507
        %v2555 = vpop.f32.mrb[0].mxu0
        %v2556 = vadd.f32 0.0, %v2555
        %v2557 = vpop.f32.mrb[0].mxu0
        %v2558 = vpop.f32.mrb[0].mxu0
        %v2559 = vadd.f32 0.0, %v2558
        %v2560 = vpop.f32.mrb[0].mxu0
        %2561 = vmatprep.mubr.bf16.mxu0 0
        %2562 = vmatmul.mubr.bf16.gmra.mrb[0].mxu0 %v2510
        %v2563 = vpop.f32.mrb[0].mxu0
        %v2564 = vadd.f32 0.0, %v2563
        %v2565 = vpop.f32.mrb[0].mxu0
        %v2566 = vpop.f32.mrb[0].mxu0
        %v2567 = vadd.f32 0.0, %v2566
        %v2568 = vpop.f32.mrb[0].mxu0
        %2569 = vmatprep.mubr.bf16.mxu0 0
        %2570 = vmatmul.mubr.bf16.gmra.mrb[0].mxu0 %v2513
        %v2571 = vpop.f32.mrb[0].mxu0
        %v2572 = vadd.f32 0.0, %v2571
        %v2573 = vpop.f32.mrb[0].mxu0
        %v2574 = vpop.f32.mrb[0].mxu0
        %v2575 = vadd.f32 0.0, %v2574
        %v2576 = vpop.f32.mrb[0].mxu0
        %2577 = vmatprep.mubr.bf16.mxu0 0
        %2578 = vmatmul.mubr.bf16.gmra.mrb[0].mxu0 %v2516
        %v2579 = vpop.f32.mrb[0].mxu0
        %v2580 = vadd.f32 0.0, %v2579
        %v2581 = vpop.f32.mrb[0].mxu0
        %v2582 = vpop.f32.mrb[0].mxu0
        %v2583 = vadd.f32 0.0, %v2582
        %v2584 = vpop.f32.mrb[0].mxu0
        %2585 = vdwg.mxu0
        %v2586 = vadd.f32 %v2488, %v2556
        %v2587 = vadd.f32 %v2489, %v2559
        %v2588 = vadd.f32 %v2490, %v2564
        %v2589 = vadd.f32 %v2491, %v2567
        %v2590 = vadd.f32 %v2492, %v2572
        %v2591 = vadd.f32 %v2493, %v2575
        %v2592 = vadd.f32 %v2494, %v2580
        %v2593 = vadd.f32 %v2495, %v2583
        %v2594 = vpack.c.bf16 %v2146, %v2145
        %v2595 = vpack.c.bf16 %v2148, %v2147
        %v2596 = vpack.c.bf16 %v2150, %v2149
        %v2597 = vpack.c.bf16 %v2152, %v2151
        %s2598 = scalar_lea.vmem [#allocation8], 16
        %v2599 = vld [vmem:[%s2598] sm:$0xf]
        %v2601 = vsel %vm2208, %v2594, 0
        %v2604 = vsel %vm2208, %v2595, 0
        %v2607 = vsel %vm2208, %v2596, 0
        %v2610 = vsel %vm2208, %v2597, 0
        %v2613 = vsel %vm2221, %v2599, 0
        %2615 = vmatprep.subr.bf16.mxu0 0
        %2616 = vmatpush1.bf16.msra.mxu0 %v2613
        %2617 = vmatprep.subr.bf16.mxu0 0
        %2618 = vmatpush1.bf16.msra.mxu0 0
        %2619 = vmatprep.subr.bf16.mxu0 0
        %2620 = vmatpush1.bf16.msra.mxu0 0
        %2621 = vmatprep.subr.bf16.mxu0 0
        %2622 = vmatpush1.bf16.msra.mxu0 0
        %2623 = vmatprep.subr.bf16.mxu0 0
        %2624 = vmatpush1.bf16.msra.mxu0 0
        %2625 = vmatprep.subr.bf16.mxu0 0
        %2626 = vmatpush1.bf16.msra.mxu0 0
        %2627 = vmatprep.subr.bf16.mxu0 0
        %2628 = vmatpush1.bf16.msra.mxu0 0
        %2629 = vmatprep.subr.bf16.mxu0 0
        %2630 = vmatpush1.bf16.msra.mxu0 0
        %2631 = vmatprep.subr.bf16.mxu0 0
        %2632 = vmatpush1.bf16.msra.mxu0 0
        %2633 = vmatprep.subr.bf16.mxu0 0
        %2634 = vmatpush1.bf16.msra.mxu0 0
        %2635 = vmatprep.subr.bf16.mxu0 0
        %2636 = vmatpush1.bf16.msra.mxu0 0
        %2637 = vmatprep.subr.bf16.mxu0 0
        %2638 = vmatpush1.bf16.msra.mxu0 0
        %2639 = vmatprep.subr.bf16.mxu0 0
        %2640 = vmatpush1.bf16.msra.mxu0 0
        %2641 = vmatprep.subr.bf16.mxu0 0
        %2642 = vmatpush1.bf16.msra.mxu0 0
        %2643 = vmatprep.subr.bf16.mxu0 0
        %2644 = vmatpush1.bf16.msra.mxu0 0
        %2645 = vmatprep.subr.bf16.mxu0 0
        %2646 = vmatpush1.bf16.msra.mxu0 0
        %2647 = vmatprep.mubr.bf16.mxu0 0
        %2648 = vmatmul.mubr.bf16.gmra.mrb[0].mxu0 %v2601
        %v2649 = vpop.f32.mrb[0].mxu0
        %v2650 = vadd.f32 0.0, %v2649
        %v2651 = vpop.f32.mrb[0].mxu0
        %v2652 = vpop.f32.mrb[0].mxu0
        %v2653 = vadd.f32 0.0, %v2652
        %v2654 = vpop.f32.mrb[0].mxu0
        %2655 = vmatprep.mubr.bf16.mxu0 0
        %2656 = vmatmul.mubr.bf16.gmra.mrb[0].mxu0 %v2604
        %v2657 = vpop.f32.mrb[0].mxu0
        %v2658 = vadd.f32 0.0, %v2657
        %v2659 = vpop.f32.mrb[0].mxu0
        %v2660 = vpop.f32.mrb[0].mxu0
        %v2661 = vadd.f32 0.0, %v2660
        %v2662 = vpop.f32.mrb[0].mxu0
        %2663 = vmatprep.mubr.bf16.mxu0 0
        %2664 = vmatmul.mubr.bf16.gmra.mrb[0].mxu0 %v2607
        %v2665 = vpop.f32.mrb[0].mxu0
        %v2666 = vadd.f32 0.0, %v2665
        %v2667 = vpop.f32.mrb[0].mxu0
        %v2668 = vpop.f32.mrb[0].mxu0
        %v2669 = vadd.f32 0.0, %v2668
        %v2670 = vpop.f32.mrb[0].mxu0
        %2671 = vmatprep.mubr.bf16.mxu0 0
        %2672 = vmatmul.mubr.bf16.gmra.mrb[0].mxu0 %v2610
        %v2673 = vpop.f32.mrb[0].mxu0
        %v2674 = vadd.f32 0.0, %v2673
        %v2675 = vpop.f32.mrb[0].mxu0
        %v2676 = vpop.f32.mrb[0].mxu0
        %v2677 = vadd.f32 0.0, %v2676
        %v2678 = vpop.f32.mrb[0].mxu0
        %2679 = vdwg.mxu0
        %v2680 = vadd.f32 %v2586, %v2650
        %v2681 = vadd.f32 %v2587, %v2653
        %v2682 = vadd.f32 %v2588, %v2658
        %v2683 = vadd.f32 %v2589, %v2661
        %v2684 = vadd.f32 %v2590, %v2666
        %v2685 = vadd.f32 %v2591, %v2669
        %v2686 = vadd.f32 %v2592, %v2674
        %v2687 = vadd.f32 %v2593, %v2677
        %v2689 = vsel %vm1171, %v2391, 0.0
        %v2690 = vpack.c.bf16 %v2382, %v2380
        %v2691 = vpack.c.bf16 %v2386, %v2384
        %v2692 = vpack.c.bf16 %v2390, %v2388
        %v2693 = vpack.c.bf16 %v2689, %v2392
        %s2694 = scalar_lea.vmem [#allocation8], 20
        %v2695 = vld [vmem:[%s2694] sm:$0xf]
        %v2697 = vsel %vm2208, %v2690, 0
        %v2700 = vsel %vm2208, %v2691, 0
        %v2703 = vsel %vm2208, %v2692, 0
        %v2706 = vsel %vm2208, %v2693, 0
        %v2709 = vsel %vm2221, %v2695, 0
        %2711 = vmatprep.subr.bf16.mxu0 0
        %2712 = vmatpush1.bf16.msra.mxu0 %v2709
        %2713 = vmatprep.subr.bf16.mxu0 0
        %2714 = vmatpush1.bf16.msra.mxu0 0
        %2715 = vmatprep.subr.bf16.mxu0 0
        %2716 = vmatpush1.bf16.msra.mxu0 0
        %2717 = vmatprep.subr.bf16.mxu0 0
        %2718 = vmatpush1.bf16.msra.mxu0 0
        %2719 = vmatprep.subr.bf16.mxu0 0
        %2720 = vmatpush1.bf16.msra.mxu0 0
        %2721 = vmatprep.subr.bf16.mxu0 0
        %2722 = vmatpush1.bf16.msra.mxu0 0
        %2723 = vmatprep.subr.bf16.mxu0 0
        %2724 = vmatpush1.bf16.msra.mxu0 0
        %2725 = vmatprep.subr.bf16.mxu0 0
        %2726 = vmatpush1.bf16.msra.mxu0 0
        %2727 = vmatprep.subr.bf16.mxu0 0
        %2728 = vmatpush1.bf16.msra.mxu0 0
        %2729 = vmatprep.subr.bf16.mxu0 0
        %2730 = vmatpush1.bf16.msra.mxu0 0
        %2731 = vmatprep.subr.bf16.mxu0 0
        %2732 = vmatpush1.bf16.msra.mxu0 0
        %2733 = vmatprep.subr.bf16.mxu0 0
        %2734 = vmatpush1.bf16.msra.mxu0 0
        %2735 = vmatprep.subr.bf16.mxu0 0
        %2736 = vmatpush1.bf16.msra.mxu0 0
        %2737 = vmatprep.subr.bf16.mxu0 0
        %2738 = vmatpush1.bf16.msra.mxu0 0
        %2739 = vmatprep.subr.bf16.mxu0 0
        %2740 = vmatpush1.bf16.msra.mxu0 0
        %2741 = vmatprep.subr.bf16.mxu0 0
        %2742 = vmatpush1.bf16.msra.mxu0 0
        %2743 = vmatprep.mubr.bf16.mxu0 0
        %2744 = vmatmul.mubr.bf16.gmra.mrb[0].mxu0 %v2697
        %v2745 = vpop.f32.mrb[0].mxu0
        %v2746 = vadd.f32 0.0, %v2745
        %v2747 = vpop.f32.mrb[0].mxu0
        %v2748 = vpop.f32.mrb[0].mxu0
        %v2749 = vadd.f32 0.0, %v2748
        %v2750 = vpop.f32.mrb[0].mxu0
        %2751 = vmatprep.mubr.bf16.mxu0 0
        %2752 = vmatmul.mubr.bf16.gmra.mrb[0].mxu0 %v2700
        %v2753 = vpop.f32.mrb[0].mxu0
        %v2754 = vadd.f32 0.0, %v2753
        %v2755 = vpop.f32.mrb[0].mxu0
        %v2756 = vpop.f32.mrb[0].mxu0
        %v2757 = vadd.f32 0.0, %v2756
        %v2758 = vpop.f32.mrb[0].mxu0
        %2759 = vmatprep.mubr.bf16.mxu0 0
        %2760 = vmatmul.mubr.bf16.gmra.mrb[0].mxu0 %v2703
        %v2761 = vpop.f32.mrb[0].mxu0
        %v2762 = vadd.f32 0.0, %v2761
        %v2763 = vpop.f32.mrb[0].mxu0
        %v2764 = vpop.f32.mrb[0].mxu0
        %v2765 = vadd.f32 0.0, %v2764
        %v2766 = vpop.f32.mrb[0].mxu0
        %2767 = vmatprep.mubr.bf16.mxu0 0
        %2768 = vmatmul.mubr.bf16.gmra.mrb[0].mxu0 %v2706
        %v2769 = vpop.f32.mrb[0].mxu0
        %v2770 = vadd.f32 0.0, %v2769
        %v2771 = vpop.f32.mrb[0].mxu0
        %v2772 = vpop.f32.mrb[0].mxu0
        %v2773 = vadd.f32 0.0, %v2772
        %v2774 = vpop.f32.mrb[0].mxu0
        %2775 = vdwg.mxu0
        %v2776 = vadd.f32 %v2680, %v2746
        %v2777 = vadd.f32 %v2681, %v2749
        %v2778 = vadd.f32 %v2682, %v2754
        %v2779 = vadd.f32 %v2683, %v2757
        %v2780 = vadd.f32 %v2684, %v2762
        %v2781 = vadd.f32 %v2685, %v2765
        %v2782 = vadd.f32 %v2686, %v2770
        %v2783 = vadd.f32 %v2687, %v2773
        %v2785 = vsel %vm968, %v2497, 0.0
        %v2786 = vpack.c.bf16 %v2785, %v2498
        %s2787 = scalar_lea.vmem [#allocation8], 24
        %v2788 = vld [vmem:[%s2787] sm:$0xf]
        %v2790 = vsel %vm2208, %v2786, 0
        %v2793 = vsel %vm2221, %v2788, 0
        %2795 = vmatprep.subr.bf16.mxu0 0
        %2796 = vmatpush1.bf16.msra.mxu0 %v2793
        %2797 = vmatprep.subr.bf16.mxu0 0
        %2798 = vmatpush1.bf16.msra.mxu0 0
        %2799 = vmatprep.subr.bf16.mxu0 0
        %2800 = vmatpush1.bf16.msra.mxu0 0
        %2801 = vmatprep.subr.bf16.mxu0 0
        %2802 = vmatpush1.bf16.msra.mxu0 0
        %2803 = vmatprep.subr.bf16.mxu0 0
        %2804 = vmatpush1.bf16.msra.mxu0 0
        %2805 = vmatprep.subr.bf16.mxu0 0
        %2806 = vmatpush1.bf16.msra.mxu0 0
        %2807 = vmatprep.subr.bf16.mxu0 0
        %2808 = vmatpush1.bf16.msra.mxu0 0
        %2809 = vmatprep.subr.bf16.mxu0 0
        %2810 = vmatpush1.bf16.msra.mxu0 0
        %2811 = vmatprep.subr.bf16.mxu0 0
        %2812 = vmatpush1.bf16.msra.mxu0 0
        %2813 = vmatprep.subr.bf16.mxu0 0
        %2814 = vmatpush1.bf16.msra.mxu0 0
        %2815 = vmatprep.subr.bf16.mxu0 0
        %2816 = vmatpush1.bf16.msra.mxu0 0
        %2817 = vmatprep.subr.bf16.mxu0 0
        %2818 = vmatpush1.bf16.msra.mxu0 0
        %2819 = vmatprep.subr.bf16.mxu0 0
        %2820 = vmatpush1.bf16.msra.mxu0 0
        %2821 = vmatprep.subr.bf16.mxu0 0
        %2822 = vmatpush1.bf16.msra.mxu0 0
        %2823 = vmatprep.subr.bf16.mxu0 0
        %2824 = vmatpush1.bf16.msra.mxu0 0
        %2825 = vmatprep.subr.bf16.mxu0 0
        %2826 = vmatpush1.bf16.msra.mxu0 0
        %2827 = vmatprep.mubr.bf16.mxu0 0
        %2828 = vmatmul.mubr.bf16.gmra.mrb[0].mxu0 %v2294
        %v2829 = vpop.f32.mrb[0].mxu0
        %v2830 = vadd.f32 0.0, %v2829
        %v2831 = vpop.f32.mrb[0].mxu0
        %v2832 = vpop.f32.mrb[0].mxu0
        %v2833 = vadd.f32 0.0, %v2832
        %v2834 = vpop.f32.mrb[0].mxu0
        %2835 = vmatprep.mubr.bf16.mxu0 0
        %2836 = vmatmul.mubr.bf16.gmra.mrb[0].mxu0 %v2297
        %v2837 = vpop.f32.mrb[0].mxu0
        %v2838 = vadd.f32 0.0, %v2837
        %v2839 = vpop.f32.mrb[0].mxu0
        %v2840 = vpop.f32.mrb[0].mxu0
        %v2841 = vadd.f32 0.0, %v2840
        %v2842 = vpop.f32.mrb[0].mxu0
        %2843 = vmatprep.mubr.bf16.mxu0 0
        %2844 = vmatmul.mubr.bf16.gmra.mrb[0].mxu0 %v2300
        %v2845 = vpop.f32.mrb[0].mxu0
        %v2846 = vadd.f32 0.0, %v2845
        %v2847 = vpop.f32.mrb[0].mxu0
        %v2848 = vpop.f32.mrb[0].mxu0
        %v2849 = vadd.f32 0.0, %v2848
        %v2850 = vpop.f32.mrb[0].mxu0
        %2851 = vmatprep.mubr.bf16.mxu0 0
        %2852 = vmatmul.mubr.bf16.gmra.mrb[0].mxu0 %v2790
        %v2853 = vpop.f32.mrb[0].mxu0
        %v2854 = vadd.f32 0.0, %v2853
        %v2855 = vpop.f32.mrb[0].mxu0
        %v2856 = vpop.f32.mrb[0].mxu0
        %v2857 = vadd.f32 0.0, %v2856
        %v2858 = vpop.f32.mrb[0].mxu0
        %2859 = vdwg.mxu0
        %v2860 = vadd.f32 %v2776, %v2830
        %v2861 = vadd.f32 %v2777, %v2833
        %v2862 = vadd.f32 %v2778, %v2838
        %v2863 = vadd.f32 %v2779, %v2841
        %v2864 = vadd.f32 %v2780, %v2846
        %v2865 = vadd.f32 %v2781, %v2849
        %v2866 = vadd.f32 %v2782, %v2854
        %v2867 = vadd.f32 %v2783, %v2857
        %v2868 = vpack.c.bf16 0.0, %v2152
        %s2869 = scalar_lea.vmem [#allocation8], 28
        %v2870 = vld [vmem:[%s2869] sm:$0xf]
        %v2872 = vsel %vm2208, %v2868, 0
        %v2875 = vsel %vm2221, %v2870, 0
        %2877 = vmatprep.subr.bf16.mxu0 0
        %2878 = vmatpush1.bf16.msra.mxu0 %v2875
        %2879 = vmatprep.subr.bf16.mxu0 0
        %2880 = vmatpush1.bf16.msra.mxu0 0
        %2881 = vmatprep.subr.bf16.mxu0 0
        %2882 = vmatpush1.bf16.msra.mxu0 0
        %2883 = vmatprep.subr.bf16.mxu0 0
        %2884 = vmatpush1.bf16.msra.mxu0 0
        %2885 = vmatprep.subr.bf16.mxu0 0
        %2886 = vmatpush1.bf16.msra.mxu0 0
        %2887 = vmatprep.subr.bf16.mxu0 0
        %2888 = vmatpush1.bf16.msra.mxu0 0
        %2889 = vmatprep.subr.bf16.mxu0 0
        %2890 = vmatpush1.bf16.msra.mxu0 0
        %2891 = vmatprep.subr.bf16.mxu0 0
        %2892 = vmatpush1.bf16.msra.mxu0 0
        %2893 = vmatprep.subr.bf16.mxu0 0
        %2894 = vmatpush1.bf16.msra.mxu0 0
        %2895 = vmatprep.subr.bf16.mxu0 0
        %2896 = vmatpush1.bf16.msra.mxu0 0
        %2897 = vmatprep.subr.bf16.mxu0 0
        %2898 = vmatpush1.bf16.msra.mxu0 0
        %2899 = vmatprep.subr.bf16.mxu0 0
        %2900 = vmatpush1.bf16.msra.mxu0 0
        %2901 = vmatprep.subr.bf16.mxu0 0
        %2902 = vmatpush1.bf16.msra.mxu0 0
        %2903 = vmatprep.subr.bf16.mxu0 0
        %2904 = vmatpush1.bf16.msra.mxu0 0
        %2905 = vmatprep.subr.bf16.mxu0 0
        %2906 = vmatpush1.bf16.msra.mxu0 0
        %2907 = vmatprep.subr.bf16.mxu0 0
        %2908 = vmatpush1.bf16.msra.mxu0 0
        %2909 = vmatprep.mubr.bf16.mxu0 0
        %2910 = vmatmul.mubr.bf16.gmra.mrb[0].mxu0 %v2213
        %v2911 = vpop.f32.mrb[0].mxu0
        %v2912 = vadd.f32 0.0, %v2911
        %v2913 = vpop.f32.mrb[0].mxu0
        %v2914 = vpop.f32.mrb[0].mxu0
        %v2915 = vadd.f32 0.0, %v2914
        %v2916 = vpop.f32.mrb[0].mxu0
        %2917 = vmatprep.mubr.bf16.mxu0 0
        %2918 = vmatmul.mubr.bf16.gmra.mrb[0].mxu0 %v2216
        %v2919 = vpop.f32.mrb[0].mxu0
        %v2920 = vadd.f32 0.0, %v2919
        %v2921 = vpop.f32.mrb[0].mxu0
        %v2922 = vpop.f32.mrb[0].mxu0
        %v2923 = vadd.f32 0.0, %v2922
        %v2924 = vpop.f32.mrb[0].mxu0
        %2925 = vmatprep.mubr.bf16.mxu0 0
        %2926 = vmatmul.mubr.bf16.gmra.mrb[0].mxu0 %v2219
        %v2927 = vpop.f32.mrb[0].mxu0
        %v2928 = vadd.f32 0.0, %v2927
        %v2929 = vpop.f32.mrb[0].mxu0
        %v2930 = vpop.f32.mrb[0].mxu0
        %v2931 = vadd.f32 0.0, %v2930
        %v2932 = vpop.f32.mrb[0].mxu0
        %2933 = vmatprep.mubr.bf16.mxu0 0
        %2934 = vmatmul.mubr.bf16.gmra.mrb[0].mxu0 %v2872
        %v2935 = vpop.f32.mrb[0].mxu0
        %v2936 = vadd.f32 0.0, %v2935
        %v2937 = vpop.f32.mrb[0].mxu0
        %v2938 = vpop.f32.mrb[0].mxu0
        %v2939 = vadd.f32 0.0, %v2938
        %v2940 = vpop.f32.mrb[0].mxu0
        %2941 = vdwg.mxu0
        %v2942 = vadd.f32 %v2860, %v2912
        %v2943 = vadd.f32 %v2861, %v2915
        %v2944 = vadd.f32 %v2862, %v2920
        %v2945 = vadd.f32 %v2863, %v2923
        %v2946 = vadd.f32 %v2864, %v2928
        %v2947 = vadd.f32 %v2865, %v2931
        %v2948 = vadd.f32 %v2866, %v2936
        %v2949 = vadd.f32 %v2867, %v2939
        %v2950 = vpack.c.bf16 0.0, %v2689
        %s2951 = scalar_lea.vmem [#allocation8], 32
        %v2952 = vld [vmem:[%s2951] sm:$0xf]
        %v2954 = vsel %vm2208, %v2950, 0
        %v2957 = vsel %vm2221, %v2952, 0
        %2959 = vmatprep.subr.bf16.mxu0 0
        %2960 = vmatpush1.bf16.msra.mxu0 %v2957
        %2961 = vmatprep.subr.bf16.mxu0 0
        %2962 = vmatpush1.bf16.msra.mxu0 0
        %2963 = vmatprep.subr.bf16.mxu0 0
        %2964 = vmatpush1.bf16.msra.mxu0 0
        %2965 = vmatprep.subr.bf16.mxu0 0
        %2966 = vmatpush1.bf16.msra.mxu0 0
        %2967 = vmatprep.subr.bf16.mxu0 0
        %2968 = vmatpush1.bf16.msra.mxu0 0
        %2969 = vmatprep.subr.bf16.mxu0 0
        %2970 = vmatpush1.bf16.msra.mxu0 0
        %2971 = vmatprep.subr.bf16.mxu0 0
        %2972 = vmatpush1.bf16.msra.mxu0 0
        %2973 = vmatprep.subr.bf16.mxu0 0
        %2974 = vmatpush1.bf16.msra.mxu0 0
        %2975 = vmatprep.subr.bf16.mxu0 0
        %2976 = vmatpush1.bf16.msra.mxu0 0
        %2977 = vmatprep.subr.bf16.mxu0 0
        %2978 = vmatpush1.bf16.msra.mxu0 0
        %2979 = vmatprep.subr.bf16.mxu0 0
        %2980 = vmatpush1.bf16.msra.mxu0 0
        %2981 = vmatprep.subr.bf16.mxu0 0
        %2982 = vmatpush1.bf16.msra.mxu0 0
        %2983 = vmatprep.subr.bf16.mxu0 0
        %2984 = vmatpush1.bf16.msra.mxu0 0
        %2985 = vmatprep.subr.bf16.mxu0 0
        %2986 = vmatpush1.bf16.msra.mxu0 0
        %2987 = vmatprep.subr.bf16.mxu0 0
        %2988 = vmatpush1.bf16.msra.mxu0 0
        %2989 = vmatprep.subr.bf16.mxu0 0
        %2990 = vmatpush1.bf16.msra.mxu0 0
        %2991 = vmatprep.mubr.bf16.mxu0 0
        %2992 = vmatmul.mubr.bf16.gmra.mrb[0].mxu0 %v2412
        %v2993 = vpop.f32.mrb[0].mxu0
        %v2994 = vadd.f32 0.0, %v2993
        %v2995 = vpop.f32.mrb[0].mxu0
        %v2996 = vpop.f32.mrb[0].mxu0
        %v2997 = vadd.f32 0.0, %v2996
        %v2998 = vpop.f32.mrb[0].mxu0
        %2999 = vmatprep.mubr.bf16.mxu0 0
        %3000 = vmatmul.mubr.bf16.gmra.mrb[0].mxu0 %v2415
        %v3001 = vpop.f32.mrb[0].mxu0
        %v3002 = vadd.f32 0.0, %v3001
        %v3003 = vpop.f32.mrb[0].mxu0
        %v3004 = vpop.f32.mrb[0].mxu0
        %v3005 = vadd.f32 0.0, %v3004
        %v3006 = vpop.f32.mrb[0].mxu0
        %3007 = vmatprep.mubr.bf16.mxu0 0
        %3008 = vmatmul.mubr.bf16.gmra.mrb[0].mxu0 %v2418
        %v3009 = vpop.f32.mrb[0].mxu0
        %v3010 = vadd.f32 0.0, %v3009
        %v3011 = vpop.f32.mrb[0].mxu0
        %v3012 = vpop.f32.mrb[0].mxu0
        %v3013 = vadd.f32 0.0, %v3012
        %v3014 = vpop.f32.mrb[0].mxu0
        %3015 = vmatprep.mubr.bf16.mxu0 0
        %3016 = vmatmul.mubr.bf16.gmra.mrb[0].mxu0 %v2954
        %v3017 = vpop.f32.mrb[0].mxu0
        %v3018 = vadd.f32 0.0, %v3017
        %v3019 = vpop.f32.mrb[0].mxu0
        %v3020 = vpop.f32.mrb[0].mxu0
        %v3021 = vadd.f32 0.0, %v3020
        %v3022 = vpop.f32.mrb[0].mxu0
        %3023 = vdwg.mxu0
        %v3024 = vadd.f32 %v2942, %v2994
        %v3025 = vadd.f32 %v2943, %v2997
        %v3026 = vadd.f32 %v2944, %v3002
        %v3027 = vadd.f32 %v2945, %v3005
        %v3028 = vadd.f32 %v2946, %v3010
        %v3029 = vadd.f32 %v2947, %v3013
        %v3030 = vadd.f32 %v2948, %v3018
        %v3031 = vadd.f32 %v2949, %v3021
        %v3032 = vld [vmem:[#allocation10] sm:$0x1]
        %v3034 = vlaneseq
        %v3035 = vshrl.u32 %v3034, 7
        %v3036 = vsub.s32 0, %v3035
        %v3037 = vrot.slane %v3032, %v3036
        %v3039 = vadd.f32 %v3024, %v3037
        %v3040 = vadd.f32 %v3025, %v3037
        %v3041 = vadd.f32 %v3026, %v3037
        %v3042 = vadd.f32 %v3027, %v3037
        %v3043 = vadd.f32 %v3028, %v3037
        %v3044 = vadd.f32 %v3029, %v3037
        %v3045 = vadd.f32 %v3030, %v3037
        %v3046 = vadd.f32 %v3031, %v3037
        %v3047 = vmax.f32 %v3039, 0.0
        %v3048 = vmax.f32 %v3040, 0.0
        %v3049 = vmax.f32 %v3041, 0.0
        %v3050 = vmax.f32 %v3042, 0.0
        %v3051 = vmax.f32 %v3043, 0.0
        %v3052 = vmax.f32 %v3044, 0.0
        %v3053 = vmax.f32 %v3045, 0.0
        %v3054 = vmax.f32 %v3046, 0.0
        %3055 = vst.msk [vmem:[%s296] sm:$0xff] %vm2208, %v3047
        %3056 = vst.msk [vmem:[%s296 + $0x8] sm:$0xff] %vm2208, %v3048
        %3057 = vst.msk [vmem:[%s296 + $0x10] sm:$0xff] %vm2208, %v3049
        %3058 = vst.msk [vmem:[%s296 + $0x18] sm:$0xff] %vm2208, %v3050
        %3059 = vst.msk [vmem:[%s296 + $0x20] sm:$0xff] %vm2208, %v3051
        %3060 = vst.msk [vmem:[%s296 + $0x28] sm:$0xff] %vm2208, %v3052
        %3061 = vst.msk [vmem:[%s296 + $0x30] sm:$0xff] %vm2208, %v3053
        %3062 = vst.msk [vmem:[%s296 + $0x38] sm:$0xff] %vm2208, %v3054
        %s3063 = sand.u32 %s142, 1
        %s3064 = scalar_lea.sflag [#allocation4], %s3063
        %s3065 = sand.u32 %s142, 1
        %s3066 = smul.addr %s3065, 64
        %s3067 = scalar_lea.vmem [#allocation11], %s3066
        // Predicated region
        $region61: #{down_forward.1} parent=39 // pred_check
          %p3068 = pneg %p152
        $region62: #{down_forward.1} parent=39 // pred_check_branch
          %3070 = sbr.rel (%p3068) target = $region64
        $region63: #{down_forward.1} parent=39 // pred_region
          %s3072 = ssub.s32 1024, 1024
          %3073 = vsyncadd %s3064, %s3072
          %s3074 = smul.addr %s24, 8
          %s3075 = smul.addr %s3074, 128
          %s3076 = scalar_lea.hbm %s5, %s3075
          %s3077 = sshll.u32 %s3067, 4
          %s3078 = int_to_ptr.vmem [resolvable:$true] %s3077
          %3083 = dma.vmem_to_hbm [thread:$0]  %s3078, 1024, %s3076, %s3064, 128, 128, 8
        $region64: #{down_forward.1} parent=39 // pred_fallthru
          _
      $region40: #{down_forward.1} parent=5 // pred_fallthru
        _
      %p3084 = scmp.le.s32.totalorder 2, %s19
      // Predicated region
      $region65: #{down_forward.1} parent=5 // pred_check
        %p3085 = pneg %p3084
      $region66: #{down_forward.1} parent=5 // pred_check_branch
        %3087 = sbr.rel (%p3085) target = $region68
      $region67: #{down_forward.1} parent=5 // pred_region
        %s3088 = ssub.s32 %s19, 2
        // Predicated region
        $region69: #{down_forward.1} parent=67 // pred_check
          %p3089 = pneg %p158
        $region70: #{down_forward.1} parent=67 // pred_check_branch
          %3091 = sbr.rel (%p3089) target = $region72
        $region71: #{down_forward.1} parent=67 // pred_region
          %s3092 = sand.u32 %s143, 1
          %s3093 = scalar_lea.sflag [#allocation4], %s3092
          %s3094 = sand.u32 %s143, 1
          %s3095 = smul.addr %s3094, 64
          %s3096 = scalar_lea.vmem [#allocation11], %s3095
          %3097 = dma.done %s3093, 1024
        $region72: #{down_forward.1} parent=67 // pred_fallthru
          _
      $region68: #{down_forward.1} parent=5 // pred_fallthru
        _
    $region6: #{down_forward.1} parent=1 // loop_footer
      %s23 = sadd.s32 1, %s19
    $region7: #{down_forward.1} parent=1 // loop_footer_branch
      %18 = sbr.rel target = $region3
    $region8: #{down_forward.1} parent=1 // loop_exit
      _
    %3098 = vsyncpa [#allocation3], 1
    %s3099 = scalar_lea.sflag [#allocation3], 1
    %3100 = vsyncpa %s3099, 1
    %3101 = vsyncpa [#allocation6], 1
    %3102 = vsyncpa [#allocation9], 1
    %3103 = vsyncpa [#allocation4], 1
    %s3104 = scalar_lea.sflag [#allocation4], 1
    %3105 = vsyncpa %s3104, 1

</llo_original>
